<compile_context>
chip_gen: v5e
topology: v5e:2x2
jax: 0.10.0
libtpu: 0.0.40
codegen_flags: <defaults>
</compile_context>

<pallas_src>
import functools
import math

import jax
import jax.numpy as jnp
from jax.experimental import pallas as pl
from jax.experimental.pallas import tpu as pltpu


# --------------------------------------------------------------------------
# Kernels
# --------------------------------------------------------------------------
def _feat_transform_kernel(feat_ref, feat_a_ref, w1_ref, hh_ref):
    # HH = [feat @ W1 | feat_a @ W1] for one row tile (bf16 in, f32 acc, bf16 out).
    fp = w1_ref.shape[1]
    w1 = w1_ref[...]
    h = jnp.dot(feat_ref[...], w1, preferred_element_type=jnp.float32)
    h_a = jnp.dot(feat_a_ref[...], w1, preferred_element_type=jnp.float32)
    hh_ref[:, :fp] = h.astype(hh_ref.dtype)
    hh_ref[:, fp:] = h_a.astype(hh_ref.dtype)


def _adj_prop_kernel(adj_ref, hh_ref, zz_ref, zz_bf16_ref):
    # ZZ = adj @ HH, accumulated directly into the VMEM-resident f32 output block
    # (output block index is constant over k).  A bf16 twin is emitted for the
    # pass-3 reduction operand.
    k = pl.program_id(1)

    @pl.when(k == 0)
    def _():
        zz_ref[...] = jnp.zeros_like(zz_ref)

    zz_ref[...] += jnp.dot(adj_ref[...], hh_ref[...],
                           preferred_element_type=jnp.float32)

    @pl.when(k == pl.num_programs(1) - 1)
    def _():
        zz_bf16_ref[...] = zz_ref[...].astype(zz_bf16_ref.dtype)


def _finalize_kernel(adj_ref, gn_ref, zzk_ref, zzi_ref, w2_ref, bw_ref, bb_ref,
                     recon_ref, scores_ref, acc_read, acc_rec):
    # Fused: AvgReadout (both streams at double lane width), recon adj-pass,
    # L2-normalize + sigmoid, discriminator (hoisted bilinear matmul).
    k = pl.program_id(1)
    fp = acc_rec.shape[-1]

    @pl.when(k == 0)
    def _():
        acc_read[...] = jnp.zeros_like(acc_read)
        acc_rec[...] = jnp.zeros_like(acc_rec)

    zz = zzk_ref[...]                       # bf16 (blk_k, 2*fp) = [z | z_a]
    emb_both = jnp.maximum(zz, 0.0)         # relu, both streams at once (bf16)

    # One gn pass over [emb | emb_a]; recon adj-pass reuses the same zz k-tile.
    acc_read[...] += jnp.dot(gn_ref[...], emb_both,
                             preferred_element_type=jnp.float32)
    acc_rec[...] += jnp.dot(adj_ref[...], zz[:, :fp],
                            preferred_element_type=jnp.float32)

    @pl.when(k == pl.num_programs(1) - 1)
    def _():
        # AvgReadout's divide by row_sum is a positive per-row scale that cancels
        # exactly in the L2 normalize -> skip it (no row_sum accumulator at all).
        def _norm_sigmoid(x):
            ss = jnp.sum(x * x, axis=1, keepdims=True)
            # F.normalize: x / max(||x||, 1e-12) == x * rsqrt(max(ss, 1e-24))
            return jax.nn.sigmoid(x * jax.lax.rsqrt(jnp.maximum(ss, 1e-24)))

        g = _norm_sigmoid(acc_read[:, :fp])
        g_a = _norm_sigmoid(acc_read[:, fp:])

        # recon = (adj @ z) @ W2  (reassociated; identical math to adj @ (z @ W2))
        recon_ref[...] = jnp.dot(acc_rec[...], w2_ref[...],
                                 preferred_element_type=jnp.float32)

        # Discriminator: hoist the bilinear matmuls -> 2 MXU matmuls, not 4.
        zz_i = zzi_ref[...]                  # f32 row tile of [z | z_a]
        bw = bw_ref[...]
        hw = jnp.dot(jnp.maximum(zz_i[:, :fp], 0.0), bw,
                     preferred_element_type=jnp.float32)
        hw_a = jnp.dot(jnp.maximum(zz_i[:, fp:], 0.0), bw,
                       preferred_element_type=jnp.float32)
        bb = bb_ref[0, 0]
        pos0 = jnp.sum(hw * g, axis=1, keepdims=True) + bb
        pos1 = jnp.sum(hw_a * g, axis=1, keepdims=True) + bb
        neg0 = jnp.sum(hw_a * g_a, axis=1, keepdims=True) + bb
        neg1 = jnp.sum(hw * g_a, axis=1, keepdims=True) + bb

        # Lane-dense packed score slab: [pos0 pos1 neg0 neg1 0 ... 0]
        lane = jax.lax.broadcasted_iota(jnp.int32, scores_ref.shape, 1)
        scores_ref[...] = (jnp.where(lane == 0, pos0, 0.0)
                           + jnp.where(lane == 1, pos1, 0.0)
                           + jnp.where(lane == 2, neg0, 0.0)
                           + jnp.where(lane == 3, neg1, 0.0))


# --------------------------------------------------------------------------
# Wrapper
# --------------------------------------------------------------------------
def _round_up(x, m):
    return (x + m - 1) // m * m


def _prep(x, rows, cols, dtype):
    # Fused cast + (optional) zero-pad; the pad is elided when shapes already match.
    x = x.astype(dtype)
    pr, pc = rows - x.shape[0], cols - x.shape[1]
    if pr or pc:
        x = jnp.pad(x, ((0, pr), (0, pc)))
    return x


def _vmem_limit(nbytes):
    # 25% headroom + 2 MiB, floored at 16 MiB. Cap at 128 MiB (v5e/v6e physical);
    # on v7x (64 MiB/TC) pick tiles so the estimate stays well under that.
    return int(min(max(nbytes + nbytes // 4 + (2 << 20), 16 << 20), 128 << 20))


@functools.partial(jax.jit, static_argnames=("block_n", "block_k"))
def autoencoder_g_forward(feat, feat_a, adj, graph_neigh, w1, w2, bw, bb,
                          block_n=256, block_k=512):
    N, f_in = feat.shape
    f_out = w1.shape[1]
    assert block_n % 128 == 0 and block_k % 128 == 0

    # Feature dims padded to MXU-native 128-lane multiples.
    fin_p = _round_up(max(f_in, 128), 128)
    fp = _round_up(max(f_out, 128), 128)
    two_fp = 2 * fp

    n128 = _round_up(N, 128)
    blk_m = min(block_n, n128)            # row tile
    blk_k = min(block_k, n128)            # reduction tile (decoupled from blk_m)
    np_ = _round_up(N, math.lcm(blk_m, blk_k))
    n_i = np_ // blk_m
    n_k = np_ // blk_k

    bf16, f32 = jnp.bfloat16, jnp.float32
    feat_p = _prep(feat, np_, fin_p, bf16)
    feat_a_p = _prep(feat_a, np_, fin_p, bf16)
    adj_p = _prep(adj, np_, np_, bf16)
    gn_p = _prep(graph_neigh, np_, np_, bf16)
    w1_p = _prep(w1, fin_p, fp, bf16)
    w2_p = _prep(w2, fp, fin_p, f32)
    bw_p = _prep(bw, fp, fp, f32)
    bb_p = jnp.asarray(bb, f32).reshape(1, 1)

    # -------- per-pass VMEM budgets (double-buffered tiles + scratch) ----------
    p1_bytes = (2 * blk_m * fin_p * 2 * 2        # feat, feat_a (bf16, 2 bufs)
                + fin_p * fp * 2 * 2             # W1
                + blk_m * two_fp * 2 * 2)        # HH out (bf16)
    p2_bytes = (blk_m * blk_k * 2 * 2            # adj (bf16)
                + blk_k * two_fp * 2 * 2         # HH (bf16)
                + blk_m * two_fp * 4 * 2         # ZZ f32 out
                + blk_m * two_fp * 2 * 2)        # ZZ bf16 out
    p3_bytes = (2 * blk_m * blk_k * 2 * 2        # adj, gn (bf16)
                + blk_k * two_fp * 2 * 2         # ZZ k-tile (bf16)
                + blk_m * two_fp * 4 * 2         # ZZ row tile (f32)
                + fp * fin_p * 4 * 2             # W2
                + fp * fp * 4 * 2                # bilinear W
                + blk_m * fin_p * 4 * 2          # recon out
                + blk_m * 128 * 4 * 2            # score slab out
                + blk_m * two_fp * 4             # acc_read scratch
                + blk_m * fp * 4)                # acc_rec scratch

    # ---- pass 1: HH = [feat @ W1 | feat_a @ W1]  (bf16 out) -------------------
    hh = pl.pallas_call(
        _feat_transform_kernel,
        out_shape=jax.ShapeDtypeStruct((np_, two_fp), bf16),
        grid=(n_i,),
        in_specs=[pl.BlockSpec((blk_m, fin_p), lambda i: (i, 0)),
                  pl.BlockSpec((blk_m, fin_p), lambda i: (i, 0)),
                  pl.BlockSpec((fin_p, fp), lambda i: (0, 0))],
        out_specs=pl.BlockSpec((blk_m, two_fp), lambda i: (i, 0)),
        compiler_params=pltpu.CompilerParams(
            dimension_semantics=("parallel",),
            vmem_limit_bytes=_vmem_limit(p1_bytes)),
    )(feat_p, feat_a_p, w1_p)

    # ---- pass 2: ZZ = adj @ HH  (= [z | z_a], pre-activation; f32 + bf16 twin) -
    zz, zz_bf16 = pl.pallas_call(
        _adj_prop_kernel,
        out_shape=(jax.ShapeDtypeStruct((np_, two_fp), f32),
                   jax.ShapeDtypeStruct((np_, two_fp), bf16)),
        grid=(n_i, n_k),
        in_specs=[pl.BlockSpec((blk_m, blk_k), lambda i, k: (i, k)),
                  pl.BlockSpec((blk_k, two_fp), lambda i, k: (k, 0))],
        out_specs=(pl.BlockSpec((blk_m, two_fp), lambda i, k: (i, 0)),
                   pl.BlockSpec((blk_m, two_fp), lambda i, k: (i, 0))),
        compiler_params=pltpu.CompilerParams(
            dimension_semantics=("parallel", "arbitrary"),
            vmem_limit_bytes=_vmem_limit(p2_bytes)),
    )(adj_p, hh)

    # ---- pass 3: readout + recon + discriminator ------------------------------
    recon_p, scores = pl.pallas_call(
        _finalize_kernel,
        out_shape=(jax.ShapeDtypeStruct((np_, fin_p), f32),
                   jax.ShapeDtypeStruct((np_, 128), f32)),
        grid=(n_i, n_k),
        in_specs=[pl.BlockSpec((blk_m, blk_k), lambda i, k: (i, k)),       # adj
                  pl.BlockSpec((blk_m, blk_k), lambda i, k: (i, k)),       # graph_neigh
                  pl.BlockSpec((blk_k, two_fp), lambda i, k: (k, 0)),      # ZZ bf16 (reduction)
                  pl.BlockSpec((blk_m, two_fp), lambda i, k: (i, 0)),      # ZZ f32 (row tile)
                  pl.BlockSpec((fp, fin_p), lambda i, k: (0, 0)),          # W2
                  pl.BlockSpec((fp, fp), lambda i, k: (0, 0)),             # bilinear W
                  pl.BlockSpec(memory_space=pltpu.MemorySpace.SMEM)],      # bilinear bias
        out_specs=(pl.BlockSpec((blk_m, fin_p), lambda i, k: (i, 0)),
                   pl.BlockSpec((blk_m, 128), lambda i, k: (i, 0))),
        scratch_shapes=[pltpu.VMEM((blk_m, two_fp), f32),   # gn @ [emb|emb_a]
                        pltpu.VMEM((blk_m, fp), f32)],      # adj @ z
        compiler_params=pltpu.CompilerParams(
            dimension_semantics=("parallel", "arbitrary"),
            vmem_limit_bytes=_vmem_limit(p3_bytes)),
    )(adj_p, gn_p, zz_bf16, zz, w2_p, bw_p, bb_p)

    hidden_emb = zz[:N, :f_out]
    hidden_emb_a = zz[:N, fp:fp + f_out]
    recon = recon_p[:N, :f_in]
    pos = scores[:N, 0:2]
    neg = scores[:N, 2:4]
    return hidden_emb, hidden_emb_a, recon, pos, neg


# --------------------------------------------------------------------------
# Reference + test harness
# --------------------------------------------------------------------------
def _xavier_uniform(key, shape, fan_in, fan_out):
    bound = math.sqrt(6.0 / (fan_in + fan_out))
    return jax.random.uniform(key, shape, jnp.float32, -bound, bound)


def _reference(feat, feat_a, adj, gn, w1, w2, bw, bb):
    # Pure-JAX f32 mirror of the PyTorch forward (original association / ordering).
    z = adj @ (feat @ w1)
    z_a = adj @ (feat_a @ w1)
    recon = adj @ (z @ w2)
    emb, emb_a = jnp.maximum(z, 0.0), jnp.maximum(z_a, 0.0)
    row_sum = jnp.sum(gn, axis=1, keepdims=True)

    def readout(e):
        ge = (gn @ e) / row_sum
        ge = ge / jnp.maximum(jnp.linalg.norm(ge, axis=1, keepdims=True), 1e-12)
        return jax.nn.sigmoid(ge)

    g, g_a = readout(emb), readout(emb_a)

    def bil(h, c):
        return jnp.sum((h @ bw) * c, axis=1, keepdims=True) + bb[0, 0]

    pos = jnp.concatenate([bil(emb, g), bil(emb_a, g)], axis=1)
    neg = jnp.concatenate([bil(emb_a, g_a), bil(emb, g_a)], axis=1)
    return z, z_a, recon, pos, neg


if __name__ == "__main__":
    N, F_IN, F_OUT = 256, 64, 32   # small synthetic sizes (grid = 2x2 row/k tiles)

    key = jax.random.PRNGKey(0)
    k_feat, k_feat_a, k_adj, k_gn, k_w1, k_w2, k_bw = jax.random.split(key, 7)

    feat = jax.random.normal(k_feat, (N, F_IN), jnp.float32)
    feat_a = jax.random.normal(k_feat_a, (N, F_IN), jnp.float32)

    # row-normalized dense adjacency (stand-in for the sparse adj in spmm)
    adj_raw = (jax.random.uniform(k_adj, (N, N)) > 0.9).astype(jnp.float32)
    adj_raw = adj_raw + jnp.eye(N, dtype=jnp.float32)
    adj = adj_raw / jnp.sum(adj_raw, axis=1, keepdims=True)

    # binary neighborhood mask with self loops (graph_neigh)
    gn = (jax.random.uniform(k_gn, (N, N)) > 0.9).astype(jnp.float32)
    gn = jnp.clip(gn + jnp.eye(N, dtype=jnp.float32), 0.0, 1.0)

    # deterministic xavier-uniform-style parameter init (synthetic weights)
    w1 = _xavier_uniform(k_w1, (F_IN, F_OUT), F_IN, F_OUT)
    w2 = _xavier_uniform(k_w2, (F_OUT, F_IN), F_OUT, F_IN)
    bw = _xavier_uniform(k_bw, (F_OUT, F_OUT), F_OUT, F_OUT)  # nn.Bilinear weight[0]
    bb = jnp.zeros((1, 1), jnp.float32)                       # nn.Bilinear bias = 0

    outs = autoencoder_g_forward(feat, feat_a, adj, gn, w1, w2, bw, bb,
                                 block_n=128, block_k=128)
    outs = jax.block_until_ready(outs)

    refs = _reference(feat, feat_a, adj, gn, w1, w2, bw, bb)
    names = ("hidden_emb", "hidden_emb_a", "recon", "pos", "neg")
    for name, o, r in zip(names, outs, refs):
        assert o.shape == r.shape and o.dtype == r.dtype, name
        # bf16 matmul inputs (f32 accumulation) vs the pure-f32 reference.
        assert jnp.allclose(o, r, atol=5e-2, rtol=5e-2), f"mismatch vs reference: {name}"
        assert not jnp.any(jnp.isnan(o)), f"NaN in {name}"

    print("KERNEL_OK")
</pallas_src>

<mosaic_0001>
module attributes {stable_mosaic.version = 11 : i64} {
  func.func @_feat_transform_kernel(%arg0: i32, %arg1: memref<128x128xbf16, #tpu.memory_space<vmem>>, %arg2: memref<128x128xbf16, #tpu.memory_space<vmem>>, %arg3: memref<128x128xbf16, #tpu.memory_space<vmem>>, %arg4: memref<128x256xbf16, #tpu.memory_space<vmem>>) attributes {dimension_semantics = [#tpu.dimension_semantics<parallel>], iteration_bounds = array<i64: 2>, scalar_prefetch = 0 : i64, scratch_operands = 0 : i64, tpu.core_type = #tpu.core_type<tc>, window_params = [{transform_indices = @transform_0, window_bounds = array<i64: 128, 128>}, {transform_indices = @transform_1, window_bounds = array<i64: 128, 128>}, {pipeline_mode = #tpu.pipeline_mode<synchronous>, transform_indices = @transform_2, window_bounds = array<i64: 128, 128>}, {transform_indices = @transform_3, window_bounds = array<i64: 128, 256>}]} {
    %c0 = arith.constant 0 : index
    %c0_0 = arith.constant 0 : index
    %0 = vector.load %arg3[%c0, %c0_0] : memref<128x128xbf16, #tpu.memory_space<vmem>>, vector<128x128xbf16>
    %c0_1 = arith.constant 0 : index
    %c0_2 = arith.constant 0 : index
    %1 = vector.load %arg1[%c0_1, %c0_2] : memref<128x128xbf16, #tpu.memory_space<vmem>>, vector<128x128xbf16>
    %cst = arith.constant dense<0.000000e+00> : vector<128x128xf32>
    %2 = tpu.matmul %1, %0, %cst {dimension_numbers = #tpu.dot_dimension_numbers<[1], [0], [0], [1], [0, 0, 1, 1], [], []>} : vector<128x128xbf16>, vector<128x128xbf16>, vector<128x128xf32> -> vector<128x128xf32>
    %c0_3 = arith.constant 0 : index
    %c0_4 = arith.constant 0 : index
    %3 = vector.load %arg2[%c0_3, %c0_4] : memref<128x128xbf16, #tpu.memory_space<vmem>>, vector<128x128xbf16>
    %cst_5 = arith.constant dense<0.000000e+00> : vector<128x128xf32>
    %4 = tpu.matmul %3, %0, %cst_5 {dimension_numbers = #tpu.dot_dimension_numbers<[1], [0], [0], [1], [0, 0, 1, 1], [], []>} : vector<128x128xbf16>, vector<128x128xbf16>, vector<128x128xf32> -> vector<128x128xf32>
    %5 = arith.truncf %2 : vector<128x128xf32> to vector<128x128xbf16>
    %c0_6 = arith.constant 0 : index
    %c0_7 = arith.constant 0 : index
    %6 = vector.load %arg4[%c0_6, %c0_7] : memref<128x256xbf16, #tpu.memory_space<vmem>>, vector<128x128xbf16>
    tpu.vector_store %arg4[%c0_6, %c0_7], %5 {strides = array<i32>} : memref<128x256xbf16, #tpu.memory_space<vmem>>, vector<128x128xbf16>,
    %7 = arith.truncf %4 : vector<128x128xf32> to vector<128x128xbf16>
    %c0_8 = arith.constant 0 : index
    %c128 = arith.constant 128 : index
    %8 = vector.load %arg4[%c0_8, %c128] : memref<128x256xbf16, #tpu.memory_space<vmem>>, vector<128x128xbf16>
    tpu.vector_store %arg4[%c0_8, %c128], %7 {strides = array<i32>} : memref<128x256xbf16, #tpu.memory_space<vmem>>, vector<128x128xbf16>,
    return
  }
  func.func @transform_0(%arg0: i32) -> (i32, i32) {
    %c0_i32 = arith.constant 0 : i32
    %c0_i32_0 = arith.constant 0 : i32
    return %arg0, %c0_i32 : i32, i32
  }
  func.func @transform_1(%arg0: i32) -> (i32, i32) {
    %c0_i32 = arith.constant 0 : i32
    %c0_i32_0 = arith.constant 0 : i32
    return %arg0, %c0_i32 : i32, i32
  }
  func.func @transform_2(%arg0: i32) -> (i32, i32) {
    %c0_i32 = arith.constant 0 : i32
    %c0_i32_0 = arith.constant 0 : i32
    %c0_i32_1 = arith.constant 0 : i32
    return %c0_i32, %c0_i32_0 : i32, i32
  }
  func.func @transform_3(%arg0: i32) -> (i32, i32) {
    %c0_i32 = arith.constant 0 : i32
    %c0_i32_0 = arith.constant 0 : i32
    return %arg0, %c0_i32 : i32, i32
  }
}

module attributes {stable_mosaic.version = 11 : i64} {
  func.func @_adj_prop_kernel(%arg0: i32, %arg1: i32, %arg2: memref<128x128xbf16, #tpu.memory_space<vmem>>, %arg3: memref<128x256xbf16, #tpu.memory_space<vmem>>, %arg4: memref<128x256xf32, #tpu.memory_space<vmem>>, %arg5: memref<128x256xbf16, #tpu.memory_space<vmem>>) attributes {dimension_semantics = [#tpu.dimension_semantics<parallel>, #tpu.dimension_semantics<arbitrary>], iteration_bounds = array<i64: 2, 2>, scalar_prefetch = 0 : i64, scratch_operands = 0 : i64, tpu.core_type = #tpu.core_type<tc>, window_params = [{transform_indices = @transform_0, window_bounds = array<i64: 128, 128>}, {transform_indices = @transform_1, window_bounds = array<i64: 128, 256>}, {transform_indices = @transform_2, window_bounds = array<i64: 128, 256>}, {transform_indices = @transform_3, window_bounds = array<i64: 128, 256>}]} {
    %c0_i32 = arith.constant 0 : i32
    %0 = arith.cmpi eq, %arg1, %c0_i32 : i32
    %1 = arith.extui %0 : i1 to i32
    %c0_i32_0 = arith.constant 0 : i32
    %2 = arith.cmpi ne, %1, %c0_i32_0 : i32
    scf.if %2 {
      %cst_9 = arith.constant 0.000000e+00 : f32
      %12 = vector.broadcast %cst_9 : f32 to vector<128x256xf32>
      %c0_10 = arith.constant 0 : index
      %c0_11 = arith.constant 0 : index
      %13 = vector.load %arg4[%c0_10, %c0_11] : memref<128x256xf32, #tpu.memory_space<vmem>>, vector<128x256xf32>
      tpu.vector_store %arg4[%c0_10, %c0_11], %12 {strides = array<i32>} : memref<128x256xf32, #tpu.memory_space<vmem>>, vector<128x256xf32>,
    } else {
    }
    %c0 = arith.constant 0 : index
    %c0_1 = arith.constant 0 : index
    %3 = vector.load %arg4[%c0, %c0_1] : memref<128x256xf32, #tpu.memory_space<vmem>>, vector<128x256xf32>
    %c0_2 = arith.constant 0 : index
    %c0_3 = arith.constant 0 : index
    %4 = vector.load %arg2[%c0_2, %c0_3] : memref<128x128xbf16, #tpu.memory_space<vmem>>, vector<128x128xbf16>
    %c0_4 = arith.constant 0 : index
    %c0_5 = arith.constant 0 : index
    %5 = vector.load %arg3[%c0_4, %c0_5] : memref<128x256xbf16, #tpu.memory_space<vmem>>, vector<128x256xbf16>
    %cst = arith.constant dense<0.000000e+00> : vector<128x256xf32>
    %6 = tpu.matmul %4, %5, %cst {dimension_numbers = #tpu.dot_dimension_numbers<[1], [0], [0], [1], [0, 0, 1, 1], [], []>} : vector<128x128xbf16>, vector<128x256xbf16>, vector<128x256xf32> -> vector<128x256xf32>
    %7 = arith.addf %3, %6 : vector<128x256xf32>
    %c0_6 = arith.constant 0 : index
    %c0_7 = arith.constant 0 : index
    %8 = vector.load %arg4[%c0_6, %c0_7] : memref<128x256xf32, #tpu.memory_space<vmem>>, vector<128x256xf32>
    tpu.vector_store %arg4[%c0_6, %c0_7], %7 {strides = array<i32>} : memref<128x256xf32, #tpu.memory_space<vmem>>, vector<128x256xf32>,
    %c1_i32 = arith.constant 1 : i32
    %9 = arith.cmpi eq, %arg1, %c1_i32 : i32
    %10 = arith.extui %9 : i1 to i32
    %c0_i32_8 = arith.constant 0 : i32
    %11 = arith.cmpi ne, %10, %c0_i32_8 : i32
    scf.if %11 {
      %c0_9 = arith.constant 0 : index
      %c0_10 = arith.constant 0 : index
      %12 = vector.load %arg4[%c0_9, %c0_10] : memref<128x256xf32, #tpu.memory_space<vmem>>, vector<128x256xf32>
      %13 = arith.truncf %12 : vector<128x256xf32> to vector<128x256xbf16>
      %c0_11 = arith.constant 0 : index
      %c0_12 = arith.constant 0 : index
      %14 = vector.load %arg5[%c0_11, %c0_12] : memref<128x256xbf16, #tpu.memory_space<vmem>>, vector<128x256xbf16>
      tpu.vector_store %arg5[%c0_11, %c0_12], %13 {strides = array<i32>} : memref<128x256xbf16, #tpu.memory_space<vmem>>, vector<128x256xbf16>,
    } else {
    }
    return
  }
  func.func @transform_0(%arg0: i32, %arg1: i32) -> (i32, i32) {
    %c0_i32 = arith.constant 0 : i32
    return %arg0, %arg1 : i32, i32
  }
  func.func @transform_1(%arg0: i32, %arg1: i32) -> (i32, i32) {
    %c0_i32 = arith.constant 0 : i32
    %c0_i32_0 = arith.constant 0 : i32
    return %arg1, %c0_i32 : i32, i32
  }
  func.func @transform_2(%arg0: i32, %arg1: i32) -> (i32, i32) {
    %c0_i32 = arith.constant 0 : i32
    %c0_i32_0 = arith.constant 0 : i32
    return %arg0, %c0_i32 : i32, i32
  }
  func.func @transform_3(%arg0: i32, %arg1: i32) -> (i32, i32) {
    %c0_i32 = arith.constant 0 : i32
    %c0_i32_0 = arith.constant 0 : i32
    return %arg0, %c0_i32 : i32, i32
  }
}

module attributes {stable_mosaic.version = 11 : i64} {
  func.func @_finalize_kernel(%arg0: i32, %arg1: i32, %arg2: memref<128x128xbf16, #tpu.memory_space<vmem>>, %arg3: memref<128x128xbf16, #tpu.memory_space<vmem>>, %arg4: memref<128x256xbf16, #tpu.memory_space<vmem>>, %arg5: memref<128x256xf32, #tpu.memory_space<vmem>>, %arg6: memref<128x128xf32, #tpu.memory_space<vmem>>, %arg7: memref<128x128xf32, #tpu.memory_space<vmem>>, %arg8: memref<1x1xf32, #tpu.memory_space<smem>>, %arg9: memref<128x128xf32, #tpu.memory_space<vmem>>, %arg10: memref<128x128xf32, #tpu.memory_space<vmem>>, %arg11: memref<128x256xf32, #tpu.memory_space<vmem>>, %arg12: memref<128x128xf32, #tpu.memory_space<vmem>>) attributes {dimension_semantics = [#tpu.dimension_semantics<parallel>, #tpu.dimension_semantics<arbitrary>], iteration_bounds = array<i64: 2, 2>, scalar_prefetch = 0 : i64, scratch_operands = 2 : i64, tpu.core_type = #tpu.core_type<tc>, window_params = [{transform_indices = @transform_0, window_bounds = array<i64: 128, 128>}, {transform_indices = @transform_1, window_bounds = array<i64: 128, 128>}, {transform_indices = @transform_2, window_bounds = array<i64: 128, 256>}, {transform_indices = @transform_3, window_bounds = array<i64: 128, 256>}, {pipeline_mode = #tpu.pipeline_mode<synchronous>, transform_indices = @transform_4, window_bounds = array<i64: 128, 128>}, {pipeline_mode = #tpu.pipeline_mode<synchronous>, transform_indices = @transform_5, window_bounds = array<i64: 128, 128>}, {transform_indices = @transform_6, window_bounds = array<i64: 1, 1>}, {transform_indices = @transform_7, window_bounds = array<i64: 128, 128>}, {transform_indices = @transform_8, window_bounds = array<i64: 128, 128>}]} {
    %c0_i32 = arith.constant 0 : i32
    %0 = arith.cmpi eq, %arg1, %c0_i32 : i32
    %1 = arith.extui %0 : i1 to i32
    %c0_i32_0 = arith.constant 0 : i32
    %2 = arith.cmpi ne, %1, %c0_i32_0 : i32
    scf.if %2 {
      %cst_17 = arith.constant 0.000000e+00 : f32
      %20 = vector.broadcast %cst_17 : f32 to vector<128x256xf32>
      %c0_18 = arith.constant 0 : index
      %c0_19 = arith.constant 0 : index
      %21 = vector.load %arg11[%c0_18, %c0_19] : memref<128x256xf32, #tpu.memory_space<vmem>>, vector<128x256xf32>
      tpu.vector_store %arg11[%c0_18, %c0_19], %20 {strides = array<i32>} : memref<128x256xf32, #tpu.memory_space<vmem>>, vector<128x256xf32>,
      %cst_20 = arith.constant 0.000000e+00 : f32
      %22 = vector.broadcast %cst_20 : f32 to vector<128x128xf32>
      %c0_21 = arith.constant 0 : index
      %c0_22 = arith.constant 0 : index
      %23 = vector.load %arg12[%c0_21, %c0_22] : memref<128x128xf32, #tpu.memory_space<vmem>>, vector<128x128xf32>
      tpu.vector_store %arg12[%c0_21, %c0_22], %22 {strides = array<i32>} : memref<128x128xf32, #tpu.memory_space<vmem>>, vector<128x128xf32>,
    } else {
    }
    %c0 = arith.constant 0 : index
    %c0_1 = arith.constant 0 : index
    %3 = vector.load %arg4[%c0, %c0_1] : memref<128x256xbf16, #tpu.memory_space<vmem>>, vector<128x256xbf16>
    %cst = arith.constant 0.000000e+00 : bf16
    %4 = vector.broadcast %cst : bf16 to vector<128x256xbf16>
    %5 = arith.maximumf %3, %4 : vector<128x256xbf16>
    %c0_2 = arith.constant 0 : index
    %c0_3 = arith.constant 0 : index
    %6 = vector.load %arg11[%c0_2, %c0_3] : memref<128x256xf32, #tpu.memory_space<vmem>>, vector<128x256xf32>
    %c0_4 = arith.constant 0 : index
    %c0_5 = arith.constant 0 : index
    %7 = vector.load %arg3[%c0_4, %c0_5] : memref<128x128xbf16, #tpu.memory_space<vmem>>, vector<128x128xbf16>
    %cst_6 = arith.constant dense<0.000000e+00> : vector<128x256xf32>
    %8 = tpu.matmul %7, %5, %cst_6 {dimension_numbers = #tpu.dot_dimension_numbers<[1], [0], [0], [1], [0, 0, 1, 1], [], []>} : vector<128x128xbf16>, vector<128x256xbf16>, vector<128x256xf32> -> vector<128x256xf32>
    %9 = arith.addf %6, %8 : vector<128x256xf32>
    %c0_7 = arith.constant 0 : index
    %c0_8 = arith.constant 0 : index
    %10 = vector.load %arg11[%c0_7, %c0_8] : memref<128x256xf32, #tpu.memory_space<vmem>>, vector<128x256xf32>
    tpu.vector_store %arg11[%c0_7, %c0_8], %9 {strides = array<i32>} : memref<128x256xf32, #tpu.memory_space<vmem>>, vector<128x256xf32>,
    %c0_9 = arith.constant 0 : index
    %c0_10 = arith.constant 0 : index
    %11 = vector.load %arg12[%c0_9, %c0_10] : memref<128x128xf32, #tpu.memory_space<vmem>>, vector<128x128xf32>
    %c0_11 = arith.constant 0 : index
    %c0_12 = arith.constant 0 : index
    %12 = vector.load %arg2[%c0_11, %c0_12] : memref<128x128xbf16, #tpu.memory_space<vmem>>, vector<128x128xbf16>
    %13 = vector.extract_strided_slice %3 {offsets = [0, 0], sizes = [128, 128], strides = [1, 1]} : vector<128x256xbf16> to vector<128x128xbf16>
    %cst_13 = arith.constant dense<0.000000e+00> : vector<128x128xf32>
    %14 = tpu.matmul %12, %13, %cst_13 {dimension_numbers = #tpu.dot_dimension_numbers<[1], [0], [0], [1], [0, 0, 1, 1], [], []>} : vector<128x128xbf16>, vector<128x128xbf16>, vector<128x128xf32> -> vector<128x128xf32>
    %15 = arith.addf %11, %14 : vector<128x128xf32>
    %c0_14 = arith.constant 0 : index
    %c0_15 = arith.constant 0 : index
    %16 = vector.load %arg12[%c0_14, %c0_15] : memref<128x128xf32, #tpu.memory_space<vmem>>, vector<128x128xf32>
    tpu.vector_store %arg12[%c0_14, %c0_15], %15 {strides = array<i32>} : memref<128x128xf32, #tpu.memory_space<vmem>>, vector<128x128xf32>,
    %c1_i32 = arith.constant 1 : i32
    %17 = arith.cmpi eq, %arg1, %c1_i32 : i32
    %18 = arith.extui %17 : i1 to i32
    %c0_i32_16 = arith.constant 0 : i32
    %19 = arith.cmpi ne, %18, %c0_i32_16 : i32
    scf.if %19 {
      %c0_17 = arith.constant 0 : index
      %c0_18 = arith.constant 0 : index
      %20 = vector.load %arg11[%c0_17, %c0_18] : memref<128x256xf32, #tpu.memory_space<vmem>>, vector<128x128xf32>
      %21 = arith.mulf %20, %20 : vector<128x128xf32>
      %cst_19 = arith.constant dense<0.000000e+00> : vector<128xf32>
      %22 = vector.multi_reduction <add>, %21, %cst_19 [1] : vector<128x128xf32> to vector<128xf32>
      %23 = vector.shape_cast %22 : vector<128xf32> to vector<128x1xf32>
      %cst_20 = arith.constant 1.000000e-24 : f32
      %24 = vector.broadcast %cst_20 : f32 to vector<128x1xf32>
      %25 = arith.maximumf %23, %24 : vector<128x1xf32>
      %26 = math.rsqrt %25 : vector<128x1xf32>
      %27 = vector.broadcast %26 : vector<128x1xf32> to vector<128x128xf32>
      %28 = arith.mulf %20, %27 : vector<128x128xf32>
      %29 = arith.negf %28 : vector<128x128xf32>
      %30 = math.exp %29 : vector<128x128xf32>
      %cst_21 = arith.constant 1.000000e+00 : f32
      %31 = vector.broadcast %cst_21 : f32 to vector<128x128xf32>
      %32 = arith.addf %31, %30 : vector<128x128xf32>
      %33 = arith.divf %31, %32 : vector<128x128xf32>
      %c0_22 = arith.constant 0 : index
      %c128 = arith.constant 128 : index
      %34 = vector.load %arg11[%c0_22, %c128] : memref<128x256xf32, #tpu.memory_space<vmem>>, vector<128x128xf32>
      %35 = arith.mulf %34, %34 : vector<128x128xf32>
      %cst_23 = arith.constant dense<0.000000e+00> : vector<128xf32>
      %36 = vector.multi_reduction <add>, %35, %cst_23 [1] : vector<128x128xf32> to vector<128xf32>
      %37 = vector.shape_cast %36 : vector<128xf32> to vector<128x1xf32>
      %cst_24 = arith.constant 1.000000e-24 : f32
      %38 = vector.broadcast %cst_24 : f32 to vector<128x1xf32>
      %39 = arith.maximumf %37, %38 : vector<128x1xf32>
      %40 = math.rsqrt %39 : vector<128x1xf32>
      %41 = vector.broadcast %40 : vector<128x1xf32> to vector<128x128xf32>
      %42 = arith.mulf %34, %41 : vector<128x128xf32>
      %43 = arith.negf %42 : vector<128x128xf32>
      %44 = math.exp %43 : vector<128x128xf32>
      %cst_25 = arith.constant 1.000000e+00 : f32
      %45 = vector.broadcast %cst_25 : f32 to vector<128x128xf32>
      %46 = arith.addf %45, %44 : vector<128x128xf32>
      %47 = arith.divf %45, %46 : vector<128x128xf32>
      %c0_26 = arith.constant 0 : index
      %c0_27 = arith.constant 0 : index
      %48 = vector.load %arg12[%c0_26, %c0_27] : memref<128x128xf32, #tpu.memory_space<vmem>>, vector<128x128xf32>
      %c0_28 = arith.constant 0 : index
      %c0_29 = arith.constant 0 : index
      %49 = vector.load %arg6[%c0_28, %c0_29] : memref<128x128xf32, #tpu.memory_space<vmem>>, vector<128x128xf32>
      %cst_30 = arith.constant dense<0.000000e+00> : vector<128x128xf32>
      %50 = tpu.matmul %48, %49, %cst_30 {dimension_numbers = #tpu.dot_dimension_numbers<[1], [0], [0], [1], [0, 0, 1, 1], [], []>} : vector<128x128xf32>, vector<128x128xf32>, vector<128x128xf32> -> vector<128x128xf32>
      %c0_31 = arith.constant 0 : index
      %c0_32 = arith.constant 0 : index
      %51 = vector.load %arg9[%c0_31, %c0_32] : memref<128x128xf32, #tpu.memory_space<vmem>>, vector<128x128xf32>
      tpu.vector_store %arg9[%c0_31, %c0_32], %50 {strides = array<i32>} : memref<128x128xf32, #tpu.memory_space<vmem>>, vector<128x128xf32>,
      %c0_33 = arith.constant 0 : index
      %c0_34 = arith.constant 0 : index
      %52 = vector.load %arg5[%c0_33, %c0_34] : memref<128x256xf32, #tpu.memory_space<vmem>>, vector<128x256xf32>
      %c0_35 = arith.constant 0 : index
      %c0_36 = arith.constant 0 : index
      %53 = vector.load %arg7[%c0_35, %c0_36] : memref<128x128xf32, #tpu.memory_space<vmem>>, vector<128x128xf32>
      %54 = vector.extract_strided_slice %52 {offsets = [0, 0], sizes = [128, 128], strides = [1, 1]} : vector<128x256xf32> to vector<128x128xf32>
      %cst_37 = arith.constant 0.000000e+00 : f32
      %55 = vector.broadcast %cst_37 : f32 to vector<128x128xf32>
      %56 = arith.maximumf %54, %55 : vector<128x128xf32>
      %cst_38 = arith.constant dense<0.000000e+00> : vector<128x128xf32>
      %57 = tpu.matmul %56, %53, %cst_38 {dimension_numbers = #tpu.dot_dimension_numbers<[1], [0], [0], [1], [0, 0, 1, 1], [], []>} : vector<128x128xf32>, vector<128x128xf32>, vector<128x128xf32> -> vector<128x128xf32>
      %58 = vector.extract_strided_slice %52 {offsets = [0, 128], sizes = [128, 128], strides = [1, 1]} : vector<128x256xf32> to vector<128x128xf32>
      %cst_39 = arith.constant 0.000000e+00 : f32
      %59 = vector.broadcast %cst_39 : f32 to vector<128x128xf32>
      %60 = arith.maximumf %58, %59 : vector<128x128xf32>
      %cst_40 = arith.constant dense<0.000000e+00> : vector<128x128xf32>
      %61 = tpu.matmul %60, %53, %cst_40 {dimension_numbers = #tpu.dot_dimension_numbers<[1], [0], [0], [1], [0, 0, 1, 1], [], []>} : vector<128x128xf32>, vector<128x128xf32>, vector<128x128xf32> -> vector<128x128xf32>
      %c0_41 = arith.constant 0 : index
      %c0_42 = arith.constant 0 : index
      %62 = memref.load %arg8[%c0_41, %c0_42] : memref<1x1xf32, #tpu.memory_space<smem>>
      %63 = arith.mulf %57, %33 : vector<128x128xf32>
      %cst_43 = arith.constant dense<0.000000e+00> : vector<128xf32>
      %64 = vector.multi_reduction <add>, %63, %cst_43 [1] : vector<128x128xf32> to vector<128xf32>
      %65 = vector.shape_cast %64 : vector<128xf32> to vector<128x1xf32>
      %66 = vector.broadcast %62 : f32 to vector<128x1xf32>
      %67 = arith.addf %65, %66 : vector<128x1xf32>
      %68 = arith.mulf %61, %33 : vector<128x128xf32>
      %cst_44 = arith.constant dense<0.000000e+00> : vector<128xf32>
      %69 = vector.multi_reduction <add>, %68, %cst_44 [1] : vector<128x128xf32> to vector<128xf32>
      %70 = vector.shape_cast %69 : vector<128xf32> to vector<128x1xf32>
      %71 = vector.broadcast %62 : f32 to vector<128x1xf32>
      %72 = arith.addf %70, %71 : vector<128x1xf32>
      %73 = arith.mulf %61, %47 : vector<128x128xf32>
      %cst_45 = arith.constant dense<0.000000e+00> : vector<128xf32>
      %74 = vector.multi_reduction <add>, %73, %cst_45 [1] : vector<128x128xf32> to vector<128xf32>
      %75 = vector.shape_cast %74 : vector<128xf32> to vector<128x1xf32>
      %76 = vector.broadcast %62 : f32 to vector<128x1xf32>
      %77 = arith.addf %75, %76 : vector<128x1xf32>
      %78 = arith.mulf %57, %47 : vector<128x128xf32>
      %cst_46 = arith.constant dense<0.000000e+00> : vector<128xf32>
      %79 = vector.multi_reduction <add>, %78, %cst_46 [1] : vector<128x128xf32> to vector<128xf32>
      %80 = vector.shape_cast %79 : vector<128xf32> to vector<128x1xf32>
      %81 = vector.broadcast %62 : f32 to vector<128x1xf32>
      %82 = arith.addf %80, %81 : vector<128x1xf32>
      %83 = tpu.iota {dimensions = array<i32: 1>} : vector<128x128xi32>
      %c0_i32_47 = arith.constant 0 : i32
      %84 = vector.broadcast %c0_i32_47 : i32 to vector<128x128xi32>
      %85 = arith.cmpi eq, %83, %84 : vector<128x128xi32>
      %cst_48 = arith.constant 0.000000e+00 : f32
      %86 = vector.shape_cast %67 : vector<128x1xf32> to vector<128x1xf32>
      %87 = vector.broadcast %86 : vector<128x1xf32> to vector<128x128xf32>
      %88 = vector.broadcast %cst_48 : f32 to vector<128x128xf32>
      %89 = arith.select %85, %87, %88 : vector<128x128xi1>, vector<128x128xf32>
      %c1_i32_49 = arith.constant 1 : i32
      %90 = vector.broadcast %c1_i32_49 : i32 to vector<128x128xi32>
      %91 = arith.cmpi eq, %83, %90 : vector<128x128xi32>
      %cst_50 = arith.constant 0.000000e+00 : f32
      %92 = vector.shape_cast %72 : vector<128x1xf32> to vector<128x1xf32>
      %93 = vector.broadcast %92 : vector<128x1xf32> to vector<128x128xf32>
      %94 = vector.broadcast %cst_50 : f32 to vector<128x128xf32>
      %95 = arith.select %91, %93, %94 : vector<128x128xi1>, vector<128x128xf32>
      %96 = arith.addf %89, %95 : vector<128x128xf32>
      %c2_i32 = arith.constant 2 : i32
      %97 = vector.broadcast %c2_i32 : i32 to vector<128x128xi32>
      %98 = arith.cmpi eq, %83, %97 : vector<128x128xi32>
      %cst_51 = arith.constant 0.000000e+00 : f32
      %99 = vector.shape_cast %77 : vector<128x1xf32> to vector<128x1xf32>
      %100 = vector.broadcast %99 : vector<128x1xf32> to vector<128x128xf32>
      %101 = vector.broadcast %cst_51 : f32 to vector<128x128xf32>
      %102 = arith.select %98, %100, %101 : vector<128x128xi1>, vector<128x128xf32>
      %103 = arith.addf %96, %102 : vector<128x128xf32>
      %c3_i32 = arith.constant 3 : i32
      %104 = vector.broadcast %c3_i32 : i32 to vector<128x128xi32>
      %105 = arith.cmpi eq, %83, %104 : vector<128x128xi32>
      %cst_52 = arith.constant 0.000000e+00 : f32
      %106 = vector.shape_cast %82 : vector<128x1xf32> to vector<128x1xf32>
      %107 = vector.broadcast %106 : vector<128x1xf32> to vector<128x128xf32>
      %108 = vector.broadcast %cst_52 : f32 to vector<128x128xf32>
      %109 = arith.select %105, %107, %108 : vector<128x128xi1>, vector<128x128xf32>
      %110 = arith.addf %103, %109 : vector<128x128xf32>
      %c0_53 = arith.constant 0 : index
      %c0_54 = arith.constant 0 : index
      %111 = vector.load %arg10[%c0_53, %c0_54] : memref<128x128xf32, #tpu.memory_space<vmem>>, vector<128x128xf32>
      tpu.vector_store %arg10[%c0_53, %c0_54], %110 {strides = array<i32>} : memref<128x128xf32, #tpu.memory_space<vmem>>, vector<128x128xf32>,
    } else {
    }
    return
  }
  func.func @transform_0(%arg0: i32, %arg1: i32) -> (i32, i32) {
    %c0_i32 = arith.constant 0 : i32
    return %arg0, %arg1 : i32, i32
  }
  func.func @transform_1(%arg0: i32, %arg1: i32) -> (i32, i32) {
    %c0_i32 = arith.constant 0 : i32
    return %arg0, %arg1 : i32, i32
  }
  func.func @transform_2(%arg0: i32, %arg1: i32) -> (i32, i32) {
    %c0_i32 = arith.constant 0 : i32
    %c0_i32_0 = arith.constant 0 : i32
    return %arg1, %c0_i32 : i32, i32
  }
  func.func @transform_3(%arg0: i32, %arg1: i32) -> (i32, i32) {
    %c0_i32 = arith.constant 0 : i32
    %c0_i32_0 = arith.constant 0 : i32
    return %arg0, %c0_i32 : i32, i32
  }
  func.func @transform_4(%arg0: i32, %arg1: i32) -> (i32, i32) {
    %c0_i32 = arith.constant 0 : i32
    %c0_i32_0 = arith.constant 0 : i32
    %c0_i32_1 = arith.constant 0 : i32
    return %c0_i32, %c0_i32_0 : i32, i32
  }
  func.func @transform_5(%arg0: i32, %arg1: i32) -> (i32, i32) {
    %c0_i32 = arith.constant 0 : i32
    %c0_i32_0 = arith.constant 0 : i32
    %c0_i32_1 = arith.constant 0 : i32
    return %c0_i32, %c0_i32_0 : i32, i32
  }
  func.func @transform_6(%arg0: i32, %arg1: i32) -> (i32, i32) {
    %c0_i32 = arith.constant 0 : i32
    %c0_i32_0 = arith.constant 0 : i32
    %c0_i32_1 = arith.constant 0 : i32
    return %c0_i32, %c0_i32_0 : i32, i32
  }
  func.func @transform_7(%arg0: i32, %arg1: i32) -> (i32, i32) {
    %c0_i32 = arith.constant 0 : i32
    %c0_i32_0 = arith.constant 0 : i32
    return %arg0, %c0_i32 : i32, i32
  }
  func.func @transform_8(%arg0: i32, %arg1: i32) -> (i32, i32) {
    %c0_i32 = arith.constant 0 : i32
    %c0_i32_0 = arith.constant 0 : i32
    return %arg0, %c0_i32 : i32, i32
  }
}

</mosaic_0001>

<llo_original>
// kernel: autoencoder_g_forward.3
$region0: #{autoencoder_g_forward.3}
  #allocation0 [shape = 'u32[]', space=smem, size = 0x4, offset = 0x4, fixed_abs, tag = 'smem constant byte address 0x4 - core index']
  #allocation1 [shape = 'u32[72,128]{1,0:T(1,128)}', space=vmem, size = 0x9000, scoped, tag = 'internal scratch']
  %s0 = inlined_call_operand.vmem [shape: bf16[256,128], index: 0, kind: input, shape index: {}]
  %s1 = inlined_call_operand.vmem [shape: bf16[256,128], index: 1, kind: input, shape index: {}]
  %s2 = inlined_call_operand.vmem [shape: bf16[128,128], index: 2, kind: input, shape index: {}]
  %s3 = inlined_call_operand.vmem [shape: bf16[256,256], index: 3, kind: output, shape index: {}]
  %s4 = sld [smem:[#allocation0]]
  $region45: #{autoencoder_g_forward.3} parent=0
    _
  %s6 = ssub.s32 1, %s4
  %s7 = scalar_select 0, %s6, %s4
  loop: start=0, step=1, limit=4
  $region2: #{autoencoder_g_forward.3} parent=0 // loop_pre_header
    _
  $region3: #{autoencoder_g_forward.3} parent=0 // loop_header
    %s9 = sphi 0, %s13
    %p10 = scmp.ge.s32.totalorder %s9, 4
    %s19 = sphi 0, %s21
    %s22 = sphi 0, %s19
    %s23 = sphi 0, %s22
    %s39 = sphi 0, %s23
    %s45 = sphi 0, %s47
    %s48 = sphi 0, %s45
    %s49 = sphi 0, %s48
    %s65 = sphi 0, %s49
    %s69 = sphi 0, %s69
    %s71 = sphi 0, %s69
    %s72 = sphi 0, %s71
    %s86 = sphi 0, %s72
    %s92 = sphi 0, %s94
    %s95 = sphi 0, %s92
    %s96 = sphi 0, %s95
    %s112 = sphi 0, %s96
  $region4: #{autoencoder_g_forward.3} parent=0 // loop_header_branch
    %12 = sbr.rel (%p10) target = $region8
  $region5: #{autoencoder_g_forward.3} parent=0 // loop_body
    %s14 = ssub.s32 %s9, 1
    %s15 = ssub.s32 %s9, 2
    %s16 = sadd.s32 %s9, 1
    %s17 = ssub.s32 %s9, %s16
    %p18 = scmp.eq.s32.totalorder %s17, 0
    %s20 = sadd.s32 %s19, 1
    %s21 = scalar_select %p18, %s19, %s20
    %p24 = pneg %p18
    %p25 = scmp.eq.s32.totalorder %s9, 1
    %p26 = por %p24, %p25
    %p27 = scmp.ne.s32.totalorder %s19, %s22
    %p28 = scmp.eq.s32.totalorder %s9, 0
    %p29 = por %p27, %p28
    %p30 = scmp.ne.s32.totalorder %s19, %s22
    %p31 = scmp.eq.s32.totalorder %s14, 1
    %p32 = por %p30, %p31
    %p33 = scmp.ne.s32.totalorder %s22, %s23
    %p34 = scmp.eq.s32.totalorder %s14, 0
    %p35 = por %p33, %p34
    %p36 = scmp.ne.s32.totalorder %s22, %s23
    %p37 = scmp.eq.s32.totalorder %s15, 1
    %p38 = por %p36, %p37
    %p40 = scmp.ne.s32.totalorder %s23, %s39
    %p41 = scmp.eq.s32.totalorder %s15, 0
    %p42 = por %p40, %p41
    %s43 = ssub.s32 %s9, %s16
    %p44 = scmp.eq.s32.totalorder %s43, 0
    %s46 = sadd.s32 %s45, 1
    %s47 = scalar_select %p44, %s45, %s46
    %p50 = pneg %p44
    %p51 = scmp.eq.s32.totalorder %s9, 1
    %p52 = por %p50, %p51
    %p53 = scmp.ne.s32.totalorder %s45, %s48
    %p54 = scmp.eq.s32.totalorder %s9, 0
    %p55 = por %p53, %p54
    %p56 = scmp.ne.s32.totalorder %s45, %s48
    %p57 = scmp.eq.s32.totalorder %s14, 1
    %p58 = por %p56, %p57
    %p59 = scmp.ne.s32.totalorder %s48, %s49
    %p60 = scmp.eq.s32.totalorder %s14, 0
    %p61 = por %p59, %p60
    %p62 = scmp.ne.s32.totalorder %s48, %s49
    %p63 = scmp.eq.s32.totalorder %s15, 1
    %p64 = por %p62, %p63
    %p66 = scmp.ne.s32.totalorder %s49, %s65
    %p67 = scmp.eq.s32.totalorder %s15, 0
    %p68 = por %p66, %p67
    %s70 = sadd.s32 %s69, 1
    %p73 = scmp.eq.s32.totalorder %s9, 1
    %p74 = scmp.ne.s32.totalorder %s69, %s71
    %p75 = scmp.eq.s32.totalorder %s9, 0
    %p76 = por %p74, %p75
    %p77 = scmp.ne.s32.totalorder %s69, %s71
    %p78 = scmp.eq.s32.totalorder %s14, 1
    %p79 = por %p77, %p78
    %p80 = scmp.ne.s32.totalorder %s71, %s72
    %p81 = scmp.eq.s32.totalorder %s14, 0
    %p82 = por %p80, %p81
    %p83 = scmp.ne.s32.totalorder %s71, %s72
    %p84 = scmp.eq.s32.totalorder %s15, 1
    %p85 = por %p83, %p84
    %p87 = scmp.ne.s32.totalorder %s72, %s86
    %p88 = scmp.eq.s32.totalorder %s15, 0
    %p89 = por %p87, %p88
    %s90 = ssub.s32 %s9, %s16
    %p91 = scmp.eq.s32.totalorder %s90, 0
    %s93 = sadd.s32 %s92, 1
    %s94 = scalar_select %p91, %s92, %s93
    %p97 = pneg %p91
    %p98 = scmp.eq.s32.totalorder %s9, 1
    %p99 = por %p97, %p98
    %p100 = scmp.ne.s32.totalorder %s92, %s95
    %p101 = scmp.eq.s32.totalorder %s9, 0
    %p102 = por %p100, %p101
    %p103 = scmp.ne.s32.totalorder %s92, %s95
    %p104 = scmp.eq.s32.totalorder %s14, 1
    %p105 = por %p103, %p104
    %p106 = scmp.ne.s32.totalorder %s95, %s96
    %p107 = scmp.eq.s32.totalorder %s14, 0
    %p108 = por %p106, %p107
    %p109 = scmp.ne.s32.totalorder %s95, %s96
    %p110 = scmp.eq.s32.totalorder %s15, 1
    %p111 = por %p109, %p110
    %p113 = scmp.ne.s32.totalorder %s96, %s112
    %p114 = scmp.eq.s32.totalorder %s15, 0
    %p115 = por %p113, %p114
    %p116 = scmp.le.s32.totalorder 1, %s9
    %p117 = scmp.lt.s32.totalorder %s9, 3
    %p118 = pnand %p116, %p117
    %p119 = pneg %p118
    // Predicated region
    $region9: #{autoencoder_g_forward.3} parent=5 // pred_check
      _
    $region10: #{autoencoder_g_forward.3} parent=5 // pred_check_branch
      %121 = sbr.rel (%p118) target = $region12
    $region11: #{autoencoder_g_forward.3} parent=5 // pred_region
      %s122 = ssub.s32 %s9, 1
      // Predicated region
      $region13: #{autoencoder_g_forward.3} parent=11 // pred_check
        %p123 = pneg %p82
      $region14: #{autoencoder_g_forward.3} parent=11 // pred_check_branch
        %125 = sbr.rel (%p123) target = $region16
      $region15: #{autoencoder_g_forward.3} parent=11 // pred_region
        _
      $region16: #{autoencoder_g_forward.3} parent=11 // pred_fallthru
        _
    $region12: #{autoencoder_g_forward.3} parent=5 // pred_fallthru
      _
    %p126 = scmp.lt.s32.totalorder %s9, 2
    // Predicated region
    $region17: #{autoencoder_g_forward.3} parent=5 // pred_check
      %p127 = pneg %p126
    $region18: #{autoencoder_g_forward.3} parent=5 // pred_check_branch
      %129 = sbr.rel (%p127) target = $region20
    $region19: #{autoencoder_g_forward.3} parent=5 // pred_region
      // Predicated region
      $region21: #{autoencoder_g_forward.3} parent=19 // pred_check
        %p130 = pneg %p29
      $region22: #{autoencoder_g_forward.3} parent=19 // pred_check_branch
        %132 = sbr.rel (%p130) target = $region24
      $region23: #{autoencoder_g_forward.3} parent=19 // pred_region
        %s133 = smul.u32 16, %s9
        %p134 = scmp.lt.s32.totalorder %s133, 31
        %s135 = scalar_select %p134, %s133, 31
        %s136 = smul.addr %s135, 4
        %s137 = scalar_lea.vmem %s0, %s136
        %s138 = smul.u32 16, %s9
      $region24: #{autoencoder_g_forward.3} parent=19 // pred_fallthru
        _
      // Predicated region
      $region25: #{autoencoder_g_forward.3} parent=19 // pred_check
        %p139 = pneg %p55
      $region26: #{autoencoder_g_forward.3} parent=19 // pred_check_branch
        %141 = sbr.rel (%p139) target = $region28
      $region27: #{autoencoder_g_forward.3} parent=19 // pred_region
        %s142 = smul.u32 16, %s9
        %p143 = scmp.lt.s32.totalorder %s142, 31
        %s144 = scalar_select %p143, %s142, 31
        %s145 = smul.addr %s144, 4
        %s146 = scalar_lea.vmem %s1, %s145
        %s147 = smul.u32 16, %s9
      $region28: #{autoencoder_g_forward.3} parent=19 // pred_fallthru
        _
    $region20: #{autoencoder_g_forward.3} parent=5 // pred_fallthru
      _
    %p148 = scmp.le.s32.totalorder 1, %s9
    %p149 = scmp.lt.s32.totalorder %s9, 3
    %p150 = pnand %p148, %p149
    %p151 = pneg %p150
    // Predicated region
    $region29: #{autoencoder_g_forward.3} parent=5 // pred_check
      _
    $region30: #{autoencoder_g_forward.3} parent=5 // pred_check_branch
      %153 = sbr.rel (%p150) target = $region32
    $region31: #{autoencoder_g_forward.3} parent=5 // pred_region
      %s154 = ssub.s32 %s9, 1
      %s155 = smul.u32 16, %s14
      %p156 = scmp.lt.s32.totalorder %s155, 31
      %s157 = scalar_select %p156, %s155, 31
      %s158 = smul.addr %s157, 4
      %s159 = scalar_lea.vmem %s0, %s158
      %p160 = pneg %p35
      %p161 = pneg %p32
      %s162 = smul.u32 16, %s14
      %p163 = scmp.lt.s32.totalorder %s162, 31
      %s164 = scalar_select %p163, %s162, 31
      %s165 = smul.addr %s164, 4
      %s166 = scalar_lea.vmem %s1, %s165
      %p167 = pneg %p61
      %p168 = pneg %p58
      %p169 = pneg %p82
      %p170 = pneg %p79
      %p171 = pneg %p108
      %p172 = pneg %p105
      %s173 = smul.u32 16, %s14
      %p174 = scmp.lt.s32.totalorder %s173, 31
      %s175 = scalar_select %p174, %s173, 31
      %s176 = smul.addr %s175, 2
      %s177 = smul.addr %s176, 4
      %s178 = scalar_lea.vmem %s3, %s177
      %s179 = smul.u32 16, %s14
      %p180 = scmp.lt.s32.totalorder %s179, 31
      %s181 = scalar_select %p180, %s179, 31
      %s182 = smul.addr %s181, 4
      %s183 = scalar_lea.vmem %s0, %s182
      %s184 = smul.u32 16, %s14
      %s185 = smul.u32 16, %s14
      %p186 = scmp.lt.s32.totalorder %s185, 31
      %s187 = scalar_select %p186, %s185, 31
      %s188 = smul.addr %s187, 4
      %s189 = scalar_lea.vmem %s1, %s188
      %s190 = smul.u32 16, %s14
      %s191 = smul.u32 16, %s14
      %p192 = scmp.lt.s32.totalorder %s191, 31
      %s193 = scalar_select %p192, %s191, 31
      %s194 = smul.addr %s193, 2
      %s195 = smul.addr %s194, 4
      %s196 = scalar_lea.vmem %s3, %s195
      %s197 = smul.u32 16, %s14
      %v198 = vld [vmem:[%s2] sm:$0xf]
      %v199 = vld [vmem:[%s2 + $0x4] sm:$0xf]
      %v200 = vld [vmem:[%s2 + $0x8] sm:$0xf]
      %v201 = vld [vmem:[%s2 + $0xc] sm:$0xf]
      %v202 = vld [vmem:[%s2 + $0x10] sm:$0xf]
      %v203 = vld [vmem:[%s2 + $0x14] sm:$0xf]
      %v204 = vld [vmem:[%s2 + $0x18] sm:$0xf]
      %v205 = vld [vmem:[%s2 + $0x1c] sm:$0xf]
      %v206 = vld [vmem:[%s2 + $0x20] sm:$0xf]
      %v207 = vld [vmem:[%s2 + $0x24] sm:$0xf]
      %v208 = vld [vmem:[%s2 + $0x28] sm:$0xf]
      %v209 = vld [vmem:[%s2 + $0x2c] sm:$0xf]
      %v210 = vld [vmem:[%s2 + $0x30] sm:$0xf]
      %v211 = vld [vmem:[%s2 + $0x34] sm:$0xf]
      %v212 = vld [vmem:[%s2 + $0x38] sm:$0xf]
      %v213 = vld [vmem:[%s2 + $0x3c] sm:$0xf]
      %v214 = vld [vmem:[%s183] sm:$0xf]
      %v215 = vld [vmem:[%s183 + $0x4] sm:$0xf]
      %v216 = vld [vmem:[%s183 + $0x8] sm:$0xf]
      %v217 = vld [vmem:[%s183 + $0xc] sm:$0xf]
      %v218 = vld [vmem:[%s183 + $0x10] sm:$0xf]
      %v219 = vld [vmem:[%s183 + $0x14] sm:$0xf]
      %v220 = vld [vmem:[%s183 + $0x18] sm:$0xf]
      %v221 = vld [vmem:[%s183 + $0x1c] sm:$0xf]
      %v222 = vld [vmem:[%s183 + $0x20] sm:$0xf]
      %v223 = vld [vmem:[%s183 + $0x24] sm:$0xf]
      %v224 = vld [vmem:[%s183 + $0x28] sm:$0xf]
      %v225 = vld [vmem:[%s183 + $0x2c] sm:$0xf]
      %v226 = vld [vmem:[%s183 + $0x30] sm:$0xf]
      %v227 = vld [vmem:[%s183 + $0x34] sm:$0xf]
      %v228 = vld [vmem:[%s183 + $0x38] sm:$0xf]
      %v229 = vld [vmem:[%s183 + $0x3c] sm:$0xf]
      %v246 = vunpack.c.l.b16 %v214
      %v247 = vunpack.c.l.b16 %v215
      %v248 = vunpack.c.l.b16 %v216
      %v249 = vunpack.c.l.b16 %v217
      %v250 = vunpack.c.l.b16 %v218
      %v251 = vunpack.c.l.b16 %v219
      %v252 = vunpack.c.l.b16 %v220
      %v253 = vunpack.c.l.b16 %v221
      %v254 = vunpack.c.l.b16 %v222
      %v255 = vunpack.c.l.b16 %v223
      %v256 = vunpack.c.l.b16 %v224
      %v257 = vunpack.c.l.b16 %v225
      %v258 = vunpack.c.l.b16 %v226
      %v259 = vunpack.c.l.b16 %v227
      %v260 = vunpack.c.l.b16 %v228
      %v261 = vunpack.c.l.b16 %v229
      %v262 = vpack.c.b16 %v247, %v246
      %v263 = vpack.c.b16 %v249, %v248
      %v264 = vpack.c.b16 %v251, %v250
      %v265 = vpack.c.b16 %v253, %v252
      %v266 = vpack.c.b16 %v255, %v254
      %v267 = vpack.c.b16 %v257, %v256
      %v268 = vpack.c.b16 %v259, %v258
      %v269 = vpack.c.b16 %v261, %v260
      %v294 = vunpack.c.l.b16 %v198
      %v295 = vunpack.c.l.b16 %v199
      %v296 = vunpack.c.l.b16 %v200
      %v297 = vunpack.c.l.b16 %v201
      %v298 = vunpack.c.l.b16 %v202
      %v299 = vunpack.c.l.b16 %v203
      %v300 = vunpack.c.l.b16 %v204
      %v301 = vunpack.c.l.b16 %v205
      %v302 = vunpack.c.l.b16 %v206
      %v303 = vunpack.c.l.b16 %v207
      %v304 = vunpack.c.l.b16 %v208
      %v305 = vunpack.c.l.b16 %v209
      %v306 = vunpack.c.l.b16 %v210
      %v307 = vunpack.c.l.b16 %v211
      %v308 = vunpack.c.l.b16 %v212
      %v309 = vunpack.c.l.b16 %v213
      %v310 = vpack.c.b16 %v295, %v294
      %v311 = vpack.c.b16 %v297, %v296
      %v312 = vpack.c.b16 %v299, %v298
      %v313 = vpack.c.b16 %v301, %v300
      %v314 = vpack.c.b16 %v303, %v302
      %v315 = vpack.c.b16 %v305, %v304
      %v316 = vpack.c.b16 %v307, %v306
      %v317 = vpack.c.b16 %v309, %v308
      %326 = vmatpush.bf16.msra.mxu0 %v317
      %327 = vmatpush.bf16.msra.mxu0 %v316
      %328 = vmatpush.bf16.msra.mxu0 %v315
      %329 = vmatpush.bf16.msra.mxu0 %v314
      %330 = vmatpush.bf16.msra.mxu0 %v313
      %331 = vmatpush.bf16.msra.mxu0 %v312
      %332 = vmatpush.bf16.msra.mxu0 %v311
      %333 = vmatpush.bf16.msra.mxu0 %v310
      %334 = vmatmul.bf16.gmra.mxu0 %v262
      %v335 = vpop.f32.mrf.mxu0
      %v336 = vadd.f32 0.0, %v335
      %v337 = vpop.f32.mrf.mxu0
      %v338 = vadd.f32 0.0, %v337
      %339 = vmatmul.bf16.gmra.mxu0 %v263
      %v340 = vpop.f32.mrf.mxu0
      %v341 = vadd.f32 0.0, %v340
      %v342 = vpop.f32.mrf.mxu0
      %v343 = vadd.f32 0.0, %v342
      %344 = vmatmul.bf16.gmra.mxu0 %v264
      %v345 = vpop.f32.mrf.mxu0
      %v346 = vadd.f32 0.0, %v345
      %v347 = vpop.f32.mrf.mxu0
      %v348 = vadd.f32 0.0, %v347
      %349 = vmatmul.bf16.gmra.mxu0 %v265
      %v350 = vpop.f32.mrf.mxu0
      %v351 = vadd.f32 0.0, %v350
      %v352 = vpop.f32.mrf.mxu0
      %v353 = vadd.f32 0.0, %v352
      %354 = vmatmul.bf16.gmra.mxu0 %v266
      %v355 = vpop.f32.mrf.mxu0
      %v356 = vadd.f32 0.0, %v355
      %v357 = vpop.f32.mrf.mxu0
      %v358 = vadd.f32 0.0, %v357
      %359 = vmatmul.bf16.gmra.mxu0 %v267
      %v360 = vpop.f32.mrf.mxu0
      %v361 = vadd.f32 0.0, %v360
      %v362 = vpop.f32.mrf.mxu0
      %v363 = vadd.f32 0.0, %v362
      %364 = vmatmul.bf16.gmra.mxu0 %v268
      %v365 = vpop.f32.mrf.mxu0
      %v366 = vadd.f32 0.0, %v365
      %v367 = vpop.f32.mrf.mxu0
      %v368 = vadd.f32 0.0, %v367
      %369 = vmatmul.bf16.gmra.mxu0 %v269
      %v370 = vpop.f32.mrf.mxu0
      %v371 = vadd.f32 0.0, %v370
      %v372 = vpop.f32.mrf.mxu0
      %v373 = vadd.f32 0.0, %v372
      %374 = vdwg.mxu0
      %v375 = vld [vmem:[%s189] sm:$0xf]
      %v376 = vld [vmem:[%s189 + $0x4] sm:$0xf]
      %v377 = vld [vmem:[%s189 + $0x8] sm:$0xf]
      %v378 = vld [vmem:[%s189 + $0xc] sm:$0xf]
      %v379 = vld [vmem:[%s189 + $0x10] sm:$0xf]
      %v380 = vld [vmem:[%s189 + $0x14] sm:$0xf]
      %v381 = vld [vmem:[%s189 + $0x18] sm:$0xf]
      %v382 = vld [vmem:[%s189 + $0x1c] sm:$0xf]
      %v383 = vld [vmem:[%s189 + $0x20] sm:$0xf]
      %v384 = vld [vmem:[%s189 + $0x24] sm:$0xf]
      %v385 = vld [vmem:[%s189 + $0x28] sm:$0xf]
      %v386 = vld [vmem:[%s189 + $0x2c] sm:$0xf]
      %v387 = vld [vmem:[%s189 + $0x30] sm:$0xf]
      %v388 = vld [vmem:[%s189 + $0x34] sm:$0xf]
      %v389 = vld [vmem:[%s189 + $0x38] sm:$0xf]
      %v390 = vld [vmem:[%s189 + $0x3c] sm:$0xf]
      %v407 = vunpack.c.l.b16 %v375
      %v408 = vunpack.c.l.b16 %v376
      %v409 = vunpack.c.l.b16 %v377
      %v410 = vunpack.c.l.b16 %v378
      %v411 = vunpack.c.l.b16 %v379
      %v412 = vunpack.c.l.b16 %v380
      %v413 = vunpack.c.l.b16 %v381
      %v414 = vunpack.c.l.b16 %v382
      %v415 = vunpack.c.l.b16 %v383
      %v416 = vunpack.c.l.b16 %v384
      %v417 = vunpack.c.l.b16 %v385
      %v418 = vunpack.c.l.b16 %v386
      %v419 = vunpack.c.l.b16 %v387
      %v420 = vunpack.c.l.b16 %v388
      %v421 = vunpack.c.l.b16 %v389
      %v422 = vunpack.c.l.b16 %v390
      %v423 = vpack.c.b16 %v408, %v407
      %v424 = vpack.c.b16 %v410, %v409
      %v425 = vpack.c.b16 %v412, %v411
      %v426 = vpack.c.b16 %v414, %v413
      %v427 = vpack.c.b16 %v416, %v415
      %v428 = vpack.c.b16 %v418, %v417
      %v429 = vpack.c.b16 %v420, %v419
      %v430 = vpack.c.b16 %v422, %v421
      %439 = vmatpush.bf16.msra.mxu0 %v317
      %440 = vmatpush.bf16.msra.mxu0 %v316
      %441 = vmatpush.bf16.msra.mxu0 %v315
      %442 = vmatpush.bf16.msra.mxu0 %v314
      %443 = vmatpush.bf16.msra.mxu0 %v313
      %444 = vmatpush.bf16.msra.mxu0 %v312
      %445 = vmatpush.bf16.msra.mxu0 %v311
      %446 = vmatpush.bf16.msra.mxu0 %v310
      %447 = vmatmul.bf16.gmra.mxu0 %v423
      %v448 = vpop.f32.mrf.mxu0
      %v449 = vadd.f32 0.0, %v448
      %v450 = vpop.f32.mrf.mxu0
      %v451 = vadd.f32 0.0, %v450
      %452 = vmatmul.bf16.gmra.mxu0 %v424
      %v453 = vpop.f32.mrf.mxu0
      %v454 = vadd.f32 0.0, %v453
      %v455 = vpop.f32.mrf.mxu0
      %v456 = vadd.f32 0.0, %v455
      %457 = vmatmul.bf16.gmra.mxu0 %v425
      %v458 = vpop.f32.mrf.mxu0
      %v459 = vadd.f32 0.0, %v458
      %v460 = vpop.f32.mrf.mxu0
      %v461 = vadd.f32 0.0, %v460
      %462 = vmatmul.bf16.gmra.mxu0 %v426
      %v463 = vpop.f32.mrf.mxu0
      %v464 = vadd.f32 0.0, %v463
      %v465 = vpop.f32.mrf.mxu0
      %v466 = vadd.f32 0.0, %v465
      %467 = vmatmul.bf16.gmra.mxu0 %v427
      %v468 = vpop.f32.mrf.mxu0
      %v469 = vadd.f32 0.0, %v468
      %v470 = vpop.f32.mrf.mxu0
      %v471 = vadd.f32 0.0, %v470
      %472 = vmatmul.bf16.gmra.mxu0 %v428
      %v473 = vpop.f32.mrf.mxu0
      %v474 = vadd.f32 0.0, %v473
      %v475 = vpop.f32.mrf.mxu0
      %v476 = vadd.f32 0.0, %v475
      %477 = vmatmul.bf16.gmra.mxu0 %v429
      %v478 = vpop.f32.mrf.mxu0
      %v479 = vadd.f32 0.0, %v478
      %v480 = vpop.f32.mrf.mxu0
      %v481 = vadd.f32 0.0, %v480
      %482 = vmatmul.bf16.gmra.mxu0 %v430
      %v483 = vpop.f32.mrf.mxu0
      %v484 = vadd.f32 0.0, %v483
      %v485 = vpop.f32.mrf.mxu0
      %v486 = vadd.f32 0.0, %v485
      %487 = vdwg.mxu0
      %v488 = vpack.c.bf16 %v336, %v336
      %v489 = vpack.c.bf16 %v338, %v338
      %v490 = vpack.c.bf16 %v341, %v341
      %v491 = vpack.c.bf16 %v343, %v343
      %v492 = vpack.c.bf16 %v346, %v346
      %v493 = vpack.c.bf16 %v348, %v348
      %v494 = vpack.c.bf16 %v351, %v351
      %v495 = vpack.c.bf16 %v353, %v353
      %v496 = vpack.c.bf16 %v356, %v356
      %v497 = vpack.c.bf16 %v358, %v358
      %v498 = vpack.c.bf16 %v361, %v361
      %v499 = vpack.c.bf16 %v363, %v363
      %v500 = vpack.c.bf16 %v366, %v366
      %v501 = vpack.c.bf16 %v368, %v368
      %v502 = vpack.c.bf16 %v371, %v371
      %v503 = vpack.c.bf16 %v373, %v373
      %504 = vst [vmem:[%s196] sm:$0xf] %v488
      %505 = vst [vmem:[%s196 + $0x8] sm:$0xf] %v489
      %506 = vst [vmem:[%s196 + $0x10] sm:$0xf] %v490
      %507 = vst [vmem:[%s196 + $0x18] sm:$0xf] %v491
      %508 = vst [vmem:[%s196 + $0x20] sm:$0xf] %v492
      %509 = vst [vmem:[%s196 + $0x28] sm:$0xf] %v493
      %510 = vst [vmem:[%s196 + $0x30] sm:$0xf] %v494
      %511 = vst [vmem:[%s196 + $0x38] sm:$0xf] %v495
      %512 = vst [vmem:[%s196 + $0x40] sm:$0xf] %v496
      %513 = vst [vmem:[%s196 + $0x48] sm:$0xf] %v497
      %514 = vst [vmem:[%s196 + $0x50] sm:$0xf] %v498
      %515 = vst [vmem:[%s196 + $0x58] sm:$0xf] %v499
      %516 = vst [vmem:[%s196 + $0x60] sm:$0xf] %v500
      %517 = vst [vmem:[%s196 + $0x68] sm:$0xf] %v501
      %518 = vst [vmem:[%s196 + $0x70] sm:$0xf] %v502
      %519 = vst [vmem:[%s196 + $0x78] sm:$0xf] %v503
      %v520 = vpack.c.bf16 %v449, %v449
      %v521 = vpack.c.bf16 %v451, %v451
      %v522 = vpack.c.bf16 %v454, %v454
      %v523 = vpack.c.bf16 %v456, %v456
      %v524 = vpack.c.bf16 %v459, %v459
      %v525 = vpack.c.bf16 %v461, %v461
      %v526 = vpack.c.bf16 %v464, %v464
      %v527 = vpack.c.bf16 %v466, %v466
      %v528 = vpack.c.bf16 %v469, %v469
      %v529 = vpack.c.bf16 %v471, %v471
      %v530 = vpack.c.bf16 %v474, %v474
      %v531 = vpack.c.bf16 %v476, %v476
      %v532 = vpack.c.bf16 %v479, %v479
      %v533 = vpack.c.bf16 %v481, %v481
      %v534 = vpack.c.bf16 %v484, %v484
      %v535 = vpack.c.bf16 %v486, %v486
      %536 = vst [vmem:[%s196 + $0x4] sm:$0xf] %v520
      %537 = vst [vmem:[%s196 + $0xc] sm:$0xf] %v521
      %538 = vst [vmem:[%s196 + $0x14] sm:$0xf] %v522
      %539 = vst [vmem:[%s196 + $0x1c] sm:$0xf] %v523
      %540 = vst [vmem:[%s196 + $0x24] sm:$0xf] %v524
      %541 = vst [vmem:[%s196 + $0x2c] sm:$0xf] %v525
      %542 = vst [vmem:[%s196 + $0x34] sm:$0xf] %v526
      %543 = vst [vmem:[%s196 + $0x3c] sm:$0xf] %v527
      %544 = vst [vmem:[%s196 + $0x44] sm:$0xf] %v528
      %545 = vst [vmem:[%s196 + $0x4c] sm:$0xf] %v529
      %546 = vst [vmem:[%s196 + $0x54] sm:$0xf] %v530
      %547 = vst [vmem:[%s196 + $0x5c] sm:$0xf] %v531
      %548 = vst [vmem:[%s196 + $0x64] sm:$0xf] %v532
      %549 = vst [vmem:[%s196 + $0x6c] sm:$0xf] %v533
      %550 = vst [vmem:[%s196 + $0x74] sm:$0xf] %v534
      %551 = vst [vmem:[%s196 + $0x7c] sm:$0xf] %v535
      %s552 = smul.u32 16, %s14
      %p553 = scmp.lt.s32.totalorder %s552, 31
      %s554 = scalar_select %p553, %s552, 31
      %s555 = smul.addr %s554, 2
      %s556 = smul.addr %s555, 4
      %s557 = scalar_lea.vmem %s3, %s556
      // Predicated region
      $region33: #{autoencoder_g_forward.3} parent=31 // pred_check
        %p558 = pneg %p105
      $region34: #{autoencoder_g_forward.3} parent=31 // pred_check_branch
        %560 = sbr.rel (%p558) target = $region36
      $region35: #{autoencoder_g_forward.3} parent=31 // pred_region
        %s561 = smul.u32 16, %s14
      $region36: #{autoencoder_g_forward.3} parent=31 // pred_fallthru
        _
    $region32: #{autoencoder_g_forward.3} parent=5 // pred_fallthru
      _
    %p562 = scmp.le.s32.totalorder 2, %s9
    // Predicated region
    $region37: #{autoencoder_g_forward.3} parent=5 // pred_check
      %p563 = pneg %p562
    $region38: #{autoencoder_g_forward.3} parent=5 // pred_check_branch
      %565 = sbr.rel (%p563) target = $region40
    $region39: #{autoencoder_g_forward.3} parent=5 // pred_region
      %s566 = ssub.s32 %s9, 2
      // Predicated region
      $region41: #{autoencoder_g_forward.3} parent=39 // pred_check
        %p567 = pneg %p111
      $region42: #{autoencoder_g_forward.3} parent=39 // pred_check_branch
        %569 = sbr.rel (%p567) target = $region44
      $region43: #{autoencoder_g_forward.3} parent=39 // pred_region
        %s570 = smul.u32 16, %s15
        %p571 = scmp.lt.s32.totalorder %s570, 31
        %s572 = scalar_select %p571, %s570, 31
        %s573 = smul.addr %s572, 2
        %s574 = smul.addr %s573, 4
        %s575 = scalar_lea.vmem %s3, %s574
      $region44: #{autoencoder_g_forward.3} parent=39 // pred_fallthru
        _
    $region40: #{autoencoder_g_forward.3} parent=5 // pred_fallthru
      _
  $region6: #{autoencoder_g_forward.3} parent=0 // loop_footer
    %s13 = sadd.s32 1, %s9
  $region7: #{autoencoder_g_forward.3} parent=0 // loop_footer_branch
    %8 = sbr.rel target = $region3
  $region8: #{autoencoder_g_forward.3} parent=0 // loop_exit
    _

// kernel: autoencoder_g_forward.4
$region0: #{autoencoder_g_forward.4}
  #allocation0 [shape = 'u32[]', space=smem, size = 0x4, offset = 0x4, fixed_abs, tag = 'smem constant byte address 0x4 - core index']
  #allocation1 [shape = 'u32[72,128]{1,0:T(1,128)}', space=vmem, size = 0x9000, scoped, tag = 'internal scratch']
  %s0 = inlined_call_operand.vmem [shape: bf16[256,256], index: 0, kind: input, shape index: {}]
  %s1 = inlined_call_operand.vmem [shape: bf16[256,256], index: 1, kind: input, shape index: {}]
  %s2 = inlined_call_operand.vmem [shape: f32[256,256], index: 2, kind: output, shape index: {0}]
  %s3 = inlined_call_operand.vmem [shape: bf16[256,256], index: 3, kind: output, shape index: {1}]
  %4 = xla_tuple %s2, %s3
  %s5 = sld [smem:[#allocation0]]
  $region98: #{autoencoder_g_forward.4} parent=0
    _
  %s7 = ssub.s32 1, %s5
  %s8 = scalar_select 0, %s7, %s5
  $region1: #{autoencoder_g_forward.4} parent=0
    #allocation2 [shape = 'u8[65536]{0}', space=vmem, size = 0x10000, scoped, tag = 'input window, operand 0']
    loop: start=0, step=1, limit=6
    $region2: #{autoencoder_g_forward.4} parent=1 // loop_pre_header
      _
    $region3: #{autoencoder_g_forward.4} parent=1 // loop_header
      %s10 = sphi 0, %s14
      %p11 = scmp.ge.s32.totalorder %s10, 6
      %s17 = sphi 0, %s29
      %s18 = sphi 0, %s25
      %s19 = sphi 0, %s17
      %s20 = sphi 0, %s18
      %s21 = sphi 0, %s19
      %s22 = sphi 0, %s20
      %s34 = sphi 0, %s36
      %s37 = sphi 0, %s34
      %s38 = sphi 0, %s37
      %s54 = sphi 0, %s38
      %s60 = sphi 0, %s62
      %s63 = sphi 0, %s60
      %s64 = sphi 0, %s63
      %s80 = sphi 0, %s64
      %s86 = sphi 0, %s88
      %s89 = sphi 0, %s86
      %s90 = sphi 0, %s89
      %s106 = sphi 0, %s90
      %s112 = sphi 0, %s114
      %s115 = sphi 0, %s112
      %s116 = sphi 0, %s115
      %s132 = sphi 0, %s116
    $region4: #{autoencoder_g_forward.4} parent=1 // loop_header_branch
      %13 = sbr.rel (%p11) target = $region8
    $region5: #{autoencoder_g_forward.4} parent=1 // loop_body
      %s15 = ssub.s32 %s10, 1
      %s16 = ssub.s32 %s10, 2
      %s23 = sadd.s32 1, %s18
      %p24 = scmp.ge.s32.totalorder %s23, 2
      %s25 = scalar_select %p24, 0, %s23
      %s26 = sadd.s32 1, %s17
      %s27 = scalar_select %p24, %s26, %s17
      %p28 = scmp.ge.s32.totalorder %s27, 2
      %s29 = scalar_select %p28, 0, %s27
      %s30 = ssub.s32 %s17, %s29
      %s31 = ssub.s32 %s18, %s25
      %s32 = sor.u32 %s30, %s31
      %p33 = scmp.eq.s32.totalorder %s32, 0
      %s35 = sadd.s32 %s34, 1
      %s36 = scalar_select %p33, %s34, %s35
      %p39 = pneg %p33
      %p40 = scmp.eq.s32.totalorder %s10, 3
      %p41 = por %p39, %p40
      %p42 = scmp.ne.s32.totalorder %s34, %s37
      %p43 = scmp.eq.s32.totalorder %s10, 0
      %p44 = por %p42, %p43
      %p45 = scmp.ne.s32.totalorder %s34, %s37
      %p46 = scmp.eq.s32.totalorder %s15, 3
      %p47 = por %p45, %p46
      %p48 = scmp.ne.s32.totalorder %s37, %s38
      %p49 = scmp.eq.s32.totalorder %s15, 0
      %p50 = por %p48, %p49
      %p51 = scmp.ne.s32.totalorder %s37, %s38
      %p52 = scmp.eq.s32.totalorder %s16, 3
      %p53 = por %p51, %p52
      %p55 = scmp.ne.s32.totalorder %s38, %s54
      %p56 = scmp.eq.s32.totalorder %s16, 0
      %p57 = por %p55, %p56
      %s58 = ssub.s32 %s18, %s25
      %p59 = scmp.eq.s32.totalorder %s58, 0
      %s61 = sadd.s32 %s60, 1
      %s62 = scalar_select %p59, %s60, %s61
      %p65 = pneg %p59
      %p66 = scmp.eq.s32.totalorder %s10, 3
      %p67 = por %p65, %p66
      %p68 = scmp.ne.s32.totalorder %s60, %s63
      %p69 = scmp.eq.s32.totalorder %s10, 0
      %p70 = por %p68, %p69
      %p71 = scmp.ne.s32.totalorder %s60, %s63
      %p72 = scmp.eq.s32.totalorder %s15, 3
      %p73 = por %p71, %p72
      %p74 = scmp.ne.s32.totalorder %s63, %s64
      %p75 = scmp.eq.s32.totalorder %s15, 0
      %p76 = por %p74, %p75
      %p77 = scmp.ne.s32.totalorder %s63, %s64
      %p78 = scmp.eq.s32.totalorder %s16, 3
      %p79 = por %p77, %p78
      %p81 = scmp.ne.s32.totalorder %s64, %s80
      %p82 = scmp.eq.s32.totalorder %s16, 0
      %p83 = por %p81, %p82
      %s84 = ssub.s32 %s17, %s29
      %p85 = scmp.eq.s32.totalorder %s84, 0
      %s87 = sadd.s32 %s86, 1
      %s88 = scalar_select %p85, %s86, %s87
      %p91 = pneg %p85
      %p92 = scmp.eq.s32.totalorder %s10, 3
      %p93 = por %p91, %p92
      %p94 = scmp.ne.s32.totalorder %s86, %s89
      %p95 = scmp.eq.s32.totalorder %s10, 0
      %p96 = por %p94, %p95
      %p97 = scmp.ne.s32.totalorder %s86, %s89
      %p98 = scmp.eq.s32.totalorder %s15, 3
      %p99 = por %p97, %p98
      %p100 = scmp.ne.s32.totalorder %s89, %s90
      %p101 = scmp.eq.s32.totalorder %s15, 0
      %p102 = por %p100, %p101
      %p103 = scmp.ne.s32.totalorder %s89, %s90
      %p104 = scmp.eq.s32.totalorder %s16, 3
      %p105 = por %p103, %p104
      %p107 = scmp.ne.s32.totalorder %s90, %s106
      %p108 = scmp.eq.s32.totalorder %s16, 0
      %p109 = por %p107, %p108
      %s110 = ssub.s32 %s17, %s29
      %p111 = scmp.eq.s32.totalorder %s110, 0
      %s113 = sadd.s32 %s112, 1
      %s114 = scalar_select %p111, %s112, %s113
      %p117 = pneg %p111
      %p118 = scmp.eq.s32.totalorder %s10, 3
      %p119 = por %p117, %p118
      %p120 = scmp.ne.s32.totalorder %s112, %s115
      %p121 = scmp.eq.s32.totalorder %s10, 0
      %p122 = por %p120, %p121
      %p123 = scmp.ne.s32.totalorder %s112, %s115
      %p124 = scmp.eq.s32.totalorder %s15, 3
      %p125 = por %p123, %p124
      %p126 = scmp.ne.s32.totalorder %s115, %s116
      %p127 = scmp.eq.s32.totalorder %s15, 0
      %p128 = por %p126, %p127
      %p129 = scmp.ne.s32.totalorder %s115, %s116
      %p130 = scmp.eq.s32.totalorder %s16, 3
      %p131 = por %p129, %p130
      %p133 = scmp.ne.s32.totalorder %s116, %s132
      %p134 = scmp.eq.s32.totalorder %s16, 0
      %p135 = por %p133, %p134
      %p136 = scmp.le.s32.totalorder 1, %s10
      %p137 = scmp.lt.s32.totalorder %s10, 5
      %p138 = pnand %p136, %p137
      %p139 = pneg %p138
      // Predicated region
      $region9: #{autoencoder_g_forward.4} parent=5 // pred_check
        _
      $region10: #{autoencoder_g_forward.4} parent=5 // pred_check_branch
        %141 = sbr.rel (%p138) target = $region12
      $region11: #{autoencoder_g_forward.4} parent=5 // pred_region
        %s142 = ssub.s32 %s10, 1
      $region12: #{autoencoder_g_forward.4} parent=5 // pred_fallthru
        _
      %p143 = scmp.lt.s32.totalorder %s10, 4
      // Predicated region
      $region13: #{autoencoder_g_forward.4} parent=5 // pred_check
        %p144 = pneg %p143
      $region14: #{autoencoder_g_forward.4} parent=5 // pred_check_branch
        %146 = sbr.rel (%p144) target = $region16
      $region15: #{autoencoder_g_forward.4} parent=5 // pred_region
        // Predicated region
        $region17: #{autoencoder_g_forward.4} parent=15 // pred_check
          %p147 = pneg %p44
        $region18: #{autoencoder_g_forward.4} parent=15 // pred_check_branch
          %149 = sbr.rel (%p147) target = $region20
        $region19: #{autoencoder_g_forward.4} parent=15 // pred_region
          %s150 = sand.u32 %s34, 1
          %s151 = sand.u32 %s34, 1
          %s152 = smul.addr %s151, 64
          %s153 = scalar_lea.vmem [#allocation2], %s152
          %s154 = smul.u32 16, %s17
          %s155 = smul.addr %s154, 2
          %s156 = sadd.s32 %s18, %s155
          %s157 = smul.addr %s156, 4
          %s158 = scalar_lea.vmem %s0, %s157
          // Predicated region
          $region21: #{autoencoder_g_forward.4} parent=19 // pred_check
            _
          $region22: #{autoencoder_g_forward.4} parent=19 // pred_check_branch
            %160 = sbr.rel (0) target = $region24
          $region23: #{autoencoder_g_forward.4} parent=19 // pred_region
            // Predicated region
            $region25: #{autoencoder_g_forward.4} parent=23 // pred_check
              _
            $region26: #{autoencoder_g_forward.4} parent=23 // pred_check_branch
              %162 = sbr.rel target = $region28
            $region27: #{autoencoder_g_forward.4} parent=23 // pred_region
              // Predicated region
              $region40: #{autoencoder_g_forward.4} parent=27 // pred_check
                _
              $region41: #{autoencoder_g_forward.4} parent=27 // pred_check_branch
                %208 = sbr.rel (0) target = $region43
              $region42: #{autoencoder_g_forward.4} parent=27 // pred_region
                loop: start=0, step=1, limit=1
                $region44: #{autoencoder_g_forward.4} parent=42 // loop_pre_header
                  _
                $region45: #{autoencoder_g_forward.4} parent=42 // loop_header
                  %s210 = sphi 0, %s214
                  %p211 = scmp.ge.s32.totalorder %s210, 1
                  %s215 = sphi %s158, %s158
                  %s216 = sphi %s153, %s153
                $region46: #{autoencoder_g_forward.4} parent=42 // loop_header_branch
                  %213 = sbr.rel (%p211) target = $region50
                $region47: #{autoencoder_g_forward.4} parent=42 // loop_body
                  _
                $region48: #{autoencoder_g_forward.4} parent=42 // loop_footer
                  %s214 = sadd.s32 1, %s210
                $region49: #{autoencoder_g_forward.4} parent=42 // loop_footer_branch
                  %209 = sbr.rel target = $region45
                $region50: #{autoencoder_g_forward.4} parent=42 // loop_exit
                  _
                %s218 = ssub.s32 16, 1
                loop: start=0, step=1, limit=1
                $region51: #{autoencoder_g_forward.4} parent=42 // loop_pre_header
                  _
                $region52: #{autoencoder_g_forward.4} parent=42 // loop_header
                  %s220 = sphi 0, %s224
                  %p221 = scmp.ge.s32.totalorder %s220, 1
                  %s225 = sphi %s158, %s158
                  %s226 = sphi %s153, %s153
                $region53: #{autoencoder_g_forward.4} parent=42 // loop_header_branch
                  %223 = sbr.rel (%p221) target = $region57
                $region54: #{autoencoder_g_forward.4} parent=42 // loop_body
                  %v227 = vld [vmem:[%s225] sm:%s218]
                  %228 = vst [vmem:[%s226] sm:%s218] %v227
                  %v229 = vld [vmem:[%s225 + $0x8] sm:%s218]
                  %230 = vst [vmem:[%s226 + $0x4] sm:%s218] %v229
                  %v231 = vld [vmem:[%s225 + $0x10] sm:%s218]
                  %232 = vst [vmem:[%s226 + $0x8] sm:%s218] %v231
                  %v233 = vld [vmem:[%s225 + $0x18] sm:%s218]
                  %234 = vst [vmem:[%s226 + $0xc] sm:%s218] %v233
                  %v235 = vld [vmem:[%s225 + $0x20] sm:%s218]
                  %236 = vst [vmem:[%s226 + $0x10] sm:%s218] %v235
                  %v237 = vld [vmem:[%s225 + $0x28] sm:%s218]
                  %238 = vst [vmem:[%s226 + $0x14] sm:%s218] %v237
                  %v239 = vld [vmem:[%s225 + $0x30] sm:%s218]
                  %240 = vst [vmem:[%s226 + $0x18] sm:%s218] %v239
                  %v241 = vld [vmem:[%s225 + $0x38] sm:%s218]
                  %242 = vst [vmem:[%s226 + $0x1c] sm:%s218] %v241
                  %v243 = vld [vmem:[%s225 + $0x40] sm:%s218]
                  %244 = vst [vmem:[%s226 + $0x20] sm:%s218] %v243
                  %v245 = vld [vmem:[%s225 + $0x48] sm:%s218]
                  %246 = vst [vmem:[%s226 + $0x24] sm:%s218] %v245
                  %v247 = vld [vmem:[%s225 + $0x50] sm:%s218]
                  %248 = vst [vmem:[%s226 + $0x28] sm:%s218] %v247
                  %v249 = vld [vmem:[%s225 + $0x58] sm:%s218]
                  %250 = vst [vmem:[%s226 + $0x2c] sm:%s218] %v249
                  %v251 = vld [vmem:[%s225 + $0x60] sm:%s218]
                  %252 = vst [vmem:[%s226 + $0x30] sm:%s218] %v251
                  %v253 = vld [vmem:[%s225 + $0x68] sm:%s218]
                  %254 = vst [vmem:[%s226 + $0x34] sm:%s218] %v253
                  %v255 = vld [vmem:[%s225 + $0x70] sm:%s218]
                  %256 = vst [vmem:[%s226 + $0x38] sm:%s218] %v255
                  %v257 = vld [vmem:[%s225 + $0x78] sm:%s218]
                  %258 = vst [vmem:[%s226 + $0x3c] sm:%s218] %v257
                $region55: #{autoencoder_g_forward.4} parent=42 // loop_footer
                  %s224 = sadd.s32 1, %s220
                $region56: #{autoencoder_g_forward.4} parent=42 // loop_footer_branch
                  %219 = sbr.rel target = $region52
                $region57: #{autoencoder_g_forward.4} parent=42 // loop_exit
                  _
              $region43: #{autoencoder_g_forward.4} parent=27 // pred_fallthru
                _
            $region28: #{autoencoder_g_forward.4} parent=23 // pred_fallthru
              _
            // Predicated region
            $region29: #{autoencoder_g_forward.4} parent=23 // pred_check
              _
            $region30: #{autoencoder_g_forward.4} parent=23 // pred_check_branch
              %164 = sbr.rel (0) target = $region32
            $region31: #{autoencoder_g_forward.4} parent=23 // pred_region
              %s166 = ssub.s32 16, 1
              loop: start=0, step=1, limit=1
              $region33: #{autoencoder_g_forward.4} parent=31 // loop_pre_header
                _
              $region34: #{autoencoder_g_forward.4} parent=31 // loop_header
                %s168 = sphi 0, %s172
                %p169 = scmp.ge.s32.totalorder %s168, 1
                %s173 = sphi %s158, %s158
                %s174 = sphi %s153, %s153
              $region35: #{autoencoder_g_forward.4} parent=31 // loop_header_branch
                %171 = sbr.rel (%p169) target = $region39
              $region36: #{autoencoder_g_forward.4} parent=31 // loop_body
                %v175 = vld [vmem:[%s173] sm:%s166]
                %176 = vst [vmem:[%s174] sm:%s166] %v175
                %v177 = vld [vmem:[%s173 + $0x8] sm:%s166]
                %178 = vst [vmem:[%s174 + $0x4] sm:%s166] %v177
                %v179 = vld [vmem:[%s173 + $0x10] sm:%s166]
                %180 = vst [vmem:[%s174 + $0x8] sm:%s166] %v179
                %v181 = vld [vmem:[%s173 + $0x18] sm:%s166]
                %182 = vst [vmem:[%s174 + $0xc] sm:%s166] %v181
                %v183 = vld [vmem:[%s173 + $0x20] sm:%s166]
                %184 = vst [vmem:[%s174 + $0x10] sm:%s166] %v183
                %v185 = vld [vmem:[%s173 + $0x28] sm:%s166]
                %186 = vst [vmem:[%s174 + $0x14] sm:%s166] %v185
                %v187 = vld [vmem:[%s173 + $0x30] sm:%s166]
                %188 = vst [vmem:[%s174 + $0x18] sm:%s166] %v187
                %v189 = vld [vmem:[%s173 + $0x38] sm:%s166]
                %190 = vst [vmem:[%s174 + $0x1c] sm:%s166] %v189
                %v191 = vld [vmem:[%s173 + $0x40] sm:%s166]
                %192 = vst [vmem:[%s174 + $0x20] sm:%s166] %v191
                %v193 = vld [vmem:[%s173 + $0x48] sm:%s166]
                %194 = vst [vmem:[%s174 + $0x24] sm:%s166] %v193
                %v195 = vld [vmem:[%s173 + $0x50] sm:%s166]
                %196 = vst [vmem:[%s174 + $0x28] sm:%s166] %v195
                %v197 = vld [vmem:[%s173 + $0x58] sm:%s166]
                %198 = vst [vmem:[%s174 + $0x2c] sm:%s166] %v197
                %v199 = vld [vmem:[%s173 + $0x60] sm:%s166]
                %200 = vst [vmem:[%s174 + $0x30] sm:%s166] %v199
                %v201 = vld [vmem:[%s173 + $0x68] sm:%s166]
                %202 = vst [vmem:[%s174 + $0x34] sm:%s166] %v201
                %v203 = vld [vmem:[%s173 + $0x70] sm:%s166]
                %204 = vst [vmem:[%s174 + $0x38] sm:%s166] %v203
                %v205 = vld [vmem:[%s173 + $0x78] sm:%s166]
                %206 = vst [vmem:[%s174 + $0x3c] sm:%s166] %v205
              $region37: #{autoencoder_g_forward.4} parent=31 // loop_footer
                %s172 = sadd.s32 1, %s168
              $region38: #{autoencoder_g_forward.4} parent=31 // loop_footer_branch
                %167 = sbr.rel target = $region34
              $region39: #{autoencoder_g_forward.4} parent=31 // loop_exit
                _
            $region32: #{autoencoder_g_forward.4} parent=23 // pred_fallthru
              _
          $region24: #{autoencoder_g_forward.4} parent=19 // pred_fallthru
            _
          %259 = vnop
        $region20: #{autoencoder_g_forward.4} parent=15 // pred_fallthru
          _
        // Predicated region
        $region58: #{autoencoder_g_forward.4} parent=15 // pred_check
          %p260 = pneg %p70
        $region59: #{autoencoder_g_forward.4} parent=15 // pred_check_branch
          %262 = sbr.rel (%p260) target = $region61
        $region60: #{autoencoder_g_forward.4} parent=15 // pred_region
          %s263 = smul.u32 16, %s18
          %p264 = scmp.lt.s32.totalorder %s263, 31
          %s265 = scalar_select %p264, %s263, 31
          %s266 = smul.addr %s265, 2
          %s267 = smul.addr %s266, 4
          %s268 = scalar_lea.vmem %s1, %s267
          %s269 = smul.u32 16, %s18
        $region61: #{autoencoder_g_forward.4} parent=15 // pred_fallthru
          _
      $region16: #{autoencoder_g_forward.4} parent=5 // pred_fallthru
        _
      %p270 = scmp.le.s32.totalorder 1, %s10
      %p271 = scmp.lt.s32.totalorder %s10, 5
      %p272 = pnand %p270, %p271
      %p273 = pneg %p272
      // Predicated region
      $region62: #{autoencoder_g_forward.4} parent=5 // pred_check
        _
      $region63: #{autoencoder_g_forward.4} parent=5 // pred_check_branch
        %275 = sbr.rel (%p272) target = $region65
      $region64: #{autoencoder_g_forward.4} parent=5 // pred_region
        %s276 = ssub.s32 %s10, 1
        %s277 = sand.u32 %s37, 1
        %s278 = sand.u32 %s37, 1
        %s279 = smul.addr %s278, 64
        %s280 = scalar_lea.vmem [#allocation2], %s279
        // Predicated region
        $region66: #{autoencoder_g_forward.4} parent=64 // pred_check
          %p281 = pneg %p50
        $region67: #{autoencoder_g_forward.4} parent=64 // pred_check_branch
          %283 = sbr.rel (%p281) target = $region69
        $region68: #{autoencoder_g_forward.4} parent=64 // pred_region
          _
        $region69: #{autoencoder_g_forward.4} parent=64 // pred_fallthru
          _
        %s284 = sand.u32 %s37, 1
        %s285 = sand.u32 %s37, 1
        %s286 = smul.addr %s285, 64
        %s287 = scalar_lea.vmem [#allocation2], %s286
        %p288 = pneg %p50
        %p289 = pneg %p47
        %s290 = smul.u32 16, %s20
        %p291 = scmp.lt.s32.totalorder %s290, 31
        %s292 = scalar_select %p291, %s290, 31
        %s293 = smul.addr %s292, 2
        %s294 = smul.addr %s293, 4
        %s295 = scalar_lea.vmem %s1, %s294
        %p296 = pneg %p76
        %p297 = pneg %p73
        %p298 = pneg %p102
        %p299 = pneg %p99
        %s300 = smul.u32 16, %s19
        %p301 = scmp.lt.s32.totalorder %s300, 31
        %s302 = scalar_select %p301, %s300, 31
        %s303 = smul.addr %s302, 2
        %s304 = smul.addr %s303, 8
        %s305 = scalar_lea.vmem %s2, %s304
        %p306 = pneg %p128
        %p307 = pneg %p125
        %s308 = smul.u32 16, %s19
        %p309 = scmp.lt.s32.totalorder %s308, 31
        %s310 = scalar_select %p309, %s308, 31
        %s311 = smul.addr %s310, 2
        %s312 = smul.addr %s311, 4
        %s313 = scalar_lea.vmem %s3, %s312
        %s314 = smul.u32 16, %s19
        %s315 = smul.u32 16, %s20
        %p316 = scmp.lt.s32.totalorder %s315, 31
        %s317 = scalar_select %p316, %s315, 31
        %s318 = smul.addr %s317, 2
        %s319 = smul.addr %s318, 4
        %s320 = scalar_lea.vmem %s1, %s319
        %s321 = smul.u32 16, %s20
        %s322 = smul.u32 16, %s19
        %p323 = scmp.lt.s32.totalorder %s322, 31
        %s324 = scalar_select %p323, %s322, 31
        %s325 = smul.addr %s324, 2
        %s326 = smul.addr %s325, 8
        %s327 = scalar_lea.vmem %s2, %s326
        %s328 = smul.u32 16, %s19
        %s329 = smul.u32 16, %s19
        %p330 = scmp.lt.s32.totalorder %s329, 31
        %s331 = scalar_select %p330, %s329, 31
        %s332 = smul.addr %s331, 2
        %s333 = smul.addr %s332, 4
        %s334 = scalar_lea.vmem %s3, %s333
        %s335 = smul.u32 16, %s19
        %p336 = scmp.eq.s32.totalorder %s20, 0
        // Predicated region
        $region70: #{autoencoder_g_forward.4} parent=64 // pred_check
          %p337 = pneg %p336
        $region71: #{autoencoder_g_forward.4} parent=64 // pred_check_branch
          %339 = sbr.rel (%p337) target = $region73
        $region72: #{autoencoder_g_forward.4} parent=64 // pred_region
          %340 = vst [vmem:[%s327] sm:$0xff] 0.0
          %341 = vst [vmem:[%s327 + $0x8] sm:$0xff] 0.0
          %342 = vst [vmem:[%s327 + $0x10] sm:$0xff] 0.0
          %343 = vst [vmem:[%s327 + $0x18] sm:$0xff] 0.0
          %344 = vst [vmem:[%s327 + $0x20] sm:$0xff] 0.0
          %345 = vst [vmem:[%s327 + $0x28] sm:$0xff] 0.0
          %346 = vst [vmem:[%s327 + $0x30] sm:$0xff] 0.0
          %347 = vst [vmem:[%s327 + $0x38] sm:$0xff] 0.0
          %348 = vst [vmem:[%s327 + $0x40] sm:$0xff] 0.0
          %349 = vst [vmem:[%s327 + $0x48] sm:$0xff] 0.0
          %350 = vst [vmem:[%s327 + $0x50] sm:$0xff] 0.0
          %351 = vst [vmem:[%s327 + $0x58] sm:$0xff] 0.0
          %352 = vst [vmem:[%s327 + $0x60] sm:$0xff] 0.0
          %353 = vst [vmem:[%s327 + $0x68] sm:$0xff] 0.0
          %354 = vst [vmem:[%s327 + $0x70] sm:$0xff] 0.0
          %355 = vst [vmem:[%s327 + $0x78] sm:$0xff] 0.0
          %356 = vst [vmem:[%s327 + $0x80] sm:$0xff] 0.0
          %357 = vst [vmem:[%s327 + $0x88] sm:$0xff] 0.0
          %358 = vst [vmem:[%s327 + $0x90] sm:$0xff] 0.0
          %359 = vst [vmem:[%s327 + $0x98] sm:$0xff] 0.0
          %360 = vst [vmem:[%s327 + $0xa0] sm:$0xff] 0.0
          %361 = vst [vmem:[%s327 + $0xa8] sm:$0xff] 0.0
          %362 = vst [vmem:[%s327 + $0xb0] sm:$0xff] 0.0
          %363 = vst [vmem:[%s327 + $0xb8] sm:$0xff] 0.0
          %364 = vst [vmem:[%s327 + $0xc0] sm:$0xff] 0.0
          %365 = vst [vmem:[%s327 + $0xc8] sm:$0xff] 0.0
          %366 = vst [vmem:[%s327 + $0xd0] sm:$0xff] 0.0
          %367 = vst [vmem:[%s327 + $0xd8] sm:$0xff] 0.0
          %368 = vst [vmem:[%s327 + $0xe0] sm:$0xff] 0.0
          %369 = vst [vmem:[%s327 + $0xe8] sm:$0xff] 0.0
          %370 = vst [vmem:[%s327 + $0xf0] sm:$0xff] 0.0
          %371 = vst [vmem:[%s327 + $0xf8] sm:$0xff] 0.0
        $region73: #{autoencoder_g_forward.4} parent=64 // pred_fallthru
          _
        %v372 = vld [vmem:[%s327] sm:$0xff]
        %v373 = vld [vmem:[%s327 + $0x8] sm:$0xff]
        %v374 = vld [vmem:[%s327 + $0x10] sm:$0xff]
        %v375 = vld [vmem:[%s327 + $0x18] sm:$0xff]
        %v376 = vld [vmem:[%s327 + $0x20] sm:$0xff]
        %v377 = vld [vmem:[%s327 + $0x28] sm:$0xff]
        %v378 = vld [vmem:[%s327 + $0x30] sm:$0xff]
        %v379 = vld [vmem:[%s327 + $0x38] sm:$0xff]
        %v380 = vld [vmem:[%s327 + $0x40] sm:$0xff]
        %v381 = vld [vmem:[%s327 + $0x48] sm:$0xff]
        %v382 = vld [vmem:[%s327 + $0x50] sm:$0xff]
        %v383 = vld [vmem:[%s327 + $0x58] sm:$0xff]
        %v384 = vld [vmem:[%s327 + $0x60] sm:$0xff]
        %v385 = vld [vmem:[%s327 + $0x68] sm:$0xff]
        %v386 = vld [vmem:[%s327 + $0x70] sm:$0xff]
        %v387 = vld [vmem:[%s327 + $0x78] sm:$0xff]
        %v388 = vld [vmem:[%s327 + $0x80] sm:$0xff]
        %v389 = vld [vmem:[%s327 + $0x88] sm:$0xff]
        %v390 = vld [vmem:[%s327 + $0x90] sm:$0xff]
        %v391 = vld [vmem:[%s327 + $0x98] sm:$0xff]
        %v392 = vld [vmem:[%s327 + $0xa0] sm:$0xff]
        %v393 = vld [vmem:[%s327 + $0xa8] sm:$0xff]
        %v394 = vld [vmem:[%s327 + $0xb0] sm:$0xff]
        %v395 = vld [vmem:[%s327 + $0xb8] sm:$0xff]
        %v396 = vld [vmem:[%s327 + $0xc0] sm:$0xff]
        %v397 = vld [vmem:[%s327 + $0xc8] sm:$0xff]
        %v398 = vld [vmem:[%s327 + $0xd0] sm:$0xff]
        %v399 = vld [vmem:[%s327 + $0xd8] sm:$0xff]
        %v400 = vld [vmem:[%s327 + $0xe0] sm:$0xff]
        %v401 = vld [vmem:[%s327 + $0xe8] sm:$0xff]
        %v402 = vld [vmem:[%s327 + $0xf0] sm:$0xff]
        %v403 = vld [vmem:[%s327 + $0xf8] sm:$0xff]
        %v404 = vld [vmem:[%s280] sm:$0xf]
        %v405 = vld [vmem:[%s280 + $0x4] sm:$0xf]
        %v406 = vld [vmem:[%s280 + $0x8] sm:$0xf]
        %v407 = vld [vmem:[%s280 + $0xc] sm:$0xf]
        %v408 = vld [vmem:[%s280 + $0x10] sm:$0xf]
        %v409 = vld [vmem:[%s280 + $0x14] sm:$0xf]
        %v410 = vld [vmem:[%s280 + $0x18] sm:$0xf]
        %v411 = vld [vmem:[%s280 + $0x1c] sm:$0xf]
        %v412 = vld [vmem:[%s280 + $0x20] sm:$0xf]
        %v413 = vld [vmem:[%s280 + $0x24] sm:$0xf]
        %v414 = vld [vmem:[%s280 + $0x28] sm:$0xf]
        %v415 = vld [vmem:[%s280 + $0x2c] sm:$0xf]
        %v416 = vld [vmem:[%s280 + $0x30] sm:$0xf]
        %v417 = vld [vmem:[%s280 + $0x34] sm:$0xf]
        %v418 = vld [vmem:[%s280 + $0x38] sm:$0xf]
        %v419 = vld [vmem:[%s280 + $0x3c] sm:$0xf]
        %v420 = vld [vmem:[%s320] sm:$0xff]
        %v421 = vld [vmem:[%s320 + $0x8] sm:$0xff]
        %v422 = vld [vmem:[%s320 + $0x10] sm:$0xff]
        %v423 = vld [vmem:[%s320 + $0x18] sm:$0xff]
        %v424 = vld [vmem:[%s320 + $0x20] sm:$0xff]
        %v425 = vld [vmem:[%s320 + $0x28] sm:$0xff]
        %v426 = vld [vmem:[%s320 + $0x30] sm:$0xff]
        %v427 = vld [vmem:[%s320 + $0x38] sm:$0xff]
        %v428 = vld [vmem:[%s320 + $0x40] sm:$0xff]
        %v429 = vld [vmem:[%s320 + $0x48] sm:$0xff]
        %v430 = vld [vmem:[%s320 + $0x50] sm:$0xff]
        %v431 = vld [vmem:[%s320 + $0x58] sm:$0xff]
        %v432 = vld [vmem:[%s320 + $0x60] sm:$0xff]
        %v433 = vld [vmem:[%s320 + $0x68] sm:$0xff]
        %v434 = vld [vmem:[%s320 + $0x70] sm:$0xff]
        %v435 = vld [vmem:[%s320 + $0x78] sm:$0xff]
        %v452 = vunpack.c.l.b16 %v404
        %v453 = vunpack.c.l.b16 %v405
        %v454 = vunpack.c.l.b16 %v406
        %v455 = vunpack.c.l.b16 %v407
        %v456 = vunpack.c.l.b16 %v408
        %v457 = vunpack.c.l.b16 %v409
        %v458 = vunpack.c.l.b16 %v410
        %v459 = vunpack.c.l.b16 %v411
        %v460 = vunpack.c.l.b16 %v412
        %v461 = vunpack.c.l.b16 %v413
        %v462 = vunpack.c.l.b16 %v414
        %v463 = vunpack.c.l.b16 %v415
        %v464 = vunpack.c.l.b16 %v416
        %v465 = vunpack.c.l.b16 %v417
        %v466 = vunpack.c.l.b16 %v418
        %v467 = vunpack.c.l.b16 %v419
        %v468 = vpack.c.b16 %v453, %v452
        %v469 = vpack.c.b16 %v455, %v454
        %v470 = vpack.c.b16 %v457, %v456
        %v471 = vpack.c.b16 %v459, %v458
        %v472 = vpack.c.b16 %v461, %v460
        %v473 = vpack.c.b16 %v463, %v462
        %v474 = vpack.c.b16 %v465, %v464
        %v475 = vpack.c.b16 %v467, %v466
        %v500 = vunpack.c.l.b16 %v420
        %v501 = vunpack.c.h.b16 %v420
        %v502 = vunpack.c.l.b16 %v421
        %v503 = vunpack.c.h.b16 %v421
        %v504 = vunpack.c.l.b16 %v422
        %v505 = vunpack.c.h.b16 %v422
        %v506 = vunpack.c.l.b16 %v423
        %v507 = vunpack.c.h.b16 %v423
        %v508 = vunpack.c.l.b16 %v424
        %v509 = vunpack.c.h.b16 %v424
        %v510 = vunpack.c.l.b16 %v425
        %v511 = vunpack.c.h.b16 %v425
        %v512 = vunpack.c.l.b16 %v426
        %v513 = vunpack.c.h.b16 %v426
        %v514 = vunpack.c.l.b16 %v427
        %v515 = vunpack.c.h.b16 %v427
        %v516 = vunpack.c.l.b16 %v428
        %v517 = vunpack.c.h.b16 %v428
        %v518 = vunpack.c.l.b16 %v429
        %v519 = vunpack.c.h.b16 %v429
        %v520 = vunpack.c.l.b16 %v430
        %v521 = vunpack.c.h.b16 %v430
        %v522 = vunpack.c.l.b16 %v431
        %v523 = vunpack.c.h.b16 %v431
        %v524 = vunpack.c.l.b16 %v432
        %v525 = vunpack.c.h.b16 %v432
        %v526 = vunpack.c.l.b16 %v433
        %v527 = vunpack.c.h.b16 %v433
        %v528 = vunpack.c.l.b16 %v434
        %v529 = vunpack.c.h.b16 %v434
        %v530 = vunpack.c.l.b16 %v435
        %v531 = vunpack.c.h.b16 %v435
        %v532 = vpack.c.b16 %v502, %v500
        %v533 = vpack.c.b16 %v503, %v501
        %v534 = vpack.c.b16 %v506, %v504
        %v535 = vpack.c.b16 %v507, %v505
        %v536 = vpack.c.b16 %v510, %v508
        %v537 = vpack.c.b16 %v511, %v509
        %v538 = vpack.c.b16 %v514, %v512
        %v539 = vpack.c.b16 %v515, %v513
        %v540 = vpack.c.b16 %v518, %v516
        %v541 = vpack.c.b16 %v519, %v517
        %v542 = vpack.c.b16 %v522, %v520
        %v543 = vpack.c.b16 %v523, %v521
        %v544 = vpack.c.b16 %v526, %v524
        %v545 = vpack.c.b16 %v527, %v525
        %v546 = vpack.c.b16 %v530, %v528
        %v547 = vpack.c.b16 %v531, %v529
        %564 = vmatpush.bf16.msra.mxu0 %v546
        %565 = vmatpush.bf16.msra.mxu0 %v544
        %566 = vmatpush.bf16.msra.mxu0 %v542
        %567 = vmatpush.bf16.msra.mxu0 %v540
        %568 = vmatpush.bf16.msra.mxu0 %v538
        %569 = vmatpush.bf16.msra.mxu0 %v536
        %570 = vmatpush.bf16.msra.mxu0 %v534
        %571 = vmatpush.bf16.msra.mxu0 %v532
        %572 = vmatmul.bf16.gmra.mxu0 %v468
        %v573 = vpop.f32.mrf.mxu0
        %v574 = vadd.f32 0.0, %v573
        %v575 = vpop.f32.mrf.mxu0
        %v576 = vadd.f32 0.0, %v575
        %577 = vmatmul.bf16.gmra.mxu0 %v469
        %v578 = vpop.f32.mrf.mxu0
        %v579 = vadd.f32 0.0, %v578
        %v580 = vpop.f32.mrf.mxu0
        %v581 = vadd.f32 0.0, %v580
        %582 = vmatmul.bf16.gmra.mxu0 %v470
        %v583 = vpop.f32.mrf.mxu0
        %v584 = vadd.f32 0.0, %v583
        %v585 = vpop.f32.mrf.mxu0
        %v586 = vadd.f32 0.0, %v585
        %587 = vmatmul.bf16.gmra.mxu0 %v471
        %v588 = vpop.f32.mrf.mxu0
        %v589 = vadd.f32 0.0, %v588
        %v590 = vpop.f32.mrf.mxu0
        %v591 = vadd.f32 0.0, %v590
        %592 = vmatmul.bf16.gmra.mxu0 %v472
        %v593 = vpop.f32.mrf.mxu0
        %v594 = vadd.f32 0.0, %v593
        %v595 = vpop.f32.mrf.mxu0
        %v596 = vadd.f32 0.0, %v595
        %597 = vmatmul.bf16.gmra.mxu0 %v473
        %v598 = vpop.f32.mrf.mxu0
        %v599 = vadd.f32 0.0, %v598
        %v600 = vpop.f32.mrf.mxu0
        %v601 = vadd.f32 0.0, %v600
        %602 = vmatmul.bf16.gmra.mxu0 %v474
        %v603 = vpop.f32.mrf.mxu0
        %v604 = vadd.f32 0.0, %v603
        %v605 = vpop.f32.mrf.mxu0
        %v606 = vadd.f32 0.0, %v605
        %607 = vmatmul.bf16.gmra.mxu0 %v475
        %v608 = vpop.f32.mrf.mxu0
        %v609 = vadd.f32 0.0, %v608
        %v610 = vpop.f32.mrf.mxu0
        %v611 = vadd.f32 0.0, %v610
        %612 = vdwg.mxu0
        %613 = vmatpush.bf16.msra.mxu0 %v547
        %614 = vmatpush.bf16.msra.mxu0 %v545
        %615 = vmatpush.bf16.msra.mxu0 %v543
        %616 = vmatpush.bf16.msra.mxu0 %v541
        %617 = vmatpush.bf16.msra.mxu0 %v539
        %618 = vmatpush.bf16.msra.mxu0 %v537
        %619 = vmatpush.bf16.msra.mxu0 %v535
        %620 = vmatpush.bf16.msra.mxu0 %v533
        %621 = vmatmul.bf16.gmra.mxu0 %v468
        %v622 = vpop.f32.mrf.mxu0
        %v623 = vadd.f32 0.0, %v622
        %v624 = vpop.f32.mrf.mxu0
        %v625 = vadd.f32 0.0, %v624
        %626 = vmatmul.bf16.gmra.mxu0 %v469
        %v627 = vpop.f32.mrf.mxu0
        %v628 = vadd.f32 0.0, %v627
        %v629 = vpop.f32.mrf.mxu0
        %v630 = vadd.f32 0.0, %v629
        %631 = vmatmul.bf16.gmra.mxu0 %v470
        %v632 = vpop.f32.mrf.mxu0
        %v633 = vadd.f32 0.0, %v632
        %v634 = vpop.f32.mrf.mxu0
        %v635 = vadd.f32 0.0, %v634
        %636 = vmatmul.bf16.gmra.mxu0 %v471
        %v637 = vpop.f32.mrf.mxu0
        %v638 = vadd.f32 0.0, %v637
        %v639 = vpop.f32.mrf.mxu0
        %v640 = vadd.f32 0.0, %v639
        %641 = vmatmul.bf16.gmra.mxu0 %v472
        %v642 = vpop.f32.mrf.mxu0
        %v643 = vadd.f32 0.0, %v642
        %v644 = vpop.f32.mrf.mxu0
        %v645 = vadd.f32 0.0, %v644
        %646 = vmatmul.bf16.gmra.mxu0 %v473
        %v647 = vpop.f32.mrf.mxu0
        %v648 = vadd.f32 0.0, %v647
        %v649 = vpop.f32.mrf.mxu0
        %v650 = vadd.f32 0.0, %v649
        %651 = vmatmul.bf16.gmra.mxu0 %v474
        %v652 = vpop.f32.mrf.mxu0
        %v653 = vadd.f32 0.0, %v652
        %v654 = vpop.f32.mrf.mxu0
        %v655 = vadd.f32 0.0, %v654
        %656 = vmatmul.bf16.gmra.mxu0 %v475
        %v657 = vpop.f32.mrf.mxu0
        %v658 = vadd.f32 0.0, %v657
        %v659 = vpop.f32.mrf.mxu0
        %v660 = vadd.f32 0.0, %v659
        %661 = vdwg.mxu0
        %v662 = vadd.f32 %v372, %v574
        %v663 = vadd.f32 %v373, %v623
        %v664 = vadd.f32 %v374, %v576
        %v665 = vadd.f32 %v375, %v625
        %v666 = vadd.f32 %v376, %v579
        %v667 = vadd.f32 %v377, %v628
        %v668 = vadd.f32 %v378, %v581
        %v669 = vadd.f32 %v379, %v630
        %v670 = vadd.f32 %v380, %v584
        %v671 = vadd.f32 %v381, %v633
        %v672 = vadd.f32 %v382, %v586
        %v673 = vadd.f32 %v383, %v635
        %v674 = vadd.f32 %v384, %v589
        %v675 = vadd.f32 %v385, %v638
        %v676 = vadd.f32 %v386, %v591
        %v677 = vadd.f32 %v387, %v640
        %v678 = vadd.f32 %v388, %v594
        %v679 = vadd.f32 %v389, %v643
        %v680 = vadd.f32 %v390, %v596
        %v681 = vadd.f32 %v391, %v645
        %v682 = vadd.f32 %v392, %v599
        %v683 = vadd.f32 %v393, %v648
        %v684 = vadd.f32 %v394, %v601
        %v685 = vadd.f32 %v395, %v650
        %v686 = vadd.f32 %v396, %v604
        %v687 = vadd.f32 %v397, %v653
        %v688 = vadd.f32 %v398, %v606
        %v689 = vadd.f32 %v399, %v655
        %v690 = vadd.f32 %v400, %v609
        %v691 = vadd.f32 %v401, %v658
        %v692 = vadd.f32 %v402, %v611
        %v693 = vadd.f32 %v403, %v660
        %694 = vst [vmem:[%s327] sm:$0xff] %v662
        %695 = vst [vmem:[%s327 + $0x8] sm:$0xff] %v663
        %696 = vst [vmem:[%s327 + $0x10] sm:$0xff] %v664
        %697 = vst [vmem:[%s327 + $0x18] sm:$0xff] %v665
        %698 = vst [vmem:[%s327 + $0x20] sm:$0xff] %v666
        %699 = vst [vmem:[%s327 + $0x28] sm:$0xff] %v667
        %700 = vst [vmem:[%s327 + $0x30] sm:$0xff] %v668
        %701 = vst [vmem:[%s327 + $0x38] sm:$0xff] %v669
        %702 = vst [vmem:[%s327 + $0x40] sm:$0xff] %v670
        %703 = vst [vmem:[%s327 + $0x48] sm:$0xff] %v671
        %704 = vst [vmem:[%s327 + $0x50] sm:$0xff] %v672
        %705 = vst [vmem:[%s327 + $0x58] sm:$0xff] %v673
        %706 = vst [vmem:[%s327 + $0x60] sm:$0xff] %v674
        %707 = vst [vmem:[%s327 + $0x68] sm:$0xff] %v675
        %708 = vst [vmem:[%s327 + $0x70] sm:$0xff] %v676
        %709 = vst [vmem:[%s327 + $0x78] sm:$0xff] %v677
        %710 = vst [vmem:[%s327 + $0x80] sm:$0xff] %v678
        %711 = vst [vmem:[%s327 + $0x88] sm:$0xff] %v679
        %712 = vst [vmem:[%s327 + $0x90] sm:$0xff] %v680
        %713 = vst [vmem:[%s327 + $0x98] sm:$0xff] %v681
        %714 = vst [vmem:[%s327 + $0xa0] sm:$0xff] %v682
        %715 = vst [vmem:[%s327 + $0xa8] sm:$0xff] %v683
        %716 = vst [vmem:[%s327 + $0xb0] sm:$0xff] %v684
        %717 = vst [vmem:[%s327 + $0xb8] sm:$0xff] %v685
        %718 = vst [vmem:[%s327 + $0xc0] sm:$0xff] %v686
        %719 = vst [vmem:[%s327 + $0xc8] sm:$0xff] %v687
        %720 = vst [vmem:[%s327 + $0xd0] sm:$0xff] %v688
        %721 = vst [vmem:[%s327 + $0xd8] sm:$0xff] %v689
        %722 = vst [vmem:[%s327 + $0xe0] sm:$0xff] %v690
        %723 = vst [vmem:[%s327 + $0xe8] sm:$0xff] %v691
        %724 = vst [vmem:[%s327 + $0xf0] sm:$0xff] %v692
        %725 = vst [vmem:[%s327 + $0xf8] sm:$0xff] %v693
        %p726 = scmp.eq.s32.totalorder %s20, 1
        // Predicated region
        $region74: #{autoencoder_g_forward.4} parent=64 // pred_check
          %p727 = pneg %p726
        $region75: #{autoencoder_g_forward.4} parent=64 // pred_check_branch
          %729 = sbr.rel (%p727) target = $region77
        $region76: #{autoencoder_g_forward.4} parent=64 // pred_region
          %v730 = vld [vmem:[%s327] sm:$0xff]
          %v731 = vld [vmem:[%s327 + $0x8] sm:$0xff]
          %v732 = vld [vmem:[%s327 + $0x10] sm:$0xff]
          %v733 = vld [vmem:[%s327 + $0x18] sm:$0xff]
          %v734 = vld [vmem:[%s327 + $0x20] sm:$0xff]
          %v735 = vld [vmem:[%s327 + $0x28] sm:$0xff]
          %v736 = vld [vmem:[%s327 + $0x30] sm:$0xff]
          %v737 = vld [vmem:[%s327 + $0x38] sm:$0xff]
          %v738 = vld [vmem:[%s327 + $0x40] sm:$0xff]
          %v739 = vld [vmem:[%s327 + $0x48] sm:$0xff]
          %v740 = vld [vmem:[%s327 + $0x50] sm:$0xff]
          %v741 = vld [vmem:[%s327 + $0x58] sm:$0xff]
          %v742 = vld [vmem:[%s327 + $0x60] sm:$0xff]
          %v743 = vld [vmem:[%s327 + $0x68] sm:$0xff]
          %v744 = vld [vmem:[%s327 + $0x70] sm:$0xff]
          %v745 = vld [vmem:[%s327 + $0x78] sm:$0xff]
          %v746 = vld [vmem:[%s327 + $0x80] sm:$0xff]
          %v747 = vld [vmem:[%s327 + $0x88] sm:$0xff]
          %v748 = vld [vmem:[%s327 + $0x90] sm:$0xff]
          %v749 = vld [vmem:[%s327 + $0x98] sm:$0xff]
          %v750 = vld [vmem:[%s327 + $0xa0] sm:$0xff]
          %v751 = vld [vmem:[%s327 + $0xa8] sm:$0xff]
          %v752 = vld [vmem:[%s327 + $0xb0] sm:$0xff]
          %v753 = vld [vmem:[%s327 + $0xb8] sm:$0xff]
          %v754 = vld [vmem:[%s327 + $0xc0] sm:$0xff]
          %v755 = vld [vmem:[%s327 + $0xc8] sm:$0xff]
          %v756 = vld [vmem:[%s327 + $0xd0] sm:$0xff]
          %v757 = vld [vmem:[%s327 + $0xd8] sm:$0xff]
          %v758 = vld [vmem:[%s327 + $0xe0] sm:$0xff]
          %v759 = vld [vmem:[%s327 + $0xe8] sm:$0xff]
          %v760 = vld [vmem:[%s327 + $0xf0] sm:$0xff]
          %v761 = vld [vmem:[%s327 + $0xf8] sm:$0xff]
          %v762 = vpack.c.bf16 %v731, %v730
          %v763 = vpack.c.bf16 %v733, %v732
          %v764 = vpack.c.bf16 %v735, %v734
          %v765 = vpack.c.bf16 %v737, %v736
          %v766 = vpack.c.bf16 %v739, %v738
          %v767 = vpack.c.bf16 %v741, %v740
          %v768 = vpack.c.bf16 %v743, %v742
          %v769 = vpack.c.bf16 %v745, %v744
          %v770 = vpack.c.bf16 %v747, %v746
          %v771 = vpack.c.bf16 %v749, %v748
          %v772 = vpack.c.bf16 %v751, %v750
          %v773 = vpack.c.bf16 %v753, %v752
          %v774 = vpack.c.bf16 %v755, %v754
          %v775 = vpack.c.bf16 %v757, %v756
          %v776 = vpack.c.bf16 %v759, %v758
          %v777 = vpack.c.bf16 %v761, %v760
          %778 = vst [vmem:[%s334] sm:$0xff] %v762
          %779 = vst [vmem:[%s334 + $0x8] sm:$0xff] %v763
          %780 = vst [vmem:[%s334 + $0x10] sm:$0xff] %v764
          %781 = vst [vmem:[%s334 + $0x18] sm:$0xff] %v765
          %782 = vst [vmem:[%s334 + $0x20] sm:$0xff] %v766
          %783 = vst [vmem:[%s334 + $0x28] sm:$0xff] %v767
          %784 = vst [vmem:[%s334 + $0x30] sm:$0xff] %v768
          %785 = vst [vmem:[%s334 + $0x38] sm:$0xff] %v769
          %786 = vst [vmem:[%s334 + $0x40] sm:$0xff] %v770
          %787 = vst [vmem:[%s334 + $0x48] sm:$0xff] %v771
          %788 = vst [vmem:[%s334 + $0x50] sm:$0xff] %v772
          %789 = vst [vmem:[%s334 + $0x58] sm:$0xff] %v773
          %790 = vst [vmem:[%s334 + $0x60] sm:$0xff] %v774
          %791 = vst [vmem:[%s334 + $0x68] sm:$0xff] %v775
          %792 = vst [vmem:[%s334 + $0x70] sm:$0xff] %v776
          %793 = vst [vmem:[%s334 + $0x78] sm:$0xff] %v777
        $region77: #{autoencoder_g_forward.4} parent=64 // pred_fallthru
          _
        %s794 = smul.u32 16, %s19
        %p795 = scmp.lt.s32.totalorder %s794, 31
        %s796 = scalar_select %p795, %s794, 31
        %s797 = smul.addr %s796, 2
        %s798 = smul.addr %s797, 8
        %s799 = scalar_lea.vmem %s2, %s798
        %s800 = smul.u32 16, %s19
        %p801 = scmp.lt.s32.totalorder %s800, 31
        %s802 = scalar_select %p801, %s800, 31
        %s803 = smul.addr %s802, 2
        %s804 = smul.addr %s803, 4
        %s805 = scalar_lea.vmem %s3, %s804
        // Predicated region
        $region78: #{autoencoder_g_forward.4} parent=64 // pred_check
          %p806 = pneg %p99
        $region79: #{autoencoder_g_forward.4} parent=64 // pred_check_branch
          %808 = sbr.rel (%p806) target = $region81
        $region80: #{autoencoder_g_forward.4} parent=64 // pred_region
          %s809 = smul.u32 16, %s19
        $region81: #{autoencoder_g_forward.4} parent=64 // pred_fallthru
          _
        // Predicated region
        $region82: #{autoencoder_g_forward.4} parent=64 // pred_check
          %p810 = pneg %p125
        $region83: #{autoencoder_g_forward.4} parent=64 // pred_check_branch
          %812 = sbr.rel (%p810) target = $region85
        $region84: #{autoencoder_g_forward.4} parent=64 // pred_region
          %s813 = smul.u32 16, %s19
        $region85: #{autoencoder_g_forward.4} parent=64 // pred_fallthru
          _
      $region65: #{autoencoder_g_forward.4} parent=5 // pred_fallthru
        _
      %p814 = scmp.le.s32.totalorder 2, %s10
      // Predicated region
      $region86: #{autoencoder_g_forward.4} parent=5 // pred_check
        %p815 = pneg %p814
      $region87: #{autoencoder_g_forward.4} parent=5 // pred_check_branch
        %817 = sbr.rel (%p815) target = $region89
      $region88: #{autoencoder_g_forward.4} parent=5 // pred_region
        %s818 = ssub.s32 %s10, 2
        // Predicated region
        $region90: #{autoencoder_g_forward.4} parent=88 // pred_check
          %p819 = pneg %p105
        $region91: #{autoencoder_g_forward.4} parent=88 // pred_check_branch
          %821 = sbr.rel (%p819) target = $region93
        $region92: #{autoencoder_g_forward.4} parent=88 // pred_region
          %s822 = smul.u32 16, %s21
          %p823 = scmp.lt.s32.totalorder %s822, 31
          %s824 = scalar_select %p823, %s822, 31
          %s825 = smul.addr %s824, 2
          %s826 = smul.addr %s825, 8
          %s827 = scalar_lea.vmem %s2, %s826
        $region93: #{autoencoder_g_forward.4} parent=88 // pred_fallthru
          _
        // Predicated region
        $region94: #{autoencoder_g_forward.4} parent=88 // pred_check
          %p828 = pneg %p131
        $region95: #{autoencoder_g_forward.4} parent=88 // pred_check_branch
          %830 = sbr.rel (%p828) target = $region97
        $region96: #{autoencoder_g_forward.4} parent=88 // pred_region
          %s831 = smul.u32 16, %s21
          %p832 = scmp.lt.s32.totalorder %s831, 31
          %s833 = scalar_select %p832, %s831, 31
          %s834 = smul.addr %s833, 2
          %s835 = smul.addr %s834, 4
          %s836 = scalar_lea.vmem %s3, %s835
        $region97: #{autoencoder_g_forward.4} parent=88 // pred_fallthru
          _
      $region89: #{autoencoder_g_forward.4} parent=5 // pred_fallthru
        _
    $region6: #{autoencoder_g_forward.4} parent=1 // loop_footer
      %s14 = sadd.s32 1, %s10
    $region7: #{autoencoder_g_forward.4} parent=1 // loop_footer_branch
      %9 = sbr.rel target = $region3
    $region8: #{autoencoder_g_forward.4} parent=1 // loop_exit
      _

// kernel: autoencoder_g_forward.5
$region0: #{autoencoder_g_forward.5}
  #allocation0 [shape = 'u32[]', space=smem, size = 0x4, offset = 0x4, fixed_abs, tag = 'smem constant byte address 0x4 - core index']
  #allocation1 [shape = 'u32[72,128]{1,0:T(1,128)}', space=vmem, size = 0x9000, scoped, tag = 'internal scratch']
  #allocation2 [shape = 'f32[128,256]{1,0:T(8,128)}', space=vmem, size = 0x20000, scoped, tag = 'scratch operand']
  #allocation3 [shape = 'f32[128,128]{1,0:T(8,128)}', space=vmem, size = 0x10000, scoped, tag = 'scratch operand']
  #allocation4 [shape = 'f32[1,1]{1,0:T(1,128)S(6)}', space=smem, size = 0x200, scoped, tag = 'scoped memory for autoencoder_g_forward.5']
  %s0 = inlined_call_operand.vmem [shape: bf16[256,256], index: 0, kind: input, shape index: {}]
  %s1 = inlined_call_operand.vmem [shape: bf16[256,256], index: 1, kind: input, shape index: {}]
  %s2 = inlined_call_operand.vmem [shape: bf16[256,256], index: 2, kind: input, shape index: {}]
  %s3 = inlined_call_operand.vmem [shape: f32[256,256], index: 3, kind: input, shape index: {}]
  %s4 = inlined_call_operand.vmem [shape: f32[128,128], index: 4, kind: input, shape index: {}]
  %s5 = inlined_call_operand.vmem [shape: f32[128,128], index: 5, kind: input, shape index: {}]
  %s6 = inlined_call_operand.<no memory space> [shape: f32[1,1], index: 6, kind: input, shape index: {}]
  %s7 = inlined_call_operand.vmem [shape: f32[256,128], index: 7, kind: output, shape index: {0}]
  %s8 = inlined_call_operand.vmem [shape: f32[256,128], index: 8, kind: output, shape index: {1}]
  %9 = xla_tuple %s7, %s8
  %s10 = sld [smem:[#allocation0]]
  $region159: #{autoencoder_g_forward.5} parent=0
    _
  %s12 = ssub.s32 1, %s10
  %s13 = scalar_select 0, %s12, %s10
  %14 = sst [smem:[#allocation4]] %s6
  $region1: #{autoencoder_g_forward.5} parent=0
    #allocation5 [shape = 'u8[65536]{0}', space=vmem, size = 0x10000, scoped, tag = 'input window, operand 0']
    #allocation6 [shape = 'u8[65536]{0}', space=vmem, size = 0x10000, scoped, tag = 'input window, operand 1']
    loop: start=0, step=1, limit=6
    $region2: #{autoencoder_g_forward.5} parent=1 // loop_pre_header
      _
    $region3: #{autoencoder_g_forward.5} parent=1 // loop_header
      %s16 = sphi 0, %s20
      %p17 = scmp.ge.s32.totalorder %s16, 6
      %s23 = sphi 0, %s35
      %s24 = sphi 0, %s31
      %s25 = sphi 0, %s23
      %s26 = sphi 0, %s24
      %s27 = sphi 0, %s25
      %s28 = sphi 0, %s26
      %s40 = sphi 0, %s42
      %s43 = sphi 0, %s40
      %s44 = sphi 0, %s43
      %s60 = sphi 0, %s44
      %s68 = sphi 0, %s70
      %s71 = sphi 0, %s68
      %s72 = sphi 0, %s71
      %s88 = sphi 0, %s72
      %s94 = sphi 0, %s96
      %s97 = sphi 0, %s94
      %s98 = sphi 0, %s97
      %s114 = sphi 0, %s98
      %s120 = sphi 0, %s122
      %s123 = sphi 0, %s120
      %s124 = sphi 0, %s123
      %s140 = sphi 0, %s124
      %s144 = sphi 0, %s144
      %s146 = sphi 0, %s144
      %s147 = sphi 0, %s146
      %s161 = sphi 0, %s147
      %s165 = sphi 0, %s165
      %s167 = sphi 0, %s165
      %s168 = sphi 0, %s167
      %s182 = sphi 0, %s168
      %s186 = sphi 0, %s186
      %s188 = sphi 0, %s186
      %s189 = sphi 0, %s188
      %s203 = sphi 0, %s189
      %s209 = sphi 0, %s211
      %s212 = sphi 0, %s209
      %s213 = sphi 0, %s212
      %s229 = sphi 0, %s213
      %s235 = sphi 0, %s237
      %s238 = sphi 0, %s235
      %s239 = sphi 0, %s238
      %s255 = sphi 0, %s239
    $region4: #{autoencoder_g_forward.5} parent=1 // loop_header_branch
      %19 = sbr.rel (%p17) target = $region8
    $region5: #{autoencoder_g_forward.5} parent=1 // loop_body
      %s21 = ssub.s32 %s16, 1
      %s22 = ssub.s32 %s16, 2
      %s29 = sadd.s32 1, %s24
      %p30 = scmp.ge.s32.totalorder %s29, 2
      %s31 = scalar_select %p30, 0, %s29
      %s32 = sadd.s32 1, %s23
      %s33 = scalar_select %p30, %s32, %s23
      %p34 = scmp.ge.s32.totalorder %s33, 2
      %s35 = scalar_select %p34, 0, %s33
      %s36 = ssub.s32 %s23, %s35
      %s37 = ssub.s32 %s24, %s31
      %s38 = sor.u32 %s36, %s37
      %p39 = scmp.eq.s32.totalorder %s38, 0
      %s41 = sadd.s32 %s40, 1
      %s42 = scalar_select %p39, %s40, %s41
      %p45 = pneg %p39
      %p46 = scmp.eq.s32.totalorder %s16, 3
      %p47 = por %p45, %p46
      %p48 = scmp.ne.s32.totalorder %s40, %s43
      %p49 = scmp.eq.s32.totalorder %s16, 0
      %p50 = por %p48, %p49
      %p51 = scmp.ne.s32.totalorder %s40, %s43
      %p52 = scmp.eq.s32.totalorder %s21, 3
      %p53 = por %p51, %p52
      %p54 = scmp.ne.s32.totalorder %s43, %s44
      %p55 = scmp.eq.s32.totalorder %s21, 0
      %p56 = por %p54, %p55
      %p57 = scmp.ne.s32.totalorder %s43, %s44
      %p58 = scmp.eq.s32.totalorder %s22, 3
      %p59 = por %p57, %p58
      %p61 = scmp.ne.s32.totalorder %s44, %s60
      %p62 = scmp.eq.s32.totalorder %s22, 0
      %p63 = por %p61, %p62
      %s64 = ssub.s32 %s23, %s35
      %s65 = ssub.s32 %s24, %s31
      %s66 = sor.u32 %s64, %s65
      %p67 = scmp.eq.s32.totalorder %s66, 0
      %s69 = sadd.s32 %s68, 1
      %s70 = scalar_select %p67, %s68, %s69
      %p73 = pneg %p67
      %p74 = scmp.eq.s32.totalorder %s16, 3
      %p75 = por %p73, %p74
      %p76 = scmp.ne.s32.totalorder %s68, %s71
      %p77 = scmp.eq.s32.totalorder %s16, 0
      %p78 = por %p76, %p77
      %p79 = scmp.ne.s32.totalorder %s68, %s71
      %p80 = scmp.eq.s32.totalorder %s21, 3
      %p81 = por %p79, %p80
      %p82 = scmp.ne.s32.totalorder %s71, %s72
      %p83 = scmp.eq.s32.totalorder %s21, 0
      %p84 = por %p82, %p83
      %p85 = scmp.ne.s32.totalorder %s71, %s72
      %p86 = scmp.eq.s32.totalorder %s22, 3
      %p87 = por %p85, %p86
      %p89 = scmp.ne.s32.totalorder %s72, %s88
      %p90 = scmp.eq.s32.totalorder %s22, 0
      %p91 = por %p89, %p90
      %s92 = ssub.s32 %s24, %s31
      %p93 = scmp.eq.s32.totalorder %s92, 0
      %s95 = sadd.s32 %s94, 1
      %s96 = scalar_select %p93, %s94, %s95
      %p99 = pneg %p93
      %p100 = scmp.eq.s32.totalorder %s16, 3
      %p101 = por %p99, %p100
      %p102 = scmp.ne.s32.totalorder %s94, %s97
      %p103 = scmp.eq.s32.totalorder %s16, 0
      %p104 = por %p102, %p103
      %p105 = scmp.ne.s32.totalorder %s94, %s97
      %p106 = scmp.eq.s32.totalorder %s21, 3
      %p107 = por %p105, %p106
      %p108 = scmp.ne.s32.totalorder %s97, %s98
      %p109 = scmp.eq.s32.totalorder %s21, 0
      %p110 = por %p108, %p109
      %p111 = scmp.ne.s32.totalorder %s97, %s98
      %p112 = scmp.eq.s32.totalorder %s22, 3
      %p113 = por %p111, %p112
      %p115 = scmp.ne.s32.totalorder %s98, %s114
      %p116 = scmp.eq.s32.totalorder %s22, 0
      %p117 = por %p115, %p116
      %s118 = ssub.s32 %s23, %s35
      %p119 = scmp.eq.s32.totalorder %s118, 0
      %s121 = sadd.s32 %s120, 1
      %s122 = scalar_select %p119, %s120, %s121
      %p125 = pneg %p119
      %p126 = scmp.eq.s32.totalorder %s16, 3
      %p127 = por %p125, %p126
      %p128 = scmp.ne.s32.totalorder %s120, %s123
      %p129 = scmp.eq.s32.totalorder %s16, 0
      %p130 = por %p128, %p129
      %p131 = scmp.ne.s32.totalorder %s120, %s123
      %p132 = scmp.eq.s32.totalorder %s21, 3
      %p133 = por %p131, %p132
      %p134 = scmp.ne.s32.totalorder %s123, %s124
      %p135 = scmp.eq.s32.totalorder %s21, 0
      %p136 = por %p134, %p135
      %p137 = scmp.ne.s32.totalorder %s123, %s124
      %p138 = scmp.eq.s32.totalorder %s22, 3
      %p139 = por %p137, %p138
      %p141 = scmp.ne.s32.totalorder %s124, %s140
      %p142 = scmp.eq.s32.totalorder %s22, 0
      %p143 = por %p141, %p142
      %s145 = sadd.s32 %s144, 1
      %p148 = scmp.eq.s32.totalorder %s16, 3
      %p149 = scmp.ne.s32.totalorder %s144, %s146
      %p150 = scmp.eq.s32.totalorder %s16, 0
      %p151 = por %p149, %p150
      %p152 = scmp.ne.s32.totalorder %s144, %s146
      %p153 = scmp.eq.s32.totalorder %s21, 3
      %p154 = por %p152, %p153
      %p155 = scmp.ne.s32.totalorder %s146, %s147
      %p156 = scmp.eq.s32.totalorder %s21, 0
      %p157 = por %p155, %p156
      %p158 = scmp.ne.s32.totalorder %s146, %s147
      %p159 = scmp.eq.s32.totalorder %s22, 3
      %p160 = por %p158, %p159
      %p162 = scmp.ne.s32.totalorder %s147, %s161
      %p163 = scmp.eq.s32.totalorder %s22, 0
      %p164 = por %p162, %p163
      %s166 = sadd.s32 %s165, 1
      %p169 = scmp.eq.s32.totalorder %s16, 3
      %p170 = scmp.ne.s32.totalorder %s165, %s167
      %p171 = scmp.eq.s32.totalorder %s16, 0
      %p172 = por %p170, %p171
      %p173 = scmp.ne.s32.totalorder %s165, %s167
      %p174 = scmp.eq.s32.totalorder %s21, 3
      %p175 = por %p173, %p174
      %p176 = scmp.ne.s32.totalorder %s167, %s168
      %p177 = scmp.eq.s32.totalorder %s21, 0
      %p178 = por %p176, %p177
      %p179 = scmp.ne.s32.totalorder %s167, %s168
      %p180 = scmp.eq.s32.totalorder %s22, 3
      %p181 = por %p179, %p180
      %p183 = scmp.ne.s32.totalorder %s168, %s182
      %p184 = scmp.eq.s32.totalorder %s22, 0
      %p185 = por %p183, %p184
      %s187 = sadd.s32 %s186, 1
      %p190 = scmp.eq.s32.totalorder %s16, 3
      %p191 = scmp.ne.s32.totalorder %s186, %s188
      %p192 = scmp.eq.s32.totalorder %s16, 0
      %p193 = por %p191, %p192
      %p194 = scmp.ne.s32.totalorder %s186, %s188
      %p195 = scmp.eq.s32.totalorder %s21, 3
      %p196 = por %p194, %p195
      %p197 = scmp.ne.s32.totalorder %s188, %s189
      %p198 = scmp.eq.s32.totalorder %s21, 0
      %p199 = por %p197, %p198
      %p200 = scmp.ne.s32.totalorder %s188, %s189
      %p201 = scmp.eq.s32.totalorder %s22, 3
      %p202 = por %p200, %p201
      %p204 = scmp.ne.s32.totalorder %s189, %s203
      %p205 = scmp.eq.s32.totalorder %s22, 0
      %p206 = por %p204, %p205
      %s207 = ssub.s32 %s23, %s35
      %p208 = scmp.eq.s32.totalorder %s207, 0
      %s210 = sadd.s32 %s209, 1
      %s211 = scalar_select %p208, %s209, %s210
      %p214 = pneg %p208
      %p215 = scmp.eq.s32.totalorder %s16, 3
      %p216 = por %p214, %p215
      %p217 = scmp.ne.s32.totalorder %s209, %s212
      %p218 = scmp.eq.s32.totalorder %s16, 0
      %p219 = por %p217, %p218
      %p220 = scmp.ne.s32.totalorder %s209, %s212
      %p221 = scmp.eq.s32.totalorder %s21, 3
      %p222 = por %p220, %p221
      %p223 = scmp.ne.s32.totalorder %s212, %s213
      %p224 = scmp.eq.s32.totalorder %s21, 0
      %p225 = por %p223, %p224
      %p226 = scmp.ne.s32.totalorder %s212, %s213
      %p227 = scmp.eq.s32.totalorder %s22, 3
      %p228 = por %p226, %p227
      %p230 = scmp.ne.s32.totalorder %s213, %s229
      %p231 = scmp.eq.s32.totalorder %s22, 0
      %p232 = por %p230, %p231
      %s233 = ssub.s32 %s23, %s35
      %p234 = scmp.eq.s32.totalorder %s233, 0
      %s236 = sadd.s32 %s235, 1
      %s237 = scalar_select %p234, %s235, %s236
      %p240 = pneg %p234
      %p241 = scmp.eq.s32.totalorder %s16, 3
      %p242 = por %p240, %p241
      %p243 = scmp.ne.s32.totalorder %s235, %s238
      %p244 = scmp.eq.s32.totalorder %s16, 0
      %p245 = por %p243, %p244
      %p246 = scmp.ne.s32.totalorder %s235, %s238
      %p247 = scmp.eq.s32.totalorder %s21, 3
      %p248 = por %p246, %p247
      %p249 = scmp.ne.s32.totalorder %s238, %s239
      %p250 = scmp.eq.s32.totalorder %s21, 0
      %p251 = por %p249, %p250
      %p252 = scmp.ne.s32.totalorder %s238, %s239
      %p253 = scmp.eq.s32.totalorder %s22, 3
      %p254 = por %p252, %p253
      %p256 = scmp.ne.s32.totalorder %s239, %s255
      %p257 = scmp.eq.s32.totalorder %s22, 0
      %p258 = por %p256, %p257
      %p259 = scmp.le.s32.totalorder 1, %s16
      %p260 = scmp.lt.s32.totalorder %s16, 5
      %p261 = pnand %p259, %p260
      %p262 = pneg %p261
      // Predicated region
      $region9: #{autoencoder_g_forward.5} parent=5 // pred_check
        _
      $region10: #{autoencoder_g_forward.5} parent=5 // pred_check_branch
        %264 = sbr.rel (%p261) target = $region12
      $region11: #{autoencoder_g_forward.5} parent=5 // pred_region
        %s265 = ssub.s32 %s16, 1
        // Predicated region
        $region13: #{autoencoder_g_forward.5} parent=11 // pred_check
          %p266 = pneg %p157
        $region14: #{autoencoder_g_forward.5} parent=11 // pred_check_branch
          %268 = sbr.rel (%p266) target = $region16
        $region15: #{autoencoder_g_forward.5} parent=11 // pred_region
          _
        $region16: #{autoencoder_g_forward.5} parent=11 // pred_fallthru
          _
        // Predicated region
        $region17: #{autoencoder_g_forward.5} parent=11 // pred_check
          %p269 = pneg %p178
        $region18: #{autoencoder_g_forward.5} parent=11 // pred_check_branch
          %271 = sbr.rel (%p269) target = $region20
        $region19: #{autoencoder_g_forward.5} parent=11 // pred_region
          _
        $region20: #{autoencoder_g_forward.5} parent=11 // pred_fallthru
          _
        // Predicated region
        $region21: #{autoencoder_g_forward.5} parent=11 // pred_check
          %p272 = pneg %p199
        $region22: #{autoencoder_g_forward.5} parent=11 // pred_check_branch
          %274 = sbr.rel (%p272) target = $region24
        $region23: #{autoencoder_g_forward.5} parent=11 // pred_region
          _
        $region24: #{autoencoder_g_forward.5} parent=11 // pred_fallthru
          _
      $region12: #{autoencoder_g_forward.5} parent=5 // pred_fallthru
        _
      %p275 = scmp.lt.s32.totalorder %s16, 4
      // Predicated region
      $region25: #{autoencoder_g_forward.5} parent=5 // pred_check
        %p276 = pneg %p275
      $region26: #{autoencoder_g_forward.5} parent=5 // pred_check_branch
        %278 = sbr.rel (%p276) target = $region28
      $region27: #{autoencoder_g_forward.5} parent=5 // pred_region
        // Predicated region
        $region29: #{autoencoder_g_forward.5} parent=27 // pred_check
          %p279 = pneg %p50
        $region30: #{autoencoder_g_forward.5} parent=27 // pred_check_branch
          %281 = sbr.rel (%p279) target = $region32
        $region31: #{autoencoder_g_forward.5} parent=27 // pred_region
          %s282 = sand.u32 %s40, 1
          %s283 = sand.u32 %s40, 1
          %s284 = smul.addr %s283, 64
          %s285 = scalar_lea.vmem [#allocation5], %s284
          %s286 = smul.u32 16, %s23
          %s287 = smul.addr %s286, 2
          %s288 = sadd.s32 %s24, %s287
          %s289 = smul.addr %s288, 4
          %s290 = scalar_lea.vmem %s0, %s289
          // Predicated region
          $region33: #{autoencoder_g_forward.5} parent=31 // pred_check
            _
          $region34: #{autoencoder_g_forward.5} parent=31 // pred_check_branch
            %292 = sbr.rel (0) target = $region36
          $region35: #{autoencoder_g_forward.5} parent=31 // pred_region
            // Predicated region
            $region37: #{autoencoder_g_forward.5} parent=35 // pred_check
              _
            $region38: #{autoencoder_g_forward.5} parent=35 // pred_check_branch
              %294 = sbr.rel target = $region40
            $region39: #{autoencoder_g_forward.5} parent=35 // pred_region
              // Predicated region
              $region52: #{autoencoder_g_forward.5} parent=39 // pred_check
                _
              $region53: #{autoencoder_g_forward.5} parent=39 // pred_check_branch
                %340 = sbr.rel (0) target = $region55
              $region54: #{autoencoder_g_forward.5} parent=39 // pred_region
                loop: start=0, step=1, limit=1
                $region56: #{autoencoder_g_forward.5} parent=54 // loop_pre_header
                  _
                $region57: #{autoencoder_g_forward.5} parent=54 // loop_header
                  %s342 = sphi 0, %s346
                  %p343 = scmp.ge.s32.totalorder %s342, 1
                  %s347 = sphi %s290, %s290
                  %s348 = sphi %s285, %s285
                $region58: #{autoencoder_g_forward.5} parent=54 // loop_header_branch
                  %345 = sbr.rel (%p343) target = $region62
                $region59: #{autoencoder_g_forward.5} parent=54 // loop_body
                  _
                $region60: #{autoencoder_g_forward.5} parent=54 // loop_footer
                  %s346 = sadd.s32 1, %s342
                $region61: #{autoencoder_g_forward.5} parent=54 // loop_footer_branch
                  %341 = sbr.rel target = $region57
                $region62: #{autoencoder_g_forward.5} parent=54 // loop_exit
                  _
                %s350 = ssub.s32 16, 1
                loop: start=0, step=1, limit=1
                $region63: #{autoencoder_g_forward.5} parent=54 // loop_pre_header
                  _
                $region64: #{autoencoder_g_forward.5} parent=54 // loop_header
                  %s352 = sphi 0, %s356
                  %p353 = scmp.ge.s32.totalorder %s352, 1
                  %s357 = sphi %s290, %s290
                  %s358 = sphi %s285, %s285
                $region65: #{autoencoder_g_forward.5} parent=54 // loop_header_branch
                  %355 = sbr.rel (%p353) target = $region69
                $region66: #{autoencoder_g_forward.5} parent=54 // loop_body
                  %v359 = vld [vmem:[%s357] sm:%s350]
                  %360 = vst [vmem:[%s358] sm:%s350] %v359
                  %v361 = vld [vmem:[%s357 + $0x8] sm:%s350]
                  %362 = vst [vmem:[%s358 + $0x4] sm:%s350] %v361
                  %v363 = vld [vmem:[%s357 + $0x10] sm:%s350]
                  %364 = vst [vmem:[%s358 + $0x8] sm:%s350] %v363
                  %v365 = vld [vmem:[%s357 + $0x18] sm:%s350]
                  %366 = vst [vmem:[%s358 + $0xc] sm:%s350] %v365
                  %v367 = vld [vmem:[%s357 + $0x20] sm:%s350]
                  %368 = vst [vmem:[%s358 + $0x10] sm:%s350] %v367
                  %v369 = vld [vmem:[%s357 + $0x28] sm:%s350]
                  %370 = vst [vmem:[%s358 + $0x14] sm:%s350] %v369
                  %v371 = vld [vmem:[%s357 + $0x30] sm:%s350]
                  %372 = vst [vmem:[%s358 + $0x18] sm:%s350] %v371
                  %v373 = vld [vmem:[%s357 + $0x38] sm:%s350]
                  %374 = vst [vmem:[%s358 + $0x1c] sm:%s350] %v373
                  %v375 = vld [vmem:[%s357 + $0x40] sm:%s350]
                  %376 = vst [vmem:[%s358 + $0x20] sm:%s350] %v375
                  %v377 = vld [vmem:[%s357 + $0x48] sm:%s350]
                  %378 = vst [vmem:[%s358 + $0x24] sm:%s350] %v377
                  %v379 = vld [vmem:[%s357 + $0x50] sm:%s350]
                  %380 = vst [vmem:[%s358 + $0x28] sm:%s350] %v379
                  %v381 = vld [vmem:[%s357 + $0x58] sm:%s350]
                  %382 = vst [vmem:[%s358 + $0x2c] sm:%s350] %v381
                  %v383 = vld [vmem:[%s357 + $0x60] sm:%s350]
                  %384 = vst [vmem:[%s358 + $0x30] sm:%s350] %v383
                  %v385 = vld [vmem:[%s357 + $0x68] sm:%s350]
                  %386 = vst [vmem:[%s358 + $0x34] sm:%s350] %v385
                  %v387 = vld [vmem:[%s357 + $0x70] sm:%s350]
                  %388 = vst [vmem:[%s358 + $0x38] sm:%s350] %v387
                  %v389 = vld [vmem:[%s357 + $0x78] sm:%s350]
                  %390 = vst [vmem:[%s358 + $0x3c] sm:%s350] %v389
                $region67: #{autoencoder_g_forward.5} parent=54 // loop_footer
                  %s356 = sadd.s32 1, %s352
                $region68: #{autoencoder_g_forward.5} parent=54 // loop_footer_branch
                  %351 = sbr.rel target = $region64
                $region69: #{autoencoder_g_forward.5} parent=54 // loop_exit
                  _
              $region55: #{autoencoder_g_forward.5} parent=39 // pred_fallthru
                _
            $region40: #{autoencoder_g_forward.5} parent=35 // pred_fallthru
              _
            // Predicated region
            $region41: #{autoencoder_g_forward.5} parent=35 // pred_check
              _
            $region42: #{autoencoder_g_forward.5} parent=35 // pred_check_branch
              %296 = sbr.rel (0) target = $region44
            $region43: #{autoencoder_g_forward.5} parent=35 // pred_region
              %s298 = ssub.s32 16, 1
              loop: start=0, step=1, limit=1
              $region45: #{autoencoder_g_forward.5} parent=43 // loop_pre_header
                _
              $region46: #{autoencoder_g_forward.5} parent=43 // loop_header
                %s300 = sphi 0, %s304
                %p301 = scmp.ge.s32.totalorder %s300, 1
                %s305 = sphi %s290, %s290
                %s306 = sphi %s285, %s285
              $region47: #{autoencoder_g_forward.5} parent=43 // loop_header_branch
                %303 = sbr.rel (%p301) target = $region51
              $region48: #{autoencoder_g_forward.5} parent=43 // loop_body
                %v307 = vld [vmem:[%s305] sm:%s298]
                %308 = vst [vmem:[%s306] sm:%s298] %v307
                %v309 = vld [vmem:[%s305 + $0x8] sm:%s298]
                %310 = vst [vmem:[%s306 + $0x4] sm:%s298] %v309
                %v311 = vld [vmem:[%s305 + $0x10] sm:%s298]
                %312 = vst [vmem:[%s306 + $0x8] sm:%s298] %v311
                %v313 = vld [vmem:[%s305 + $0x18] sm:%s298]
                %314 = vst [vmem:[%s306 + $0xc] sm:%s298] %v313
                %v315 = vld [vmem:[%s305 + $0x20] sm:%s298]
                %316 = vst [vmem:[%s306 + $0x10] sm:%s298] %v315
                %v317 = vld [vmem:[%s305 + $0x28] sm:%s298]
                %318 = vst [vmem:[%s306 + $0x14] sm:%s298] %v317
                %v319 = vld [vmem:[%s305 + $0x30] sm:%s298]
                %320 = vst [vmem:[%s306 + $0x18] sm:%s298] %v319
                %v321 = vld [vmem:[%s305 + $0x38] sm:%s298]
                %322 = vst [vmem:[%s306 + $0x1c] sm:%s298] %v321
                %v323 = vld [vmem:[%s305 + $0x40] sm:%s298]
                %324 = vst [vmem:[%s306 + $0x20] sm:%s298] %v323
                %v325 = vld [vmem:[%s305 + $0x48] sm:%s298]
                %326 = vst [vmem:[%s306 + $0x24] sm:%s298] %v325
                %v327 = vld [vmem:[%s305 + $0x50] sm:%s298]
                %328 = vst [vmem:[%s306 + $0x28] sm:%s298] %v327
                %v329 = vld [vmem:[%s305 + $0x58] sm:%s298]
                %330 = vst [vmem:[%s306 + $0x2c] sm:%s298] %v329
                %v331 = vld [vmem:[%s305 + $0x60] sm:%s298]
                %332 = vst [vmem:[%s306 + $0x30] sm:%s298] %v331
                %v333 = vld [vmem:[%s305 + $0x68] sm:%s298]
                %334 = vst [vmem:[%s306 + $0x34] sm:%s298] %v333
                %v335 = vld [vmem:[%s305 + $0x70] sm:%s298]
                %336 = vst [vmem:[%s306 + $0x38] sm:%s298] %v335
                %v337 = vld [vmem:[%s305 + $0x78] sm:%s298]
                %338 = vst [vmem:[%s306 + $0x3c] sm:%s298] %v337
              $region49: #{autoencoder_g_forward.5} parent=43 // loop_footer
                %s304 = sadd.s32 1, %s300
              $region50: #{autoencoder_g_forward.5} parent=43 // loop_footer_branch
                %299 = sbr.rel target = $region46
              $region51: #{autoencoder_g_forward.5} parent=43 // loop_exit
                _
            $region44: #{autoencoder_g_forward.5} parent=35 // pred_fallthru
              _
          $region36: #{autoencoder_g_forward.5} parent=31 // pred_fallthru
            _
          %391 = vnop
        $region32: #{autoencoder_g_forward.5} parent=27 // pred_fallthru
          _
        // Predicated region
        $region70: #{autoencoder_g_forward.5} parent=27 // pred_check
          %p392 = pneg %p78
        $region71: #{autoencoder_g_forward.5} parent=27 // pred_check_branch
          %394 = sbr.rel (%p392) target = $region73
        $region72: #{autoencoder_g_forward.5} parent=27 // pred_region
          %s395 = sand.u32 %s68, 1
          %s396 = sand.u32 %s68, 1
          %s397 = smul.addr %s396, 64
          %s398 = scalar_lea.vmem [#allocation6], %s397
          %s399 = smul.u32 16, %s23
          %s400 = smul.addr %s399, 2
          %s401 = sadd.s32 %s24, %s400
          %s402 = smul.addr %s401, 4
          %s403 = scalar_lea.vmem %s1, %s402
          // Predicated region
          $region74: #{autoencoder_g_forward.5} parent=72 // pred_check
            _
          $region75: #{autoencoder_g_forward.5} parent=72 // pred_check_branch
            %405 = sbr.rel (0) target = $region77
          $region76: #{autoencoder_g_forward.5} parent=72 // pred_region
            // Predicated region
            $region78: #{autoencoder_g_forward.5} parent=76 // pred_check
              _
            $region79: #{autoencoder_g_forward.5} parent=76 // pred_check_branch
              %407 = sbr.rel target = $region81
            $region80: #{autoencoder_g_forward.5} parent=76 // pred_region
              // Predicated region
              $region93: #{autoencoder_g_forward.5} parent=80 // pred_check
                _
              $region94: #{autoencoder_g_forward.5} parent=80 // pred_check_branch
                %453 = sbr.rel (0) target = $region96
              $region95: #{autoencoder_g_forward.5} parent=80 // pred_region
                loop: start=0, step=1, limit=1
                $region97: #{autoencoder_g_forward.5} parent=95 // loop_pre_header
                  _
                $region98: #{autoencoder_g_forward.5} parent=95 // loop_header
                  %s455 = sphi 0, %s459
                  %p456 = scmp.ge.s32.totalorder %s455, 1
                  %s460 = sphi %s403, %s403
                  %s461 = sphi %s398, %s398
                $region99: #{autoencoder_g_forward.5} parent=95 // loop_header_branch
                  %458 = sbr.rel (%p456) target = $region103
                $region100: #{autoencoder_g_forward.5} parent=95 // loop_body
                  _
                $region101: #{autoencoder_g_forward.5} parent=95 // loop_footer
                  %s459 = sadd.s32 1, %s455
                $region102: #{autoencoder_g_forward.5} parent=95 // loop_footer_branch
                  %454 = sbr.rel target = $region98
                $region103: #{autoencoder_g_forward.5} parent=95 // loop_exit
                  _
                %s463 = ssub.s32 16, 1
                loop: start=0, step=1, limit=1
                $region104: #{autoencoder_g_forward.5} parent=95 // loop_pre_header
                  _
                $region105: #{autoencoder_g_forward.5} parent=95 // loop_header
                  %s465 = sphi 0, %s469
                  %p466 = scmp.ge.s32.totalorder %s465, 1
                  %s470 = sphi %s403, %s403
                  %s471 = sphi %s398, %s398
                $region106: #{autoencoder_g_forward.5} parent=95 // loop_header_branch
                  %468 = sbr.rel (%p466) target = $region110
                $region107: #{autoencoder_g_forward.5} parent=95 // loop_body
                  %v472 = vld [vmem:[%s470] sm:%s463]
                  %473 = vst [vmem:[%s471] sm:%s463] %v472
                  %v474 = vld [vmem:[%s470 + $0x8] sm:%s463]
                  %475 = vst [vmem:[%s471 + $0x4] sm:%s463] %v474
                  %v476 = vld [vmem:[%s470 + $0x10] sm:%s463]
                  %477 = vst [vmem:[%s471 + $0x8] sm:%s463] %v476
                  %v478 = vld [vmem:[%s470 + $0x18] sm:%s463]
                  %479 = vst [vmem:[%s471 + $0xc] sm:%s463] %v478
                  %v480 = vld [vmem:[%s470 + $0x20] sm:%s463]
                  %481 = vst [vmem:[%s471 + $0x10] sm:%s463] %v480
                  %v482 = vld [vmem:[%s470 + $0x28] sm:%s463]
                  %483 = vst [vmem:[%s471 + $0x14] sm:%s463] %v482
                  %v484 = vld [vmem:[%s470 + $0x30] sm:%s463]
                  %485 = vst [vmem:[%s471 + $0x18] sm:%s463] %v484
                  %v486 = vld [vmem:[%s470 + $0x38] sm:%s463]
                  %487 = vst [vmem:[%s471 + $0x1c] sm:%s463] %v486
                  %v488 = vld [vmem:[%s470 + $0x40] sm:%s463]
                  %489 = vst [vmem:[%s471 + $0x20] sm:%s463] %v488
                  %v490 = vld [vmem:[%s470 + $0x48] sm:%s463]
                  %491 = vst [vmem:[%s471 + $0x24] sm:%s463] %v490
                  %v492 = vld [vmem:[%s470 + $0x50] sm:%s463]
                  %493 = vst [vmem:[%s471 + $0x28] sm:%s463] %v492
                  %v494 = vld [vmem:[%s470 + $0x58] sm:%s463]
                  %495 = vst [vmem:[%s471 + $0x2c] sm:%s463] %v494
                  %v496 = vld [vmem:[%s470 + $0x60] sm:%s463]
                  %497 = vst [vmem:[%s471 + $0x30] sm:%s463] %v496
                  %v498 = vld [vmem:[%s470 + $0x68] sm:%s463]
                  %499 = vst [vmem:[%s471 + $0x34] sm:%s463] %v498
                  %v500 = vld [vmem:[%s470 + $0x70] sm:%s463]
                  %501 = vst [vmem:[%s471 + $0x38] sm:%s463] %v500
                  %v502 = vld [vmem:[%s470 + $0x78] sm:%s463]
                  %503 = vst [vmem:[%s471 + $0x3c] sm:%s463] %v502
                $region108: #{autoencoder_g_forward.5} parent=95 // loop_footer
                  %s469 = sadd.s32 1, %s465
                $region109: #{autoencoder_g_forward.5} parent=95 // loop_footer_branch
                  %464 = sbr.rel target = $region105
                $region110: #{autoencoder_g_forward.5} parent=95 // loop_exit
                  _
              $region96: #{autoencoder_g_forward.5} parent=80 // pred_fallthru
                _
            $region81: #{autoencoder_g_forward.5} parent=76 // pred_fallthru
              _
            // Predicated region
            $region82: #{autoencoder_g_forward.5} parent=76 // pred_check
              _
            $region83: #{autoencoder_g_forward.5} parent=76 // pred_check_branch
              %409 = sbr.rel (0) target = $region85
            $region84: #{autoencoder_g_forward.5} parent=76 // pred_region
              %s411 = ssub.s32 16, 1
              loop: start=0, step=1, limit=1
              $region86: #{autoencoder_g_forward.5} parent=84 // loop_pre_header
                _
              $region87: #{autoencoder_g_forward.5} parent=84 // loop_header
                %s413 = sphi 0, %s417
                %p414 = scmp.ge.s32.totalorder %s413, 1
                %s418 = sphi %s403, %s403
                %s419 = sphi %s398, %s398
              $region88: #{autoencoder_g_forward.5} parent=84 // loop_header_branch
                %416 = sbr.rel (%p414) target = $region92
              $region89: #{autoencoder_g_forward.5} parent=84 // loop_body
                %v420 = vld [vmem:[%s418] sm:%s411]
                %421 = vst [vmem:[%s419] sm:%s411] %v420
                %v422 = vld [vmem:[%s418 + $0x8] sm:%s411]
                %423 = vst [vmem:[%s419 + $0x4] sm:%s411] %v422
                %v424 = vld [vmem:[%s418 + $0x10] sm:%s411]
                %425 = vst [vmem:[%s419 + $0x8] sm:%s411] %v424
                %v426 = vld [vmem:[%s418 + $0x18] sm:%s411]
                %427 = vst [vmem:[%s419 + $0xc] sm:%s411] %v426
                %v428 = vld [vmem:[%s418 + $0x20] sm:%s411]
                %429 = vst [vmem:[%s419 + $0x10] sm:%s411] %v428
                %v430 = vld [vmem:[%s418 + $0x28] sm:%s411]
                %431 = vst [vmem:[%s419 + $0x14] sm:%s411] %v430
                %v432 = vld [vmem:[%s418 + $0x30] sm:%s411]
                %433 = vst [vmem:[%s419 + $0x18] sm:%s411] %v432
                %v434 = vld [vmem:[%s418 + $0x38] sm:%s411]
                %435 = vst [vmem:[%s419 + $0x1c] sm:%s411] %v434
                %v436 = vld [vmem:[%s418 + $0x40] sm:%s411]
                %437 = vst [vmem:[%s419 + $0x20] sm:%s411] %v436
                %v438 = vld [vmem:[%s418 + $0x48] sm:%s411]
                %439 = vst [vmem:[%s419 + $0x24] sm:%s411] %v438
                %v440 = vld [vmem:[%s418 + $0x50] sm:%s411]
                %441 = vst [vmem:[%s419 + $0x28] sm:%s411] %v440
                %v442 = vld [vmem:[%s418 + $0x58] sm:%s411]
                %443 = vst [vmem:[%s419 + $0x2c] sm:%s411] %v442
                %v444 = vld [vmem:[%s418 + $0x60] sm:%s411]
                %445 = vst [vmem:[%s419 + $0x30] sm:%s411] %v444
                %v446 = vld [vmem:[%s418 + $0x68] sm:%s411]
                %447 = vst [vmem:[%s419 + $0x34] sm:%s411] %v446
                %v448 = vld [vmem:[%s418 + $0x70] sm:%s411]
                %449 = vst [vmem:[%s419 + $0x38] sm:%s411] %v448
                %v450 = vld [vmem:[%s418 + $0x78] sm:%s411]
                %451 = vst [vmem:[%s419 + $0x3c] sm:%s411] %v450
              $region90: #{autoencoder_g_forward.5} parent=84 // loop_footer
                %s417 = sadd.s32 1, %s413
              $region91: #{autoencoder_g_forward.5} parent=84 // loop_footer_branch
                %412 = sbr.rel target = $region87
              $region92: #{autoencoder_g_forward.5} parent=84 // loop_exit
                _
            $region85: #{autoencoder_g_forward.5} parent=76 // pred_fallthru
              _
          $region77: #{autoencoder_g_forward.5} parent=72 // pred_fallthru
            _
          %504 = vnop
        $region73: #{autoencoder_g_forward.5} parent=27 // pred_fallthru
          _
        // Predicated region
        $region111: #{autoencoder_g_forward.5} parent=27 // pred_check
          %p505 = pneg %p104
        $region112: #{autoencoder_g_forward.5} parent=27 // pred_check_branch
          %507 = sbr.rel (%p505) target = $region114
        $region113: #{autoencoder_g_forward.5} parent=27 // pred_region
          %s508 = smul.u32 16, %s24
          %p509 = scmp.lt.s32.totalorder %s508, 31
          %s510 = scalar_select %p509, %s508, 31
          %s511 = smul.addr %s510, 2
          %s512 = smul.addr %s511, 4
          %s513 = scalar_lea.vmem %s2, %s512
          %s514 = smul.u32 16, %s24
        $region114: #{autoencoder_g_forward.5} parent=27 // pred_fallthru
          _
        // Predicated region
        $region115: #{autoencoder_g_forward.5} parent=27 // pred_check
          %p515 = pneg %p130
        $region116: #{autoencoder_g_forward.5} parent=27 // pred_check_branch
          %517 = sbr.rel (%p515) target = $region118
        $region117: #{autoencoder_g_forward.5} parent=27 // pred_region
          %s518 = smul.u32 16, %s23
          %p519 = scmp.lt.s32.totalorder %s518, 31
          %s520 = scalar_select %p519, %s518, 31
          %s521 = smul.addr %s520, 2
          %s522 = smul.addr %s521, 8
          %s523 = scalar_lea.vmem %s3, %s522
          %s524 = smul.u32 16, %s23
        $region118: #{autoencoder_g_forward.5} parent=27 // pred_fallthru
          _
      $region28: #{autoencoder_g_forward.5} parent=5 // pred_fallthru
        _
      %p525 = scmp.le.s32.totalorder 1, %s16
      %p526 = scmp.lt.s32.totalorder %s16, 5
      %p527 = pnand %p525, %p526
      %p528 = pneg %p527
      // Predicated region
      $region119: #{autoencoder_g_forward.5} parent=5 // pred_check
        _
      $region120: #{autoencoder_g_forward.5} parent=5 // pred_check_branch
        %530 = sbr.rel (%p527) target = $region122
      $region121: #{autoencoder_g_forward.5} parent=5 // pred_region
        %s531 = ssub.s32 %s16, 1
        %s532 = sand.u32 %s43, 1
        %s533 = sand.u32 %s43, 1
        %s534 = smul.addr %s533, 64
        %s535 = scalar_lea.vmem [#allocation5], %s534
        // Predicated region
        $region123: #{autoencoder_g_forward.5} parent=121 // pred_check
          %p536 = pneg %p56
        $region124: #{autoencoder_g_forward.5} parent=121 // pred_check_branch
          %538 = sbr.rel (%p536) target = $region126
        $region125: #{autoencoder_g_forward.5} parent=121 // pred_region
          _
        $region126: #{autoencoder_g_forward.5} parent=121 // pred_fallthru
          _
        %s539 = sand.u32 %s71, 1
        %s540 = sand.u32 %s71, 1
        %s541 = smul.addr %s540, 64
        %s542 = scalar_lea.vmem [#allocation6], %s541
        // Predicated region
        $region127: #{autoencoder_g_forward.5} parent=121 // pred_check
          %p543 = pneg %p84
        $region128: #{autoencoder_g_forward.5} parent=121 // pred_check_branch
          %545 = sbr.rel (%p543) target = $region130
        $region129: #{autoencoder_g_forward.5} parent=121 // pred_region
          _
        $region130: #{autoencoder_g_forward.5} parent=121 // pred_fallthru
          _
        %s546 = sand.u32 %s43, 1
        %s547 = sand.u32 %s43, 1
        %s548 = smul.addr %s547, 64
        %s549 = scalar_lea.vmem [#allocation5], %s548
        %p550 = pneg %p56
        %p551 = pneg %p53
        %s552 = sand.u32 %s71, 1
        %s553 = sand.u32 %s71, 1
        %s554 = smul.addr %s553, 64
        %s555 = scalar_lea.vmem [#allocation6], %s554
        %p556 = pneg %p84
        %p557 = pneg %p81
        %s558 = smul.u32 16, %s26
        %p559 = scmp.lt.s32.totalorder %s558, 31
        %s560 = scalar_select %p559, %s558, 31
        %s561 = smul.addr %s560, 2
        %s562 = smul.addr %s561, 4
        %s563 = scalar_lea.vmem %s2, %s562
        %p564 = pneg %p110
        %p565 = pneg %p107
        %s566 = smul.u32 16, %s25
        %p567 = scmp.lt.s32.totalorder %s566, 31
        %s568 = scalar_select %p567, %s566, 31
        %s569 = smul.addr %s568, 2
        %s570 = smul.addr %s569, 8
        %s571 = scalar_lea.vmem %s3, %s570
        %p572 = pneg %p136
        %p573 = pneg %p133
        %p574 = pneg %p157
        %p575 = pneg %p154
        %p576 = pneg %p178
        %p577 = pneg %p175
        %p578 = pneg %p199
        %p579 = pneg %p196
        %p580 = pneg %p225
        %p581 = pneg %p222
        %s582 = smul.u32 16, %s25
        %p583 = scmp.lt.s32.totalorder %s582, 31
        %s584 = scalar_select %p583, %s582, 31
        %s585 = smul.addr %s584, 8
        %s586 = scalar_lea.vmem %s7, %s585
        %p587 = pneg %p251
        %p588 = pneg %p248
        %s589 = smul.u32 16, %s25
        %p590 = scmp.lt.s32.totalorder %s589, 31
        %s591 = scalar_select %p590, %s589, 31
        %s592 = smul.addr %s591, 8
        %s593 = scalar_lea.vmem %s8, %s592
        %s594 = smul.u32 16, %s25
        %s595 = smul.u32 16, %s25
        %s596 = smul.u32 16, %s26
        %p597 = scmp.lt.s32.totalorder %s596, 31
        %s598 = scalar_select %p597, %s596, 31
        %s599 = smul.addr %s598, 2
        %s600 = smul.addr %s599, 4
        %s601 = scalar_lea.vmem %s2, %s600
        %s602 = smul.u32 16, %s26
        %s603 = smul.u32 16, %s25
        %p604 = scmp.lt.s32.totalorder %s603, 31
        %s605 = scalar_select %p604, %s603, 31
        %s606 = smul.addr %s605, 2
        %s607 = smul.addr %s606, 8
        %s608 = scalar_lea.vmem %s3, %s607
        %s609 = smul.u32 16, %s25
        %s610 = smul.u32 16, %s25
        %p611 = scmp.lt.s32.totalorder %s610, 31
        %s612 = scalar_select %p611, %s610, 31
        %s613 = smul.addr %s612, 8
        %s614 = scalar_lea.vmem %s7, %s613
        %s615 = smul.u32 16, %s25
        %s616 = smul.u32 16, %s25
        %p617 = scmp.lt.s32.totalorder %s616, 31
        %s618 = scalar_select %p617, %s616, 31
        %s619 = smul.addr %s618, 8
        %s620 = scalar_lea.vmem %s8, %s619
        %s621 = smul.u32 16, %s25
        %p622 = scmp.eq.s32.totalorder %s26, 0
        // Predicated region
        $region131: #{autoencoder_g_forward.5} parent=121 // pred_check
          %p623 = pneg %p622
        $region132: #{autoencoder_g_forward.5} parent=121 // pred_check_branch
          %625 = sbr.rel (%p623) target = $region134
        $region133: #{autoencoder_g_forward.5} parent=121 // pred_region
          %626 = vst [vmem:[#allocation2] sm:$0xff] 0.0
          %627 = vst [vmem:[#allocation2 + $0x8] sm:$0xff] 0.0
          %628 = vst [vmem:[#allocation2 + $0x10] sm:$0xff] 0.0
          %629 = vst [vmem:[#allocation2 + $0x18] sm:$0xff] 0.0
          %630 = vst [vmem:[#allocation2 + $0x20] sm:$0xff] 0.0
          %631 = vst [vmem:[#allocation2 + $0x28] sm:$0xff] 0.0
          %632 = vst [vmem:[#allocation2 + $0x30] sm:$0xff] 0.0
          %633 = vst [vmem:[#allocation2 + $0x38] sm:$0xff] 0.0
          %634 = vst [vmem:[#allocation2 + $0x40] sm:$0xff] 0.0
          %635 = vst [vmem:[#allocation2 + $0x48] sm:$0xff] 0.0
          %636 = vst [vmem:[#allocation2 + $0x50] sm:$0xff] 0.0
          %637 = vst [vmem:[#allocation2 + $0x58] sm:$0xff] 0.0
          %638 = vst [vmem:[#allocation2 + $0x60] sm:$0xff] 0.0
          %639 = vst [vmem:[#allocation2 + $0x68] sm:$0xff] 0.0
          %640 = vst [vmem:[#allocation2 + $0x70] sm:$0xff] 0.0
          %641 = vst [vmem:[#allocation2 + $0x78] sm:$0xff] 0.0
          %642 = vst [vmem:[#allocation2 + $0x80] sm:$0xff] 0.0
          %643 = vst [vmem:[#allocation2 + $0x88] sm:$0xff] 0.0
          %644 = vst [vmem:[#allocation2 + $0x90] sm:$0xff] 0.0
          %645 = vst [vmem:[#allocation2 + $0x98] sm:$0xff] 0.0
          %646 = vst [vmem:[#allocation2 + $0xa0] sm:$0xff] 0.0
          %647 = vst [vmem:[#allocation2 + $0xa8] sm:$0xff] 0.0
          %648 = vst [vmem:[#allocation2 + $0xb0] sm:$0xff] 0.0
          %649 = vst [vmem:[#allocation2 + $0xb8] sm:$0xff] 0.0
          %650 = vst [vmem:[#allocation2 + $0xc0] sm:$0xff] 0.0
          %651 = vst [vmem:[#allocation2 + $0xc8] sm:$0xff] 0.0
          %652 = vst [vmem:[#allocation2 + $0xd0] sm:$0xff] 0.0
          %653 = vst [vmem:[#allocation2 + $0xd8] sm:$0xff] 0.0
          %654 = vst [vmem:[#allocation2 + $0xe0] sm:$0xff] 0.0
          %655 = vst [vmem:[#allocation2 + $0xe8] sm:$0xff] 0.0
          %656 = vst [vmem:[#allocation2 + $0xf0] sm:$0xff] 0.0
          %657 = vst [vmem:[#allocation2 + $0xf8] sm:$0xff] 0.0
          %658 = vst [vmem:[#allocation3] sm:$0xff] 0.0
          %659 = vst [vmem:[#allocation3 + $0x8] sm:$0xff] 0.0
          %660 = vst [vmem:[#allocation3 + $0x10] sm:$0xff] 0.0
          %661 = vst [vmem:[#allocation3 + $0x18] sm:$0xff] 0.0
          %662 = vst [vmem:[#allocation3 + $0x20] sm:$0xff] 0.0
          %663 = vst [vmem:[#allocation3 + $0x28] sm:$0xff] 0.0
          %664 = vst [vmem:[#allocation3 + $0x30] sm:$0xff] 0.0
          %665 = vst [vmem:[#allocation3 + $0x38] sm:$0xff] 0.0
          %666 = vst [vmem:[#allocation3 + $0x40] sm:$0xff] 0.0
          %667 = vst [vmem:[#allocation3 + $0x48] sm:$0xff] 0.0
          %668 = vst [vmem:[#allocation3 + $0x50] sm:$0xff] 0.0
          %669 = vst [vmem:[#allocation3 + $0x58] sm:$0xff] 0.0
          %670 = vst [vmem:[#allocation3 + $0x60] sm:$0xff] 0.0
          %671 = vst [vmem:[#allocation3 + $0x68] sm:$0xff] 0.0
          %672 = vst [vmem:[#allocation3 + $0x70] sm:$0xff] 0.0
          %673 = vst [vmem:[#allocation3 + $0x78] sm:$0xff] 0.0
        $region134: #{autoencoder_g_forward.5} parent=121 // pred_fallthru
          _
        %v674 = vld [vmem:[%s601] sm:$0xff]
        %v675 = vld [vmem:[%s601 + $0x8] sm:$0xff]
        %v676 = vld [vmem:[%s601 + $0x10] sm:$0xff]
        %v677 = vld [vmem:[%s601 + $0x18] sm:$0xff]
        %v678 = vld [vmem:[%s601 + $0x20] sm:$0xff]
        %v679 = vld [vmem:[%s601 + $0x28] sm:$0xff]
        %v680 = vld [vmem:[%s601 + $0x30] sm:$0xff]
        %v681 = vld [vmem:[%s601 + $0x38] sm:$0xff]
        %v682 = vld [vmem:[%s601 + $0x40] sm:$0xff]
        %v683 = vld [vmem:[%s601 + $0x48] sm:$0xff]
        %v684 = vld [vmem:[%s601 + $0x50] sm:$0xff]
        %v685 = vld [vmem:[%s601 + $0x58] sm:$0xff]
        %v686 = vld [vmem:[%s601 + $0x60] sm:$0xff]
        %v687 = vld [vmem:[%s601 + $0x68] sm:$0xff]
        %v688 = vld [vmem:[%s601 + $0x70] sm:$0xff]
        %v689 = vld [vmem:[%s601 + $0x78] sm:$0xff]
        %v690 = vunpack.c.l.bf16 %v674
        %v691 = vunpack.c.h.bf16 %v674
        %v692 = vunpack.c.l.bf16 %v675
        %v693 = vunpack.c.h.bf16 %v675
        %v694 = vunpack.c.l.bf16 %v676
        %v695 = vunpack.c.h.bf16 %v676
        %v696 = vunpack.c.l.bf16 %v677
        %v697 = vunpack.c.h.bf16 %v677
        %v698 = vunpack.c.l.bf16 %v678
        %v699 = vunpack.c.h.bf16 %v678
        %v700 = vunpack.c.l.bf16 %v679
        %v701 = vunpack.c.h.bf16 %v679
        %v702 = vunpack.c.l.bf16 %v680
        %v703 = vunpack.c.h.bf16 %v680
        %v704 = vunpack.c.l.bf16 %v681
        %v705 = vunpack.c.h.bf16 %v681
        %v706 = vunpack.c.l.bf16 %v682
        %v707 = vunpack.c.h.bf16 %v682
        %v708 = vunpack.c.l.bf16 %v683
        %v709 = vunpack.c.h.bf16 %v683
        %v710 = vunpack.c.l.bf16 %v684
        %v711 = vunpack.c.h.bf16 %v684
        %v712 = vunpack.c.l.bf16 %v685
        %v713 = vunpack.c.h.bf16 %v685
        %v714 = vunpack.c.l.bf16 %v686
        %v715 = vunpack.c.h.bf16 %v686
        %v716 = vunpack.c.l.bf16 %v687
        %v717 = vunpack.c.h.bf16 %v687
        %v718 = vunpack.c.l.bf16 %v688
        %v719 = vunpack.c.h.bf16 %v688
        %v720 = vunpack.c.l.bf16 %v689
        %v721 = vunpack.c.h.bf16 %v689
        %v722 = vmax.f32 %v690, 0.0
        %v723 = vmax.f32 %v691, 0.0
        %v724 = vmax.f32 %v692, 0.0
        %v725 = vmax.f32 %v693, 0.0
        %v726 = vmax.f32 %v694, 0.0
        %v727 = vmax.f32 %v695, 0.0
        %v728 = vmax.f32 %v696, 0.0
        %v729 = vmax.f32 %v697, 0.0
        %v730 = vmax.f32 %v698, 0.0
        %v731 = vmax.f32 %v699, 0.0
        %v732 = vmax.f32 %v700, 0.0
        %v733 = vmax.f32 %v701, 0.0
        %v734 = vmax.f32 %v702, 0.0
        %v735 = vmax.f32 %v703, 0.0
        %v736 = vmax.f32 %v704, 0.0
        %v737 = vmax.f32 %v705, 0.0
        %v738 = vmax.f32 %v706, 0.0
        %v739 = vmax.f32 %v707, 0.0
        %v740 = vmax.f32 %v708, 0.0
        %v741 = vmax.f32 %v709, 0.0
        %v742 = vmax.f32 %v710, 0.0
        %v743 = vmax.f32 %v711, 0.0
        %v744 = vmax.f32 %v712, 0.0
        %v745 = vmax.f32 %v713, 0.0
        %v746 = vmax.f32 %v714, 0.0
        %v747 = vmax.f32 %v715, 0.0
        %v748 = vmax.f32 %v716, 0.0
        %v749 = vmax.f32 %v717, 0.0
        %v750 = vmax.f32 %v718, 0.0
        %v751 = vmax.f32 %v719, 0.0
        %v752 = vmax.f32 %v720, 0.0
        %v753 = vmax.f32 %v721, 0.0
        %v754 = vpack.c.bf16 %v724, %v722
        %v755 = vpack.c.bf16 %v725, %v723
        %v756 = vpack.c.bf16 %v728, %v726
        %v757 = vpack.c.bf16 %v729, %v727
        %v758 = vpack.c.bf16 %v732, %v730
        %v759 = vpack.c.bf16 %v733, %v731
        %v760 = vpack.c.bf16 %v736, %v734
        %v761 = vpack.c.bf16 %v737, %v735
        %v762 = vpack.c.bf16 %v740, %v738
        %v763 = vpack.c.bf16 %v741, %v739
        %v764 = vpack.c.bf16 %v744, %v742
        %v765 = vpack.c.bf16 %v745, %v743
        %v766 = vpack.c.bf16 %v748, %v746
        %v767 = vpack.c.bf16 %v749, %v747
        %v768 = vpack.c.bf16 %v752, %v750
        %v769 = vpack.c.bf16 %v753, %v751
        %v770 = vld [vmem:[#allocation2] sm:$0xff]
        %v771 = vld [vmem:[#allocation2 + $0x8] sm:$0xff]
        %v772 = vld [vmem:[#allocation2 + $0x10] sm:$0xff]
        %v773 = vld [vmem:[#allocation2 + $0x18] sm:$0xff]
        %v774 = vld [vmem:[#allocation2 + $0x20] sm:$0xff]
        %v775 = vld [vmem:[#allocation2 + $0x28] sm:$0xff]
        %v776 = vld [vmem:[#allocation2 + $0x30] sm:$0xff]
        %v777 = vld [vmem:[#allocation2 + $0x38] sm:$0xff]
        %v778 = vld [vmem:[#allocation2 + $0x40] sm:$0xff]
        %v779 = vld [vmem:[#allocation2 + $0x48] sm:$0xff]
        %v780 = vld [vmem:[#allocation2 + $0x50] sm:$0xff]
        %v781 = vld [vmem:[#allocation2 + $0x58] sm:$0xff]
        %v782 = vld [vmem:[#allocation2 + $0x60] sm:$0xff]
        %v783 = vld [vmem:[#allocation2 + $0x68] sm:$0xff]
        %v784 = vld [vmem:[#allocation2 + $0x70] sm:$0xff]
        %v785 = vld [vmem:[#allocation2 + $0x78] sm:$0xff]
        %v786 = vld [vmem:[#allocation2 + $0x80] sm:$0xff]
        %v787 = vld [vmem:[#allocation2 + $0x88] sm:$0xff]
        %v788 = vld [vmem:[#allocation2 + $0x90] sm:$0xff]
        %v789 = vld [vmem:[#allocation2 + $0x98] sm:$0xff]
        %v790 = vld [vmem:[#allocation2 + $0xa0] sm:$0xff]
        %v791 = vld [vmem:[#allocation2 + $0xa8] sm:$0xff]
        %v792 = vld [vmem:[#allocation2 + $0xb0] sm:$0xff]
        %v793 = vld [vmem:[#allocation2 + $0xb8] sm:$0xff]
        %v794 = vld [vmem:[#allocation2 + $0xc0] sm:$0xff]
        %v795 = vld [vmem:[#allocation2 + $0xc8] sm:$0xff]
        %v796 = vld [vmem:[#allocation2 + $0xd0] sm:$0xff]
        %v797 = vld [vmem:[#allocation2 + $0xd8] sm:$0xff]
        %v798 = vld [vmem:[#allocation2 + $0xe0] sm:$0xff]
        %v799 = vld [vmem:[#allocation2 + $0xe8] sm:$0xff]
        %v800 = vld [vmem:[#allocation2 + $0xf0] sm:$0xff]
        %v801 = vld [vmem:[#allocation2 + $0xf8] sm:$0xff]
        %v802 = vld [vmem:[%s542] sm:$0xf]
        %v803 = vld [vmem:[%s542 + $0x4] sm:$0xf]
        %v804 = vld [vmem:[%s542 + $0x8] sm:$0xf]
        %v805 = vld [vmem:[%s542 + $0xc] sm:$0xf]
        %v806 = vld [vmem:[%s542 + $0x10] sm:$0xf]
        %v807 = vld [vmem:[%s542 + $0x14] sm:$0xf]
        %v808 = vld [vmem:[%s542 + $0x18] sm:$0xf]
        %v809 = vld [vmem:[%s542 + $0x1c] sm:$0xf]
        %v810 = vld [vmem:[%s542 + $0x20] sm:$0xf]
        %v811 = vld [vmem:[%s542 + $0x24] sm:$0xf]
        %v812 = vld [vmem:[%s542 + $0x28] sm:$0xf]
        %v813 = vld [vmem:[%s542 + $0x2c] sm:$0xf]
        %v814 = vld [vmem:[%s542 + $0x30] sm:$0xf]
        %v815 = vld [vmem:[%s542 + $0x34] sm:$0xf]
        %v816 = vld [vmem:[%s542 + $0x38] sm:$0xf]
        %v817 = vld [vmem:[%s542 + $0x3c] sm:$0xf]
        %v834 = vunpack.c.l.b16 %v802
        %v835 = vunpack.c.l.b16 %v803
        %v836 = vunpack.c.l.b16 %v804
        %v837 = vunpack.c.l.b16 %v805
        %v838 = vunpack.c.l.b16 %v806
        %v839 = vunpack.c.l.b16 %v807
        %v840 = vunpack.c.l.b16 %v808
        %v841 = vunpack.c.l.b16 %v809
        %v842 = vunpack.c.l.b16 %v810
        %v843 = vunpack.c.l.b16 %v811
        %v844 = vunpack.c.l.b16 %v812
        %v845 = vunpack.c.l.b16 %v813
        %v846 = vunpack.c.l.b16 %v814
        %v847 = vunpack.c.l.b16 %v815
        %v848 = vunpack.c.l.b16 %v816
        %v849 = vunpack.c.l.b16 %v817
        %v850 = vpack.c.b16 %v835, %v834
        %v851 = vpack.c.b16 %v837, %v836
        %v852 = vpack.c.b16 %v839, %v838
        %v853 = vpack.c.b16 %v841, %v840
        %v854 = vpack.c.b16 %v843, %v842
        %v855 = vpack.c.b16 %v845, %v844
        %v856 = vpack.c.b16 %v847, %v846
        %v857 = vpack.c.b16 %v849, %v848
        %866 = vmatpush.bf16.msra.mxu0 %v768
        %867 = vmatpush.bf16.msra.mxu0 %v766
        %868 = vmatpush.bf16.msra.mxu0 %v764
        %869 = vmatpush.bf16.msra.mxu0 %v762
        %870 = vmatpush.bf16.msra.mxu0 %v760
        %871 = vmatpush.bf16.msra.mxu0 %v758
        %872 = vmatpush.bf16.msra.mxu0 %v756
        %873 = vmatpush.bf16.msra.mxu0 %v754
        %874 = vmatmul.bf16.gmra.mxu0 %v850
        %v875 = vpop.f32.mrf.mxu0
        %v876 = vadd.f32 0.0, %v875
        %v877 = vpop.f32.mrf.mxu0
        %v878 = vadd.f32 0.0, %v877
        %879 = vmatmul.bf16.gmra.mxu0 %v851
        %v880 = vpop.f32.mrf.mxu0
        %v881 = vadd.f32 0.0, %v880
        %v882 = vpop.f32.mrf.mxu0
        %v883 = vadd.f32 0.0, %v882
        %884 = vmatmul.bf16.gmra.mxu0 %v852
        %v885 = vpop.f32.mrf.mxu0
        %v886 = vadd.f32 0.0, %v885
        %v887 = vpop.f32.mrf.mxu0
        %v888 = vadd.f32 0.0, %v887
        %889 = vmatmul.bf16.gmra.mxu0 %v853
        %v890 = vpop.f32.mrf.mxu0
        %v891 = vadd.f32 0.0, %v890
        %v892 = vpop.f32.mrf.mxu0
        %v893 = vadd.f32 0.0, %v892
        %894 = vmatmul.bf16.gmra.mxu0 %v854
        %v895 = vpop.f32.mrf.mxu0
        %v896 = vadd.f32 0.0, %v895
        %v897 = vpop.f32.mrf.mxu0
        %v898 = vadd.f32 0.0, %v897
        %899 = vmatmul.bf16.gmra.mxu0 %v855
        %v900 = vpop.f32.mrf.mxu0
        %v901 = vadd.f32 0.0, %v900
        %v902 = vpop.f32.mrf.mxu0
        %v903 = vadd.f32 0.0, %v902
        %904 = vmatmul.bf16.gmra.mxu0 %v856
        %v905 = vpop.f32.mrf.mxu0
        %v906 = vadd.f32 0.0, %v905
        %v907 = vpop.f32.mrf.mxu0
        %v908 = vadd.f32 0.0, %v907
        %909 = vmatmul.bf16.gmra.mxu0 %v857
        %v910 = vpop.f32.mrf.mxu0
        %v911 = vadd.f32 0.0, %v910
        %v912 = vpop.f32.mrf.mxu0
        %v913 = vadd.f32 0.0, %v912
        %914 = vdwg.mxu0
        %915 = vmatpush.bf16.msra.mxu0 %v769
        %916 = vmatpush.bf16.msra.mxu0 %v767
        %917 = vmatpush.bf16.msra.mxu0 %v765
        %918 = vmatpush.bf16.msra.mxu0 %v763
        %919 = vmatpush.bf16.msra.mxu0 %v761
        %920 = vmatpush.bf16.msra.mxu0 %v759
        %921 = vmatpush.bf16.msra.mxu0 %v757
        %922 = vmatpush.bf16.msra.mxu0 %v755
        %923 = vmatmul.bf16.gmra.mxu0 %v850
        %v924 = vpop.f32.mrf.mxu0
        %v925 = vadd.f32 0.0, %v924
        %v926 = vpop.f32.mrf.mxu0
        %v927 = vadd.f32 0.0, %v926
        %928 = vmatmul.bf16.gmra.mxu0 %v851
        %v929 = vpop.f32.mrf.mxu0
        %v930 = vadd.f32 0.0, %v929
        %v931 = vpop.f32.mrf.mxu0
        %v932 = vadd.f32 0.0, %v931
        %933 = vmatmul.bf16.gmra.mxu0 %v852
        %v934 = vpop.f32.mrf.mxu0
        %v935 = vadd.f32 0.0, %v934
        %v936 = vpop.f32.mrf.mxu0
        %v937 = vadd.f32 0.0, %v936
        %938 = vmatmul.bf16.gmra.mxu0 %v853
        %v939 = vpop.f32.mrf.mxu0
        %v940 = vadd.f32 0.0, %v939
        %v941 = vpop.f32.mrf.mxu0
        %v942 = vadd.f32 0.0, %v941
        %943 = vmatmul.bf16.gmra.mxu0 %v854
        %v944 = vpop.f32.mrf.mxu0
        %v945 = vadd.f32 0.0, %v944
        %v946 = vpop.f32.mrf.mxu0
        %v947 = vadd.f32 0.0, %v946
        %948 = vmatmul.bf16.gmra.mxu0 %v855
        %v949 = vpop.f32.mrf.mxu0
        %v950 = vadd.f32 0.0, %v949
        %v951 = vpop.f32.mrf.mxu0
        %v952 = vadd.f32 0.0, %v951
        %953 = vmatmul.bf16.gmra.mxu0 %v856
        %v954 = vpop.f32.mrf.mxu0
        %v955 = vadd.f32 0.0, %v954
        %v956 = vpop.f32.mrf.mxu0
        %v957 = vadd.f32 0.0, %v956
        %958 = vmatmul.bf16.gmra.mxu0 %v857
        %v959 = vpop.f32.mrf.mxu0
        %v960 = vadd.f32 0.0, %v959
        %v961 = vpop.f32.mrf.mxu0
        %v962 = vadd.f32 0.0, %v961
        %963 = vdwg.mxu0
        %v964 = vadd.f32 %v770, %v876
        %v965 = vadd.f32 %v771, %v925
        %v966 = vadd.f32 %v772, %v878
        %v967 = vadd.f32 %v773, %v927
        %v968 = vadd.f32 %v774, %v881
        %v969 = vadd.f32 %v775, %v930
        %v970 = vadd.f32 %v776, %v883
        %v971 = vadd.f32 %v777, %v932
        %v972 = vadd.f32 %v778, %v886
        %v973 = vadd.f32 %v779, %v935
        %v974 = vadd.f32 %v780, %v888
        %v975 = vadd.f32 %v781, %v937
        %v976 = vadd.f32 %v782, %v891
        %v977 = vadd.f32 %v783, %v940
        %v978 = vadd.f32 %v784, %v893
        %v979 = vadd.f32 %v785, %v942
        %v980 = vadd.f32 %v786, %v896
        %v981 = vadd.f32 %v787, %v945
        %v982 = vadd.f32 %v788, %v898
        %v983 = vadd.f32 %v789, %v947
        %v984 = vadd.f32 %v790, %v901
        %v985 = vadd.f32 %v791, %v950
        %v986 = vadd.f32 %v792, %v903
        %v987 = vadd.f32 %v793, %v952
        %v988 = vadd.f32 %v794, %v906
        %v989 = vadd.f32 %v795, %v955
        %v990 = vadd.f32 %v796, %v908
        %v991 = vadd.f32 %v797, %v957
        %v992 = vadd.f32 %v798, %v911
        %v993 = vadd.f32 %v799, %v960
        %v994 = vadd.f32 %v800, %v913
        %v995 = vadd.f32 %v801, %v962
        %996 = vst [vmem:[#allocation2] sm:$0xff] %v964
        %997 = vst [vmem:[#allocation2 + $0x8] sm:$0xff] %v965
        %998 = vst [vmem:[#allocation2 + $0x10] sm:$0xff] %v966
        %999 = vst [vmem:[#allocation2 + $0x18] sm:$0xff] %v967
        %1000 = vst [vmem:[#allocation2 + $0x20] sm:$0xff] %v968
        %1001 = vst [vmem:[#allocation2 + $0x28] sm:$0xff] %v969
        %1002 = vst [vmem:[#allocation2 + $0x30] sm:$0xff] %v970
        %1003 = vst [vmem:[#allocation2 + $0x38] sm:$0xff] %v971
        %1004 = vst [vmem:[#allocation2 + $0x40] sm:$0xff] %v972
        %1005 = vst [vmem:[#allocation2 + $0x48] sm:$0xff] %v973
        %1006 = vst [vmem:[#allocation2 + $0x50] sm:$0xff] %v974
        %1007 = vst [vmem:[#allocation2 + $0x58] sm:$0xff] %v975
        %1008 = vst [vmem:[#allocation2 + $0x60] sm:$0xff] %v976
        %1009 = vst [vmem:[#allocation2 + $0x68] sm:$0xff] %v977
        %1010 = vst [vmem:[#allocation2 + $0x70] sm:$0xff] %v978
        %1011 = vst [vmem:[#allocation2 + $0x78] sm:$0xff] %v979
        %1012 = vst [vmem:[#allocation2 + $0x80] sm:$0xff] %v980
        %1013 = vst [vmem:[#allocation2 + $0x88] sm:$0xff] %v981
        %1014 = vst [vmem:[#allocation2 + $0x90] sm:$0xff] %v982
        %1015 = vst [vmem:[#allocation2 + $0x98] sm:$0xff] %v983
        %1016 = vst [vmem:[#allocation2 + $0xa0] sm:$0xff] %v984
        %1017 = vst [vmem:[#allocation2 + $0xa8] sm:$0xff] %v985
        %1018 = vst [vmem:[#allocation2 + $0xb0] sm:$0xff] %v986
        %1019 = vst [vmem:[#allocation2 + $0xb8] sm:$0xff] %v987
        %1020 = vst [vmem:[#allocation2 + $0xc0] sm:$0xff] %v988
        %1021 = vst [vmem:[#allocation2 + $0xc8] sm:$0xff] %v989
        %1022 = vst [vmem:[#allocation2 + $0xd0] sm:$0xff] %v990
        %1023 = vst [vmem:[#allocation2 + $0xd8] sm:$0xff] %v991
        %1024 = vst [vmem:[#allocation2 + $0xe0] sm:$0xff] %v992
        %1025 = vst [vmem:[#allocation2 + $0xe8] sm:$0xff] %v993
        %1026 = vst [vmem:[#allocation2 + $0xf0] sm:$0xff] %v994
        %1027 = vst [vmem:[#allocation2 + $0xf8] sm:$0xff] %v995
        %v1028 = vld [vmem:[#allocation3] sm:$0xff]
        %v1029 = vld [vmem:[#allocation3 + $0x8] sm:$0xff]
        %v1030 = vld [vmem:[#allocation3 + $0x10] sm:$0xff]
        %v1031 = vld [vmem:[#allocation3 + $0x18] sm:$0xff]
        %v1032 = vld [vmem:[#allocation3 + $0x20] sm:$0xff]
        %v1033 = vld [vmem:[#allocation3 + $0x28] sm:$0xff]
        %v1034 = vld [vmem:[#allocation3 + $0x30] sm:$0xff]
        %v1035 = vld [vmem:[#allocation3 + $0x38] sm:$0xff]
        %v1036 = vld [vmem:[#allocation3 + $0x40] sm:$0xff]
        %v1037 = vld [vmem:[#allocation3 + $0x48] sm:$0xff]
        %v1038 = vld [vmem:[#allocation3 + $0x50] sm:$0xff]
        %v1039 = vld [vmem:[#allocation3 + $0x58] sm:$0xff]
        %v1040 = vld [vmem:[#allocation3 + $0x60] sm:$0xff]
        %v1041 = vld [vmem:[#allocation3 + $0x68] sm:$0xff]
        %v1042 = vld [vmem:[#allocation3 + $0x70] sm:$0xff]
        %v1043 = vld [vmem:[#allocation3 + $0x78] sm:$0xff]
        %v1044 = vld [vmem:[%s535] sm:$0xf]
        %v1045 = vld [vmem:[%s535 + $0x4] sm:$0xf]
        %v1046 = vld [vmem:[%s535 + $0x8] sm:$0xf]
        %v1047 = vld [vmem:[%s535 + $0xc] sm:$0xf]
        %v1048 = vld [vmem:[%s535 + $0x10] sm:$0xf]
        %v1049 = vld [vmem:[%s535 + $0x14] sm:$0xf]
        %v1050 = vld [vmem:[%s535 + $0x18] sm:$0xf]
        %v1051 = vld [vmem:[%s535 + $0x1c] sm:$0xf]
        %v1052 = vld [vmem:[%s535 + $0x20] sm:$0xf]
        %v1053 = vld [vmem:[%s535 + $0x24] sm:$0xf]
        %v1054 = vld [vmem:[%s535 + $0x28] sm:$0xf]
        %v1055 = vld [vmem:[%s535 + $0x2c] sm:$0xf]
        %v1056 = vld [vmem:[%s535 + $0x30] sm:$0xf]
        %v1057 = vld [vmem:[%s535 + $0x34] sm:$0xf]
        %v1058 = vld [vmem:[%s535 + $0x38] sm:$0xf]
        %v1059 = vld [vmem:[%s535 + $0x3c] sm:$0xf]
        %v1076 = vunpack.c.l.b16 %v1044
        %v1077 = vunpack.c.l.b16 %v1045
        %v1078 = vunpack.c.l.b16 %v1046
        %v1079 = vunpack.c.l.b16 %v1047
        %v1080 = vunpack.c.l.b16 %v1048
        %v1081 = vunpack.c.l.b16 %v1049
        %v1082 = vunpack.c.l.b16 %v1050
        %v1083 = vunpack.c.l.b16 %v1051
        %v1084 = vunpack.c.l.b16 %v1052
        %v1085 = vunpack.c.l.b16 %v1053
        %v1086 = vunpack.c.l.b16 %v1054
        %v1087 = vunpack.c.l.b16 %v1055
        %v1088 = vunpack.c.l.b16 %v1056
        %v1089 = vunpack.c.l.b16 %v1057
        %v1090 = vunpack.c.l.b16 %v1058
        %v1091 = vunpack.c.l.b16 %v1059
        %v1092 = vpack.c.b16 %v1077, %v1076
        %v1093 = vpack.c.b16 %v1079, %v1078
        %v1094 = vpack.c.b16 %v1081, %v1080
        %v1095 = vpack.c.b16 %v1083, %v1082
        %v1096 = vpack.c.b16 %v1085, %v1084
        %v1097 = vpack.c.b16 %v1087, %v1086
        %v1098 = vpack.c.b16 %v1089, %v1088
        %v1099 = vpack.c.b16 %v1091, %v1090
        %v1124 = vunpack.c.l.b16 %v674
        %v1125 = vunpack.c.l.b16 %v675
        %v1126 = vunpack.c.l.b16 %v676
        %v1127 = vunpack.c.l.b16 %v677
        %v1128 = vunpack.c.l.b16 %v678
        %v1129 = vunpack.c.l.b16 %v679
        %v1130 = vunpack.c.l.b16 %v680
        %v1131 = vunpack.c.l.b16 %v681
        %v1132 = vunpack.c.l.b16 %v682
        %v1133 = vunpack.c.l.b16 %v683
        %v1134 = vunpack.c.l.b16 %v684
        %v1135 = vunpack.c.l.b16 %v685
        %v1136 = vunpack.c.l.b16 %v686
        %v1137 = vunpack.c.l.b16 %v687
        %v1138 = vunpack.c.l.b16 %v688
        %v1139 = vunpack.c.l.b16 %v689
        %v1140 = vpack.c.b16 %v1125, %v1124
        %v1141 = vpack.c.b16 %v1127, %v1126
        %v1142 = vpack.c.b16 %v1129, %v1128
        %v1143 = vpack.c.b16 %v1131, %v1130
        %v1144 = vpack.c.b16 %v1133, %v1132
        %v1145 = vpack.c.b16 %v1135, %v1134
        %v1146 = vpack.c.b16 %v1137, %v1136
        %v1147 = vpack.c.b16 %v1139, %v1138
        %1156 = vmatpush.bf16.msra.mxu0 %v1147
        %1157 = vmatpush.bf16.msra.mxu0 %v1146
        %1158 = vmatpush.bf16.msra.mxu0 %v1145
        %1159 = vmatpush.bf16.msra.mxu0 %v1144
        %1160 = vmatpush.bf16.msra.mxu0 %v1143
        %1161 = vmatpush.bf16.msra.mxu0 %v1142
        %1162 = vmatpush.bf16.msra.mxu0 %v1141
        %1163 = vmatpush.bf16.msra.mxu0 %v1140
        %1164 = vmatmul.bf16.gmra.mxu0 %v1092
        %v1165 = vpop.f32.mrf.mxu0
        %v1166 = vadd.f32 0.0, %v1165
        %v1167 = vpop.f32.mrf.mxu0
        %v1168 = vadd.f32 0.0, %v1167
        %1169 = vmatmul.bf16.gmra.mxu0 %v1093
        %v1170 = vpop.f32.mrf.mxu0
        %v1171 = vadd.f32 0.0, %v1170
        %v1172 = vpop.f32.mrf.mxu0
        %v1173 = vadd.f32 0.0, %v1172
        %1174 = vmatmul.bf16.gmra.mxu0 %v1094
        %v1175 = vpop.f32.mrf.mxu0
        %v1176 = vadd.f32 0.0, %v1175
        %v1177 = vpop.f32.mrf.mxu0
        %v1178 = vadd.f32 0.0, %v1177
        %1179 = vmatmul.bf16.gmra.mxu0 %v1095
        %v1180 = vpop.f32.mrf.mxu0
        %v1181 = vadd.f32 0.0, %v1180
        %v1182 = vpop.f32.mrf.mxu0
        %v1183 = vadd.f32 0.0, %v1182
        %1184 = vmatmul.bf16.gmra.mxu0 %v1096
        %v1185 = vpop.f32.mrf.mxu0
        %v1186 = vadd.f32 0.0, %v1185
        %v1187 = vpop.f32.mrf.mxu0
        %v1188 = vadd.f32 0.0, %v1187
        %1189 = vmatmul.bf16.gmra.mxu0 %v1097
        %v1190 = vpop.f32.mrf.mxu0
        %v1191 = vadd.f32 0.0, %v1190
        %v1192 = vpop.f32.mrf.mxu0
        %v1193 = vadd.f32 0.0, %v1192
        %1194 = vmatmul.bf16.gmra.mxu0 %v1098
        %v1195 = vpop.f32.mrf.mxu0
        %v1196 = vadd.f32 0.0, %v1195
        %v1197 = vpop.f32.mrf.mxu0
        %v1198 = vadd.f32 0.0, %v1197
        %1199 = vmatmul.bf16.gmra.mxu0 %v1099
        %v1200 = vpop.f32.mrf.mxu0
        %v1201 = vadd.f32 0.0, %v1200
        %v1202 = vpop.f32.mrf.mxu0
        %v1203 = vadd.f32 0.0, %v1202
        %1204 = vdwg.mxu0
        %v1205 = vadd.f32 %v1028, %v1166
        %v1206 = vadd.f32 %v1029, %v1168
        %v1207 = vadd.f32 %v1030, %v1171
        %v1208 = vadd.f32 %v1031, %v1173
        %v1209 = vadd.f32 %v1032, %v1176
        %v1210 = vadd.f32 %v1033, %v1178
        %v1211 = vadd.f32 %v1034, %v1181
        %v1212 = vadd.f32 %v1035, %v1183
        %v1213 = vadd.f32 %v1036, %v1186
        %v1214 = vadd.f32 %v1037, %v1188
        %v1215 = vadd.f32 %v1038, %v1191
        %v1216 = vadd.f32 %v1039, %v1193
        %v1217 = vadd.f32 %v1040, %v1196
        %v1218 = vadd.f32 %v1041, %v1198
        %v1219 = vadd.f32 %v1042, %v1201
        %v1220 = vadd.f32 %v1043, %v1203
        %1221 = vst [vmem:[#allocation3] sm:$0xff] %v1205
        %1222 = vst [vmem:[#allocation3 + $0x8] sm:$0xff] %v1206
        %1223 = vst [vmem:[#allocation3 + $0x10] sm:$0xff] %v1207
        %1224 = vst [vmem:[#allocation3 + $0x18] sm:$0xff] %v1208
        %1225 = vst [vmem:[#allocation3 + $0x20] sm:$0xff] %v1209
        %1226 = vst [vmem:[#allocation3 + $0x28] sm:$0xff] %v1210
        %1227 = vst [vmem:[#allocation3 + $0x30] sm:$0xff] %v1211
        %1228 = vst [vmem:[#allocation3 + $0x38] sm:$0xff] %v1212
        %1229 = vst [vmem:[#allocation3 + $0x40] sm:$0xff] %v1213
        %1230 = vst [vmem:[#allocation3 + $0x48] sm:$0xff] %v1214
        %1231 = vst [vmem:[#allocation3 + $0x50] sm:$0xff] %v1215
        %1232 = vst [vmem:[#allocation3 + $0x58] sm:$0xff] %v1216
        %1233 = vst [vmem:[#allocation3 + $0x60] sm:$0xff] %v1217
        %1234 = vst [vmem:[#allocation3 + $0x68] sm:$0xff] %v1218
        %1235 = vst [vmem:[#allocation3 + $0x70] sm:$0xff] %v1219
        %1236 = vst [vmem:[#allocation3 + $0x78] sm:$0xff] %v1220
        %p1237 = scmp.eq.s32.totalorder %s26, 1
        // Predicated region
        $region135: #{autoencoder_g_forward.5} parent=121 // pred_check
          %p1238 = pneg %p1237
        $region136: #{autoencoder_g_forward.5} parent=121 // pred_check_branch
          %1240 = sbr.rel (%p1238) target = $region138
        $region137: #{autoencoder_g_forward.5} parent=121 // pred_region
          %v1241 = vld [vmem:[#allocation2] sm:$0xff]
          %v1242 = vld [vmem:[#allocation2 + $0x10] sm:$0xff]
          %v1243 = vld [vmem:[#allocation2 + $0x20] sm:$0xff]
          %v1244 = vld [vmem:[#allocation2 + $0x30] sm:$0xff]
          %v1245 = vld [vmem:[#allocation2 + $0x40] sm:$0xff]
          %v1246 = vld [vmem:[#allocation2 + $0x50] sm:$0xff]
          %v1247 = vld [vmem:[#allocation2 + $0x60] sm:$0xff]
          %v1248 = vld [vmem:[#allocation2 + $0x70] sm:$0xff]
          %v1249 = vld [vmem:[#allocation2 + $0x80] sm:$0xff]
          %v1250 = vld [vmem:[#allocation2 + $0x90] sm:$0xff]
          %v1251 = vld [vmem:[#allocation2 + $0xa0] sm:$0xff]
          %v1252 = vld [vmem:[#allocation2 + $0xb0] sm:$0xff]
          %v1253 = vld [vmem:[#allocation2 + $0xc0] sm:$0xff]
          %v1254 = vld [vmem:[#allocation2 + $0xd0] sm:$0xff]
          %v1255 = vld [vmem:[#allocation2 + $0xe0] sm:$0xff]
          %v1256 = vld [vmem:[#allocation2 + $0xf0] sm:$0xff]
          %v1257 = vmul.f32 %v1241, %v1241
          %v1258 = vmul.f32 %v1242, %v1242
          %v1259 = vmul.f32 %v1243, %v1243
          %v1260 = vmul.f32 %v1244, %v1244
          %v1261 = vmul.f32 %v1245, %v1245
          %v1262 = vmul.f32 %v1246, %v1246
          %v1263 = vmul.f32 %v1247, %v1247
          %v1264 = vmul.f32 %v1248, %v1248
          %v1265 = vmul.f32 %v1249, %v1249
          %v1266 = vmul.f32 %v1250, %v1250
          %v1267 = vmul.f32 %v1251, %v1251
          %v1268 = vmul.f32 %v1252, %v1252
          %v1269 = vmul.f32 %v1253, %v1253
          %v1270 = vmul.f32 %v1254, %v1254
          %v1271 = vmul.f32 %v1255, %v1255
          %v1272 = vmul.f32 %v1256, %v1256
          %1273 = vadd.xlane.f32.xlu0 %v1257
          %v1274 = vpop.xlane.xlu0 %1273
          %1275 = vadd.xlane.f32.xlu0 %v1258
          %v1276 = vpop.xlane.xlu0 %1275
          %1277 = vadd.xlane.f32.xlu0 %v1259
          %v1278 = vpop.xlane.xlu0 %1277
          %1279 = vadd.xlane.f32.xlu0 %v1260
          %v1280 = vpop.xlane.xlu0 %1279
          %1281 = vadd.xlane.f32.xlu0 %v1261
          %v1282 = vpop.xlane.xlu0 %1281
          %1283 = vadd.xlane.f32.xlu0 %v1262
          %v1284 = vpop.xlane.xlu0 %1283
          %1285 = vadd.xlane.f32.xlu0 %v1263
          %v1286 = vpop.xlane.xlu0 %1285
          %1287 = vadd.xlane.f32.xlu0 %v1264
          %v1288 = vpop.xlane.xlu0 %1287
          %1289 = vadd.xlane.f32.xlu0 %v1265
          %v1290 = vpop.xlane.xlu0 %1289
          %1291 = vadd.xlane.f32.xlu0 %v1266
          %v1292 = vpop.xlane.xlu0 %1291
          %1293 = vadd.xlane.f32.xlu0 %v1267
          %v1294 = vpop.xlane.xlu0 %1293
          %1295 = vadd.xlane.f32.xlu0 %v1268
          %v1296 = vpop.xlane.xlu0 %1295
          %1297 = vadd.xlane.f32.xlu0 %v1269
          %v1298 = vpop.xlane.xlu0 %1297
          %1299 = vadd.xlane.f32.xlu0 %v1270
          %v1300 = vpop.xlane.xlu0 %1299
          %1301 = vadd.xlane.f32.xlu0 %v1271
          %v1302 = vpop.xlane.xlu0 %1301
          %1303 = vadd.xlane.f32.xlu0 %v1272
          %v1304 = vpop.xlane.xlu0 %1303
          %v1305 = vmax.f32 %v1274, 1e-24
          %v1306 = vmax.f32 %v1276, 1e-24
          %v1307 = vmax.f32 %v1278, 1e-24
          %v1308 = vmax.f32 %v1280, 1e-24
          %v1309 = vmax.f32 %v1282, 1e-24
          %v1310 = vmax.f32 %v1284, 1e-24
          %v1311 = vmax.f32 %v1286, 1e-24
          %v1312 = vmax.f32 %v1288, 1e-24
          %v1313 = vmax.f32 %v1290, 1e-24
          %v1314 = vmax.f32 %v1292, 1e-24
          %v1315 = vmax.f32 %v1294, 1e-24
          %v1316 = vmax.f32 %v1296, 1e-24
          %v1317 = vmax.f32 %v1298, 1e-24
          %v1318 = vmax.f32 %v1300, 1e-24
          %v1319 = vmax.f32 %v1302, 1e-24
          %v1320 = vmax.f32 %v1304, 1e-24
          %v1321 = vrsqrt.pop %v1305
          %v1322 = vmul.f32 %v1321, %v1305
          %v1323 = vmul.f32 %v1322, %v1321
          %v1324 = vmul.f32 0.5, %v1323
          %v1325 = vsub.f32 1.5, %v1324
          %v1326 = vmul.f32 %v1321, %v1325
          %vm1327 = vweird.f32 %v1305
          %vm1328 = vweird.f32 %v1321
          %vm1329 = vmor %vm1327, %vm1328
          %v1330 = vsel %vm1329, %v1321, %v1326
          %v1331 = vrsqrt.pop %v1306
          %v1332 = vmul.f32 %v1331, %v1306
          %v1333 = vmul.f32 %v1332, %v1331
          %v1334 = vmul.f32 0.5, %v1333
          %v1335 = vsub.f32 1.5, %v1334
          %v1336 = vmul.f32 %v1331, %v1335
          %vm1337 = vweird.f32 %v1306
          %vm1338 = vweird.f32 %v1331
          %vm1339 = vmor %vm1337, %vm1338
          %v1340 = vsel %vm1339, %v1331, %v1336
          %v1341 = vrsqrt.pop %v1307
          %v1342 = vmul.f32 %v1341, %v1307
          %v1343 = vmul.f32 %v1342, %v1341
          %v1344 = vmul.f32 0.5, %v1343
          %v1345 = vsub.f32 1.5, %v1344
          %v1346 = vmul.f32 %v1341, %v1345
          %vm1347 = vweird.f32 %v1307
          %vm1348 = vweird.f32 %v1341
          %vm1349 = vmor %vm1347, %vm1348
          %v1350 = vsel %vm1349, %v1341, %v1346
          %v1351 = vrsqrt.pop %v1308
          %v1352 = vmul.f32 %v1351, %v1308
          %v1353 = vmul.f32 %v1352, %v1351
          %v1354 = vmul.f32 0.5, %v1353
          %v1355 = vsub.f32 1.5, %v1354
          %v1356 = vmul.f32 %v1351, %v1355
          %vm1357 = vweird.f32 %v1308
          %vm1358 = vweird.f32 %v1351
          %vm1359 = vmor %vm1357, %vm1358
          %v1360 = vsel %vm1359, %v1351, %v1356
          %v1361 = vrsqrt.pop %v1309
          %v1362 = vmul.f32 %v1361, %v1309
          %v1363 = vmul.f32 %v1362, %v1361
          %v1364 = vmul.f32 0.5, %v1363
          %v1365 = vsub.f32 1.5, %v1364
          %v1366 = vmul.f32 %v1361, %v1365
          %vm1367 = vweird.f32 %v1309
          %vm1368 = vweird.f32 %v1361
          %vm1369 = vmor %vm1367, %vm1368
          %v1370 = vsel %vm1369, %v1361, %v1366
          %v1371 = vrsqrt.pop %v1310
          %v1372 = vmul.f32 %v1371, %v1310
          %v1373 = vmul.f32 %v1372, %v1371
          %v1374 = vmul.f32 0.5, %v1373
          %v1375 = vsub.f32 1.5, %v1374
          %v1376 = vmul.f32 %v1371, %v1375
          %vm1377 = vweird.f32 %v1310
          %vm1378 = vweird.f32 %v1371
          %vm1379 = vmor %vm1377, %vm1378
          %v1380 = vsel %vm1379, %v1371, %v1376
          %v1381 = vrsqrt.pop %v1311
          %v1382 = vmul.f32 %v1381, %v1311
          %v1383 = vmul.f32 %v1382, %v1381
          %v1384 = vmul.f32 0.5, %v1383
          %v1385 = vsub.f32 1.5, %v1384
          %v1386 = vmul.f32 %v1381, %v1385
          %vm1387 = vweird.f32 %v1311
          %vm1388 = vweird.f32 %v1381
          %vm1389 = vmor %vm1387, %vm1388
          %v1390 = vsel %vm1389, %v1381, %v1386
          %v1391 = vrsqrt.pop %v1312
          %v1392 = vmul.f32 %v1391, %v1312
          %v1393 = vmul.f32 %v1392, %v1391
          %v1394 = vmul.f32 0.5, %v1393
          %v1395 = vsub.f32 1.5, %v1394
          %v1396 = vmul.f32 %v1391, %v1395
          %vm1397 = vweird.f32 %v1312
          %vm1398 = vweird.f32 %v1391
          %vm1399 = vmor %vm1397, %vm1398
          %v1400 = vsel %vm1399, %v1391, %v1396
          %v1401 = vrsqrt.pop %v1313
          %v1402 = vmul.f32 %v1401, %v1313
          %v1403 = vmul.f32 %v1402, %v1401
          %v1404 = vmul.f32 0.5, %v1403
          %v1405 = vsub.f32 1.5, %v1404
          %v1406 = vmul.f32 %v1401, %v1405
          %vm1407 = vweird.f32 %v1313
          %vm1408 = vweird.f32 %v1401
          %vm1409 = vmor %vm1407, %vm1408
          %v1410 = vsel %vm1409, %v1401, %v1406
          %v1411 = vrsqrt.pop %v1314
          %v1412 = vmul.f32 %v1411, %v1314
          %v1413 = vmul.f32 %v1412, %v1411
          %v1414 = vmul.f32 0.5, %v1413
          %v1415 = vsub.f32 1.5, %v1414
          %v1416 = vmul.f32 %v1411, %v1415
          %vm1417 = vweird.f32 %v1314
          %vm1418 = vweird.f32 %v1411
          %vm1419 = vmor %vm1417, %vm1418
          %v1420 = vsel %vm1419, %v1411, %v1416
          %v1421 = vrsqrt.pop %v1315
          %v1422 = vmul.f32 %v1421, %v1315
          %v1423 = vmul.f32 %v1422, %v1421
          %v1424 = vmul.f32 0.5, %v1423
          %v1425 = vsub.f32 1.5, %v1424
          %v1426 = vmul.f32 %v1421, %v1425
          %vm1427 = vweird.f32 %v1315
          %vm1428 = vweird.f32 %v1421
          %vm1429 = vmor %vm1427, %vm1428
          %v1430 = vsel %vm1429, %v1421, %v1426
          %v1431 = vrsqrt.pop %v1316
          %v1432 = vmul.f32 %v1431, %v1316
          %v1433 = vmul.f32 %v1432, %v1431
          %v1434 = vmul.f32 0.5, %v1433
          %v1435 = vsub.f32 1.5, %v1434
          %v1436 = vmul.f32 %v1431, %v1435
          %vm1437 = vweird.f32 %v1316
          %vm1438 = vweird.f32 %v1431
          %vm1439 = vmor %vm1437, %vm1438
          %v1440 = vsel %vm1439, %v1431, %v1436
          %v1441 = vrsqrt.pop %v1317
          %v1442 = vmul.f32 %v1441, %v1317
          %v1443 = vmul.f32 %v1442, %v1441
          %v1444 = vmul.f32 0.5, %v1443
          %v1445 = vsub.f32 1.5, %v1444
          %v1446 = vmul.f32 %v1441, %v1445
          %vm1447 = vweird.f32 %v1317
          %vm1448 = vweird.f32 %v1441
          %vm1449 = vmor %vm1447, %vm1448
          %v1450 = vsel %vm1449, %v1441, %v1446
          %v1451 = vrsqrt.pop %v1318
          %v1452 = vmul.f32 %v1451, %v1318
          %v1453 = vmul.f32 %v1452, %v1451
          %v1454 = vmul.f32 0.5, %v1453
          %v1455 = vsub.f32 1.5, %v1454
          %v1456 = vmul.f32 %v1451, %v1455
          %vm1457 = vweird.f32 %v1318
          %vm1458 = vweird.f32 %v1451
          %vm1459 = vmor %vm1457, %vm1458
          %v1460 = vsel %vm1459, %v1451, %v1456
          %v1461 = vrsqrt.pop %v1319
          %v1462 = vmul.f32 %v1461, %v1319
          %v1463 = vmul.f32 %v1462, %v1461
          %v1464 = vmul.f32 0.5, %v1463
          %v1465 = vsub.f32 1.5, %v1464
          %v1466 = vmul.f32 %v1461, %v1465
          %vm1467 = vweird.f32 %v1319
          %vm1468 = vweird.f32 %v1461
          %vm1469 = vmor %vm1467, %vm1468
          %v1470 = vsel %vm1469, %v1461, %v1466
          %v1471 = vrsqrt.pop %v1320
          %v1472 = vmul.f32 %v1471, %v1320
          %v1473 = vmul.f32 %v1472, %v1471
          %v1474 = vmul.f32 0.5, %v1473
          %v1475 = vsub.f32 1.5, %v1474
          %v1476 = vmul.f32 %v1471, %v1475
          %vm1477 = vweird.f32 %v1320
          %vm1478 = vweird.f32 %v1471
          %vm1479 = vmor %vm1477, %vm1478
          %v1480 = vsel %vm1479, %v1471, %v1476
          %v1481 = vmul.f32 %v1241, %v1330
          %v1482 = vmul.f32 %v1242, %v1340
          %v1483 = vmul.f32 %v1243, %v1350
          %v1484 = vmul.f32 %v1244, %v1360
          %v1485 = vmul.f32 %v1245, %v1370
          %v1486 = vmul.f32 %v1246, %v1380
          %v1487 = vmul.f32 %v1247, %v1390
          %v1488 = vmul.f32 %v1248, %v1400
          %v1489 = vmul.f32 %v1249, %v1410
          %v1490 = vmul.f32 %v1250, %v1420
          %v1491 = vmul.f32 %v1251, %v1430
          %v1492 = vmul.f32 %v1252, %v1440
          %v1493 = vmul.f32 %v1253, %v1450
          %v1494 = vmul.f32 %v1254, %v1460
          %v1495 = vmul.f32 %v1255, %v1470
          %v1496 = vmul.f32 %v1256, %v1480
          %v1497 = vxor.u32 %v1481, 2147483648
          %v1498 = vxor.u32 %v1482, 2147483648
          %v1499 = vxor.u32 %v1483, 2147483648
          %v1500 = vxor.u32 %v1484, 2147483648
          %v1501 = vxor.u32 %v1485, 2147483648
          %v1502 = vxor.u32 %v1486, 2147483648
          %v1503 = vxor.u32 %v1487, 2147483648
          %v1504 = vxor.u32 %v1488, 2147483648
          %v1505 = vxor.u32 %v1489, 2147483648
          %v1506 = vxor.u32 %v1490, 2147483648
          %v1507 = vxor.u32 %v1491, 2147483648
          %v1508 = vxor.u32 %v1492, 2147483648
          %v1509 = vxor.u32 %v1493, 2147483648
          %v1510 = vxor.u32 %v1494, 2147483648
          %v1511 = vxor.u32 %v1495, 2147483648
          %v1512 = vxor.u32 %v1496, 2147483648
          %v1513 = vmul.f32 %v1497, 1.442695
          %v1514 = vpow.pop %v1513
          %v1515 = vmul.f32 %v1498, 1.442695
          %v1516 = vpow.pop %v1515
          %v1517 = vmul.f32 %v1499, 1.442695
          %v1518 = vpow.pop %v1517
          %v1519 = vmul.f32 %v1500, 1.442695
          %v1520 = vpow.pop %v1519
          %v1521 = vmul.f32 %v1501, 1.442695
          %v1522 = vpow.pop %v1521
          %v1523 = vmul.f32 %v1502, 1.442695
          %v1524 = vpow.pop %v1523
          %v1525 = vmul.f32 %v1503, 1.442695
          %v1526 = vpow.pop %v1525
          %v1527 = vmul.f32 %v1504, 1.442695
          %v1528 = vpow.pop %v1527
          %v1529 = vmul.f32 %v1505, 1.442695
          %v1530 = vpow.pop %v1529
          %v1531 = vmul.f32 %v1506, 1.442695
          %v1532 = vpow.pop %v1531
          %v1533 = vmul.f32 %v1507, 1.442695
          %v1534 = vpow.pop %v1533
          %v1535 = vmul.f32 %v1508, 1.442695
          %v1536 = vpow.pop %v1535
          %v1537 = vmul.f32 %v1509, 1.442695
          %v1538 = vpow.pop %v1537
          %v1539 = vmul.f32 %v1510, 1.442695
          %v1540 = vpow.pop %v1539
          %v1541 = vmul.f32 %v1511, 1.442695
          %v1542 = vpow.pop %v1541
          %v1543 = vmul.f32 %v1512, 1.442695
          %v1544 = vpow.pop %v1543
          %v1545 = vadd.f32 %v1514, 1.0
          %v1546 = vadd.f32 %v1516, 1.0
          %v1547 = vadd.f32 %v1518, 1.0
          %v1548 = vadd.f32 %v1520, 1.0
          %v1549 = vadd.f32 %v1522, 1.0
          %v1550 = vadd.f32 %v1524, 1.0
          %v1551 = vadd.f32 %v1526, 1.0
          %v1552 = vadd.f32 %v1528, 1.0
          %v1553 = vadd.f32 %v1530, 1.0
          %v1554 = vadd.f32 %v1532, 1.0
          %v1555 = vadd.f32 %v1534, 1.0
          %v1556 = vadd.f32 %v1536, 1.0
          %v1557 = vadd.f32 %v1538, 1.0
          %v1558 = vadd.f32 %v1540, 1.0
          %v1559 = vadd.f32 %v1542, 1.0
          %v1560 = vadd.f32 %v1544, 1.0
          %v1561 = vrcp.pop %v1545
          %v1562 = vmul.f32 %v1545, %v1561
          %v1563 = vsub.f32 1.0, %v1562
          %v1564 = vmul.f32 %v1561, %v1563
          %v1565 = vadd.f32 %v1561, %v1564
          %vm1566 = vweird.f32 %v1545
          %vm1567 = vweird.f32 %v1561
          %vm1568 = vmor %vm1566, %vm1567
          %v1569 = vsel %vm1568, %v1561, %v1565
          %v1570 = vand.u32 2147483647, %v1545
          %vm1571 = vcmp.eq.f32.partialorder %v1570, 8.507059e+37
          %v1572 = vand.u32 %v1545, 2147483648
          %v1573 = vor.u32 1.1754944e-38, %v1572
          %v1574 = vsel %vm1571, %v1573, %v1569
          %v1575 = vmul.f32 1.0, %v1574
          %v1576 = vrcp.pop %v1546
          %v1577 = vmul.f32 %v1546, %v1576
          %v1578 = vsub.f32 1.0, %v1577
          %v1579 = vmul.f32 %v1576, %v1578
          %v1580 = vadd.f32 %v1576, %v1579
          %vm1581 = vweird.f32 %v1546
          %vm1582 = vweird.f32 %v1576
          %vm1583 = vmor %vm1581, %vm1582
          %v1584 = vsel %vm1583, %v1576, %v1580
          %v1585 = vand.u32 2147483647, %v1546
          %vm1586 = vcmp.eq.f32.partialorder %v1585, 8.507059e+37
          %v1587 = vand.u32 %v1546, 2147483648
          %v1588 = vor.u32 1.1754944e-38, %v1587
          %v1589 = vsel %vm1586, %v1588, %v1584
          %v1590 = vmul.f32 1.0, %v1589
          %v1591 = vrcp.pop %v1547
          %v1592 = vmul.f32 %v1547, %v1591
          %v1593 = vsub.f32 1.0, %v1592
          %v1594 = vmul.f32 %v1591, %v1593
          %v1595 = vadd.f32 %v1591, %v1594
          %vm1596 = vweird.f32 %v1547
          %vm1597 = vweird.f32 %v1591
          %vm1598 = vmor %vm1596, %vm1597
          %v1599 = vsel %vm1598, %v1591, %v1595
          %v1600 = vand.u32 2147483647, %v1547
          %vm1601 = vcmp.eq.f32.partialorder %v1600, 8.507059e+37
          %v1602 = vand.u32 %v1547, 2147483648
          %v1603 = vor.u32 1.1754944e-38, %v1602
          %v1604 = vsel %vm1601, %v1603, %v1599
          %v1605 = vmul.f32 1.0, %v1604
          %v1606 = vrcp.pop %v1548
          %v1607 = vmul.f32 %v1548, %v1606
          %v1608 = vsub.f32 1.0, %v1607
          %v1609 = vmul.f32 %v1606, %v1608
          %v1610 = vadd.f32 %v1606, %v1609
          %vm1611 = vweird.f32 %v1548
          %vm1612 = vweird.f32 %v1606
          %vm1613 = vmor %vm1611, %vm1612
          %v1614 = vsel %vm1613, %v1606, %v1610
          %v1615 = vand.u32 2147483647, %v1548
          %vm1616 = vcmp.eq.f32.partialorder %v1615, 8.507059e+37
          %v1617 = vand.u32 %v1548, 2147483648
          %v1618 = vor.u32 1.1754944e-38, %v1617
          %v1619 = vsel %vm1616, %v1618, %v1614
          %v1620 = vmul.f32 1.0, %v1619
          %v1621 = vrcp.pop %v1549
          %v1622 = vmul.f32 %v1549, %v1621
          %v1623 = vsub.f32 1.0, %v1622
          %v1624 = vmul.f32 %v1621, %v1623
          %v1625 = vadd.f32 %v1621, %v1624
          %vm1626 = vweird.f32 %v1549
          %vm1627 = vweird.f32 %v1621
          %vm1628 = vmor %vm1626, %vm1627
          %v1629 = vsel %vm1628, %v1621, %v1625
          %v1630 = vand.u32 2147483647, %v1549
          %vm1631 = vcmp.eq.f32.partialorder %v1630, 8.507059e+37
          %v1632 = vand.u32 %v1549, 2147483648
          %v1633 = vor.u32 1.1754944e-38, %v1632
          %v1634 = vsel %vm1631, %v1633, %v1629
          %v1635 = vmul.f32 1.0, %v1634
          %v1636 = vrcp.pop %v1550
          %v1637 = vmul.f32 %v1550, %v1636
          %v1638 = vsub.f32 1.0, %v1637
          %v1639 = vmul.f32 %v1636, %v1638
          %v1640 = vadd.f32 %v1636, %v1639
          %vm1641 = vweird.f32 %v1550
          %vm1642 = vweird.f32 %v1636
          %vm1643 = vmor %vm1641, %vm1642
          %v1644 = vsel %vm1643, %v1636, %v1640
          %v1645 = vand.u32 2147483647, %v1550
          %vm1646 = vcmp.eq.f32.partialorder %v1645, 8.507059e+37
          %v1647 = vand.u32 %v1550, 2147483648
          %v1648 = vor.u32 1.1754944e-38, %v1647
          %v1649 = vsel %vm1646, %v1648, %v1644
          %v1650 = vmul.f32 1.0, %v1649
          %v1651 = vrcp.pop %v1551
          %v1652 = vmul.f32 %v1551, %v1651
          %v1653 = vsub.f32 1.0, %v1652
          %v1654 = vmul.f32 %v1651, %v1653
          %v1655 = vadd.f32 %v1651, %v1654
          %vm1656 = vweird.f32 %v1551
          %vm1657 = vweird.f32 %v1651
          %vm1658 = vmor %vm1656, %vm1657
          %v1659 = vsel %vm1658, %v1651, %v1655
          %v1660 = vand.u32 2147483647, %v1551
          %vm1661 = vcmp.eq.f32.partialorder %v1660, 8.507059e+37
          %v1662 = vand.u32 %v1551, 2147483648
          %v1663 = vor.u32 1.1754944e-38, %v1662
          %v1664 = vsel %vm1661, %v1663, %v1659
          %v1665 = vmul.f32 1.0, %v1664
          %v1666 = vrcp.pop %v1552
          %v1667 = vmul.f32 %v1552, %v1666
          %v1668 = vsub.f32 1.0, %v1667
          %v1669 = vmul.f32 %v1666, %v1668
          %v1670 = vadd.f32 %v1666, %v1669
          %vm1671 = vweird.f32 %v1552
          %vm1672 = vweird.f32 %v1666
          %vm1673 = vmor %vm1671, %vm1672
          %v1674 = vsel %vm1673, %v1666, %v1670
          %v1675 = vand.u32 2147483647, %v1552
          %vm1676 = vcmp.eq.f32.partialorder %v1675, 8.507059e+37
          %v1677 = vand.u32 %v1552, 2147483648
          %v1678 = vor.u32 1.1754944e-38, %v1677
          %v1679 = vsel %vm1676, %v1678, %v1674
          %v1680 = vmul.f32 1.0, %v1679
          %v1681 = vrcp.pop %v1553
          %v1682 = vmul.f32 %v1553, %v1681
          %v1683 = vsub.f32 1.0, %v1682
          %v1684 = vmul.f32 %v1681, %v1683
          %v1685 = vadd.f32 %v1681, %v1684
          %vm1686 = vweird.f32 %v1553
          %vm1687 = vweird.f32 %v1681
          %vm1688 = vmor %vm1686, %vm1687
          %v1689 = vsel %vm1688, %v1681, %v1685
          %v1690 = vand.u32 2147483647, %v1553
          %vm1691 = vcmp.eq.f32.partialorder %v1690, 8.507059e+37
          %v1692 = vand.u32 %v1553, 2147483648
          %v1693 = vor.u32 1.1754944e-38, %v1692
          %v1694 = vsel %vm1691, %v1693, %v1689
          %v1695 = vmul.f32 1.0, %v1694
          %v1696 = vrcp.pop %v1554
          %v1697 = vmul.f32 %v1554, %v1696
          %v1698 = vsub.f32 1.0, %v1697
          %v1699 = vmul.f32 %v1696, %v1698
          %v1700 = vadd.f32 %v1696, %v1699
          %vm1701 = vweird.f32 %v1554
          %vm1702 = vweird.f32 %v1696
          %vm1703 = vmor %vm1701, %vm1702
          %v1704 = vsel %vm1703, %v1696, %v1700
          %v1705 = vand.u32 2147483647, %v1554
          %vm1706 = vcmp.eq.f32.partialorder %v1705, 8.507059e+37
          %v1707 = vand.u32 %v1554, 2147483648
          %v1708 = vor.u32 1.1754944e-38, %v1707
          %v1709 = vsel %vm1706, %v1708, %v1704
          %v1710 = vmul.f32 1.0, %v1709
          %v1711 = vrcp.pop %v1555
          %v1712 = vmul.f32 %v1555, %v1711
          %v1713 = vsub.f32 1.0, %v1712
          %v1714 = vmul.f32 %v1711, %v1713
          %v1715 = vadd.f32 %v1711, %v1714
          %vm1716 = vweird.f32 %v1555
          %vm1717 = vweird.f32 %v1711
          %vm1718 = vmor %vm1716, %vm1717
          %v1719 = vsel %vm1718, %v1711, %v1715
          %v1720 = vand.u32 2147483647, %v1555
          %vm1721 = vcmp.eq.f32.partialorder %v1720, 8.507059e+37
          %v1722 = vand.u32 %v1555, 2147483648
          %v1723 = vor.u32 1.1754944e-38, %v1722
          %v1724 = vsel %vm1721, %v1723, %v1719
          %v1725 = vmul.f32 1.0, %v1724
          %v1726 = vrcp.pop %v1556
          %v1727 = vmul.f32 %v1556, %v1726
          %v1728 = vsub.f32 1.0, %v1727
          %v1729 = vmul.f32 %v1726, %v1728
          %v1730 = vadd.f32 %v1726, %v1729
          %vm1731 = vweird.f32 %v1556
          %vm1732 = vweird.f32 %v1726
          %vm1733 = vmor %vm1731, %vm1732
          %v1734 = vsel %vm1733, %v1726, %v1730
          %v1735 = vand.u32 2147483647, %v1556
          %vm1736 = vcmp.eq.f32.partialorder %v1735, 8.507059e+37
          %v1737 = vand.u32 %v1556, 2147483648
          %v1738 = vor.u32 1.1754944e-38, %v1737
          %v1739 = vsel %vm1736, %v1738, %v1734
          %v1740 = vmul.f32 1.0, %v1739
          %v1741 = vrcp.pop %v1557
          %v1742 = vmul.f32 %v1557, %v1741
          %v1743 = vsub.f32 1.0, %v1742
          %v1744 = vmul.f32 %v1741, %v1743
          %v1745 = vadd.f32 %v1741, %v1744
          %vm1746 = vweird.f32 %v1557
          %vm1747 = vweird.f32 %v1741
          %vm1748 = vmor %vm1746, %vm1747
          %v1749 = vsel %vm1748, %v1741, %v1745
          %v1750 = vand.u32 2147483647, %v1557
          %vm1751 = vcmp.eq.f32.partialorder %v1750, 8.507059e+37
          %v1752 = vand.u32 %v1557, 2147483648
          %v1753 = vor.u32 1.1754944e-38, %v1752
          %v1754 = vsel %vm1751, %v1753, %v1749
          %v1755 = vmul.f32 1.0, %v1754
          %v1756 = vrcp.pop %v1558
          %v1757 = vmul.f32 %v1558, %v1756
          %v1758 = vsub.f32 1.0, %v1757
          %v1759 = vmul.f32 %v1756, %v1758
          %v1760 = vadd.f32 %v1756, %v1759
          %vm1761 = vweird.f32 %v1558
          %vm1762 = vweird.f32 %v1756
          %vm1763 = vmor %vm1761, %vm1762
          %v1764 = vsel %vm1763, %v1756, %v1760
          %v1765 = vand.u32 2147483647, %v1558
          %vm1766 = vcmp.eq.f32.partialorder %v1765, 8.507059e+37
          %v1767 = vand.u32 %v1558, 2147483648
          %v1768 = vor.u32 1.1754944e-38, %v1767
          %v1769 = vsel %vm1766, %v1768, %v1764
          %v1770 = vmul.f32 1.0, %v1769
          %v1771 = vrcp.pop %v1559
          %v1772 = vmul.f32 %v1559, %v1771
          %v1773 = vsub.f32 1.0, %v1772
          %v1774 = vmul.f32 %v1771, %v1773
          %v1775 = vadd.f32 %v1771, %v1774
          %vm1776 = vweird.f32 %v1559
          %vm1777 = vweird.f32 %v1771
          %vm1778 = vmor %vm1776, %vm1777
          %v1779 = vsel %vm1778, %v1771, %v1775
          %v1780 = vand.u32 2147483647, %v1559
          %vm1781 = vcmp.eq.f32.partialorder %v1780, 8.507059e+37
          %v1782 = vand.u32 %v1559, 2147483648
          %v1783 = vor.u32 1.1754944e-38, %v1782
          %v1784 = vsel %vm1781, %v1783, %v1779
          %v1785 = vmul.f32 1.0, %v1784
          %v1786 = vrcp.pop %v1560
          %v1787 = vmul.f32 %v1560, %v1786
          %v1788 = vsub.f32 1.0, %v1787
          %v1789 = vmul.f32 %v1786, %v1788
          %v1790 = vadd.f32 %v1786, %v1789
          %vm1791 = vweird.f32 %v1560
          %vm1792 = vweird.f32 %v1786
          %vm1793 = vmor %vm1791, %vm1792
          %v1794 = vsel %vm1793, %v1786, %v1790
          %v1795 = vand.u32 2147483647, %v1560
          %vm1796 = vcmp.eq.f32.partialorder %v1795, 8.507059e+37
          %v1797 = vand.u32 %v1560, 2147483648
          %v1798 = vor.u32 1.1754944e-38, %v1797
          %v1799 = vsel %vm1796, %v1798, %v1794
          %v1800 = vmul.f32 1.0, %v1799
          %v1801 = vld [vmem:[#allocation2 + $0x8] sm:$0xff]
          %v1802 = vld [vmem:[#allocation2 + $0x18] sm:$0xff]
          %v1803 = vld [vmem:[#allocation2 + $0x28] sm:$0xff]
          %v1804 = vld [vmem:[#allocation2 + $0x38] sm:$0xff]
          %v1805 = vld [vmem:[#allocation2 + $0x48] sm:$0xff]
          %v1806 = vld [vmem:[#allocation2 + $0x58] sm:$0xff]
          %v1807 = vld [vmem:[#allocation2 + $0x68] sm:$0xff]
          %v1808 = vld [vmem:[#allocation2 + $0x78] sm:$0xff]
          %v1809 = vld [vmem:[#allocation2 + $0x88] sm:$0xff]
          %v1810 = vld [vmem:[#allocation2 + $0x98] sm:$0xff]
          %v1811 = vld [vmem:[#allocation2 + $0xa8] sm:$0xff]
          %v1812 = vld [vmem:[#allocation2 + $0xb8] sm:$0xff]
          %v1813 = vld [vmem:[#allocation2 + $0xc8] sm:$0xff]
          %v1814 = vld [vmem:[#allocation2 + $0xd8] sm:$0xff]
          %v1815 = vld [vmem:[#allocation2 + $0xe8] sm:$0xff]
          %v1816 = vld [vmem:[#allocation2 + $0xf8] sm:$0xff]
          %v1817 = vmul.f32 %v1801, %v1801
          %v1818 = vmul.f32 %v1802, %v1802
          %v1819 = vmul.f32 %v1803, %v1803
          %v1820 = vmul.f32 %v1804, %v1804
          %v1821 = vmul.f32 %v1805, %v1805
          %v1822 = vmul.f32 %v1806, %v1806
          %v1823 = vmul.f32 %v1807, %v1807
          %v1824 = vmul.f32 %v1808, %v1808
          %v1825 = vmul.f32 %v1809, %v1809
          %v1826 = vmul.f32 %v1810, %v1810
          %v1827 = vmul.f32 %v1811, %v1811
          %v1828 = vmul.f32 %v1812, %v1812
          %v1829 = vmul.f32 %v1813, %v1813
          %v1830 = vmul.f32 %v1814, %v1814
          %v1831 = vmul.f32 %v1815, %v1815
          %v1832 = vmul.f32 %v1816, %v1816
          %1833 = vadd.xlane.f32.xlu0 %v1817
          %v1834 = vpop.xlane.xlu0 %1833
          %1835 = vadd.xlane.f32.xlu0 %v1818
          %v1836 = vpop.xlane.xlu0 %1835
          %1837 = vadd.xlane.f32.xlu0 %v1819
          %v1838 = vpop.xlane.xlu0 %1837
          %1839 = vadd.xlane.f32.xlu0 %v1820
          %v1840 = vpop.xlane.xlu0 %1839
          %1841 = vadd.xlane.f32.xlu0 %v1821
          %v1842 = vpop.xlane.xlu0 %1841
          %1843 = vadd.xlane.f32.xlu0 %v1822
          %v1844 = vpop.xlane.xlu0 %1843
          %1845 = vadd.xlane.f32.xlu0 %v1823
          %v1846 = vpop.xlane.xlu0 %1845
          %1847 = vadd.xlane.f32.xlu0 %v1824
          %v1848 = vpop.xlane.xlu0 %1847
          %1849 = vadd.xlane.f32.xlu0 %v1825
          %v1850 = vpop.xlane.xlu0 %1849
          %1851 = vadd.xlane.f32.xlu0 %v1826
          %v1852 = vpop.xlane.xlu0 %1851
          %1853 = vadd.xlane.f32.xlu0 %v1827
          %v1854 = vpop.xlane.xlu0 %1853
          %1855 = vadd.xlane.f32.xlu0 %v1828
          %v1856 = vpop.xlane.xlu0 %1855
          %1857 = vadd.xlane.f32.xlu0 %v1829
          %v1858 = vpop.xlane.xlu0 %1857
          %1859 = vadd.xlane.f32.xlu0 %v1830
          %v1860 = vpop.xlane.xlu0 %1859
          %1861 = vadd.xlane.f32.xlu0 %v1831
          %v1862 = vpop.xlane.xlu0 %1861
          %1863 = vadd.xlane.f32.xlu0 %v1832
          %v1864 = vpop.xlane.xlu0 %1863
          %v1865 = vmax.f32 %v1834, 1e-24
          %v1866 = vmax.f32 %v1836, 1e-24
          %v1867 = vmax.f32 %v1838, 1e-24
          %v1868 = vmax.f32 %v1840, 1e-24
          %v1869 = vmax.f32 %v1842, 1e-24
          %v1870 = vmax.f32 %v1844, 1e-24
          %v1871 = vmax.f32 %v1846, 1e-24
          %v1872 = vmax.f32 %v1848, 1e-24
          %v1873 = vmax.f32 %v1850, 1e-24
          %v1874 = vmax.f32 %v1852, 1e-24
          %v1875 = vmax.f32 %v1854, 1e-24
          %v1876 = vmax.f32 %v1856, 1e-24
          %v1877 = vmax.f32 %v1858, 1e-24
          %v1878 = vmax.f32 %v1860, 1e-24
          %v1879 = vmax.f32 %v1862, 1e-24
          %v1880 = vmax.f32 %v1864, 1e-24
          %v1881 = vrsqrt.pop %v1865
          %v1882 = vmul.f32 %v1881, %v1865
          %v1883 = vmul.f32 %v1882, %v1881
          %v1884 = vmul.f32 0.5, %v1883
          %v1885 = vsub.f32 1.5, %v1884
          %v1886 = vmul.f32 %v1881, %v1885
          %vm1887 = vweird.f32 %v1865
          %vm1888 = vweird.f32 %v1881
          %vm1889 = vmor %vm1887, %vm1888
          %v1890 = vsel %vm1889, %v1881, %v1886
          %v1891 = vrsqrt.pop %v1866
          %v1892 = vmul.f32 %v1891, %v1866
          %v1893 = vmul.f32 %v1892, %v1891
          %v1894 = vmul.f32 0.5, %v1893
          %v1895 = vsub.f32 1.5, %v1894
          %v1896 = vmul.f32 %v1891, %v1895
          %vm1897 = vweird.f32 %v1866
          %vm1898 = vweird.f32 %v1891
          %vm1899 = vmor %vm1897, %vm1898
          %v1900 = vsel %vm1899, %v1891, %v1896
          %v1901 = vrsqrt.pop %v1867
          %v1902 = vmul.f32 %v1901, %v1867
          %v1903 = vmul.f32 %v1902, %v1901
          %v1904 = vmul.f32 0.5, %v1903
          %v1905 = vsub.f32 1.5, %v1904
          %v1906 = vmul.f32 %v1901, %v1905
          %vm1907 = vweird.f32 %v1867
          %vm1908 = vweird.f32 %v1901
          %vm1909 = vmor %vm1907, %vm1908
          %v1910 = vsel %vm1909, %v1901, %v1906
          %v1911 = vrsqrt.pop %v1868
          %v1912 = vmul.f32 %v1911, %v1868
          %v1913 = vmul.f32 %v1912, %v1911
          %v1914 = vmul.f32 0.5, %v1913
          %v1915 = vsub.f32 1.5, %v1914
          %v1916 = vmul.f32 %v1911, %v1915
          %vm1917 = vweird.f32 %v1868
          %vm1918 = vweird.f32 %v1911
          %vm1919 = vmor %vm1917, %vm1918
          %v1920 = vsel %vm1919, %v1911, %v1916
          %v1921 = vrsqrt.pop %v1869
          %v1922 = vmul.f32 %v1921, %v1869
          %v1923 = vmul.f32 %v1922, %v1921
          %v1924 = vmul.f32 0.5, %v1923
          %v1925 = vsub.f32 1.5, %v1924
          %v1926 = vmul.f32 %v1921, %v1925
          %vm1927 = vweird.f32 %v1869
          %vm1928 = vweird.f32 %v1921
          %vm1929 = vmor %vm1927, %vm1928
          %v1930 = vsel %vm1929, %v1921, %v1926
          %v1931 = vrsqrt.pop %v1870
          %v1932 = vmul.f32 %v1931, %v1870
          %v1933 = vmul.f32 %v1932, %v1931
          %v1934 = vmul.f32 0.5, %v1933
          %v1935 = vsub.f32 1.5, %v1934
          %v1936 = vmul.f32 %v1931, %v1935
          %vm1937 = vweird.f32 %v1870
          %vm1938 = vweird.f32 %v1931
          %vm1939 = vmor %vm1937, %vm1938
          %v1940 = vsel %vm1939, %v1931, %v1936
          %v1941 = vrsqrt.pop %v1871
          %v1942 = vmul.f32 %v1941, %v1871
          %v1943 = vmul.f32 %v1942, %v1941
          %v1944 = vmul.f32 0.5, %v1943
          %v1945 = vsub.f32 1.5, %v1944
          %v1946 = vmul.f32 %v1941, %v1945
          %vm1947 = vweird.f32 %v1871
          %vm1948 = vweird.f32 %v1941
          %vm1949 = vmor %vm1947, %vm1948
          %v1950 = vsel %vm1949, %v1941, %v1946
          %v1951 = vrsqrt.pop %v1872
          %v1952 = vmul.f32 %v1951, %v1872
          %v1953 = vmul.f32 %v1952, %v1951
          %v1954 = vmul.f32 0.5, %v1953
          %v1955 = vsub.f32 1.5, %v1954
          %v1956 = vmul.f32 %v1951, %v1955
          %vm1957 = vweird.f32 %v1872
          %vm1958 = vweird.f32 %v1951
          %vm1959 = vmor %vm1957, %vm1958
          %v1960 = vsel %vm1959, %v1951, %v1956
          %v1961 = vrsqrt.pop %v1873
          %v1962 = vmul.f32 %v1961, %v1873
          %v1963 = vmul.f32 %v1962, %v1961
          %v1964 = vmul.f32 0.5, %v1963
          %v1965 = vsub.f32 1.5, %v1964
          %v1966 = vmul.f32 %v1961, %v1965
          %vm1967 = vweird.f32 %v1873
          %vm1968 = vweird.f32 %v1961
          %vm1969 = vmor %vm1967, %vm1968
          %v1970 = vsel %vm1969, %v1961, %v1966
          %v1971 = vrsqrt.pop %v1874
          %v1972 = vmul.f32 %v1971, %v1874
          %v1973 = vmul.f32 %v1972, %v1971
          %v1974 = vmul.f32 0.5, %v1973
          %v1975 = vsub.f32 1.5, %v1974
          %v1976 = vmul.f32 %v1971, %v1975
          %vm1977 = vweird.f32 %v1874
          %vm1978 = vweird.f32 %v1971
          %vm1979 = vmor %vm1977, %vm1978
          %v1980 = vsel %vm1979, %v1971, %v1976
          %v1981 = vrsqrt.pop %v1875
          %v1982 = vmul.f32 %v1981, %v1875
          %v1983 = vmul.f32 %v1982, %v1981
          %v1984 = vmul.f32 0.5, %v1983
          %v1985 = vsub.f32 1.5, %v1984
          %v1986 = vmul.f32 %v1981, %v1985
          %vm1987 = vweird.f32 %v1875
          %vm1988 = vweird.f32 %v1981
          %vm1989 = vmor %vm1987, %vm1988
          %v1990 = vsel %vm1989, %v1981, %v1986
          %v1991 = vrsqrt.pop %v1876
          %v1992 = vmul.f32 %v1991, %v1876
          %v1993 = vmul.f32 %v1992, %v1991
          %v1994 = vmul.f32 0.5, %v1993
          %v1995 = vsub.f32 1.5, %v1994
          %v1996 = vmul.f32 %v1991, %v1995
          %vm1997 = vweird.f32 %v1876
          %vm1998 = vweird.f32 %v1991
          %vm1999 = vmor %vm1997, %vm1998
          %v2000 = vsel %vm1999, %v1991, %v1996
          %v2001 = vrsqrt.pop %v1877
          %v2002 = vmul.f32 %v2001, %v1877
          %v2003 = vmul.f32 %v2002, %v2001
          %v2004 = vmul.f32 0.5, %v2003
          %v2005 = vsub.f32 1.5, %v2004
          %v2006 = vmul.f32 %v2001, %v2005
          %vm2007 = vweird.f32 %v1877
          %vm2008 = vweird.f32 %v2001
          %vm2009 = vmor %vm2007, %vm2008
          %v2010 = vsel %vm2009, %v2001, %v2006
          %v2011 = vrsqrt.pop %v1878
          %v2012 = vmul.f32 %v2011, %v1878
          %v2013 = vmul.f32 %v2012, %v2011
          %v2014 = vmul.f32 0.5, %v2013
          %v2015 = vsub.f32 1.5, %v2014
          %v2016 = vmul.f32 %v2011, %v2015
          %vm2017 = vweird.f32 %v1878
          %vm2018 = vweird.f32 %v2011
          %vm2019 = vmor %vm2017, %vm2018
          %v2020 = vsel %vm2019, %v2011, %v2016
          %v2021 = vrsqrt.pop %v1879
          %v2022 = vmul.f32 %v2021, %v1879
          %v2023 = vmul.f32 %v2022, %v2021
          %v2024 = vmul.f32 0.5, %v2023
          %v2025 = vsub.f32 1.5, %v2024
          %v2026 = vmul.f32 %v2021, %v2025
          %vm2027 = vweird.f32 %v1879
          %vm2028 = vweird.f32 %v2021
          %vm2029 = vmor %vm2027, %vm2028
          %v2030 = vsel %vm2029, %v2021, %v2026
          %v2031 = vrsqrt.pop %v1880
          %v2032 = vmul.f32 %v2031, %v1880
          %v2033 = vmul.f32 %v2032, %v2031
          %v2034 = vmul.f32 0.5, %v2033
          %v2035 = vsub.f32 1.5, %v2034
          %v2036 = vmul.f32 %v2031, %v2035
          %vm2037 = vweird.f32 %v1880
          %vm2038 = vweird.f32 %v2031
          %vm2039 = vmor %vm2037, %vm2038
          %v2040 = vsel %vm2039, %v2031, %v2036
          %v2041 = vmul.f32 %v1801, %v1890
          %v2042 = vmul.f32 %v1802, %v1900
          %v2043 = vmul.f32 %v1803, %v1910
          %v2044 = vmul.f32 %v1804, %v1920
          %v2045 = vmul.f32 %v1805, %v1930
          %v2046 = vmul.f32 %v1806, %v1940
          %v2047 = vmul.f32 %v1807, %v1950
          %v2048 = vmul.f32 %v1808, %v1960
          %v2049 = vmul.f32 %v1809, %v1970
          %v2050 = vmul.f32 %v1810, %v1980
          %v2051 = vmul.f32 %v1811, %v1990
          %v2052 = vmul.f32 %v1812, %v2000
          %v2053 = vmul.f32 %v1813, %v2010
          %v2054 = vmul.f32 %v1814, %v2020
          %v2055 = vmul.f32 %v1815, %v2030
          %v2056 = vmul.f32 %v1816, %v2040
          %v2057 = vxor.u32 %v2041, 2147483648
          %v2058 = vxor.u32 %v2042, 2147483648
          %v2059 = vxor.u32 %v2043, 2147483648
          %v2060 = vxor.u32 %v2044, 2147483648
          %v2061 = vxor.u32 %v2045, 2147483648
          %v2062 = vxor.u32 %v2046, 2147483648
          %v2063 = vxor.u32 %v2047, 2147483648
          %v2064 = vxor.u32 %v2048, 2147483648
          %v2065 = vxor.u32 %v2049, 2147483648
          %v2066 = vxor.u32 %v2050, 2147483648
          %v2067 = vxor.u32 %v2051, 2147483648
          %v2068 = vxor.u32 %v2052, 2147483648
          %v2069 = vxor.u32 %v2053, 2147483648
          %v2070 = vxor.u32 %v2054, 2147483648
          %v2071 = vxor.u32 %v2055, 2147483648
          %v2072 = vxor.u32 %v2056, 2147483648
          %v2073 = vmul.f32 %v2057, 1.442695
          %v2074 = vpow.pop %v2073
          %v2075 = vmul.f32 %v2058, 1.442695
          %v2076 = vpow.pop %v2075
          %v2077 = vmul.f32 %v2059, 1.442695
          %v2078 = vpow.pop %v2077
          %v2079 = vmul.f32 %v2060, 1.442695
          %v2080 = vpow.pop %v2079
          %v2081 = vmul.f32 %v2061, 1.442695
          %v2082 = vpow.pop %v2081
          %v2083 = vmul.f32 %v2062, 1.442695
          %v2084 = vpow.pop %v2083
          %v2085 = vmul.f32 %v2063, 1.442695
          %v2086 = vpow.pop %v2085
          %v2087 = vmul.f32 %v2064, 1.442695
          %v2088 = vpow.pop %v2087
          %v2089 = vmul.f32 %v2065, 1.442695
          %v2090 = vpow.pop %v2089
          %v2091 = vmul.f32 %v2066, 1.442695
          %v2092 = vpow.pop %v2091
          %v2093 = vmul.f32 %v2067, 1.442695
          %v2094 = vpow.pop %v2093
          %v2095 = vmul.f32 %v2068, 1.442695
          %v2096 = vpow.pop %v2095
          %v2097 = vmul.f32 %v2069, 1.442695
          %v2098 = vpow.pop %v2097
          %v2099 = vmul.f32 %v2070, 1.442695
          %v2100 = vpow.pop %v2099
          %v2101 = vmul.f32 %v2071, 1.442695
          %v2102 = vpow.pop %v2101
          %v2103 = vmul.f32 %v2072, 1.442695
          %v2104 = vpow.pop %v2103
          %v2105 = vadd.f32 %v2074, 1.0
          %v2106 = vadd.f32 %v2076, 1.0
          %v2107 = vadd.f32 %v2078, 1.0
          %v2108 = vadd.f32 %v2080, 1.0
          %v2109 = vadd.f32 %v2082, 1.0
          %v2110 = vadd.f32 %v2084, 1.0
          %v2111 = vadd.f32 %v2086, 1.0
          %v2112 = vadd.f32 %v2088, 1.0
          %v2113 = vadd.f32 %v2090, 1.0
          %v2114 = vadd.f32 %v2092, 1.0
          %v2115 = vadd.f32 %v2094, 1.0
          %v2116 = vadd.f32 %v2096, 1.0
          %v2117 = vadd.f32 %v2098, 1.0
          %v2118 = vadd.f32 %v2100, 1.0
          %v2119 = vadd.f32 %v2102, 1.0
          %v2120 = vadd.f32 %v2104, 1.0
          %v2121 = vrcp.pop %v2105
          %v2122 = vmul.f32 %v2105, %v2121
          %v2123 = vsub.f32 1.0, %v2122
          %v2124 = vmul.f32 %v2121, %v2123
          %v2125 = vadd.f32 %v2121, %v2124
          %vm2126 = vweird.f32 %v2105
          %vm2127 = vweird.f32 %v2121
          %vm2128 = vmor %vm2126, %vm2127
          %v2129 = vsel %vm2128, %v2121, %v2125
          %v2130 = vand.u32 2147483647, %v2105
          %vm2131 = vcmp.eq.f32.partialorder %v2130, 8.507059e+37
          %v2132 = vand.u32 %v2105, 2147483648
          %v2133 = vor.u32 1.1754944e-38, %v2132
          %v2134 = vsel %vm2131, %v2133, %v2129
          %v2135 = vmul.f32 1.0, %v2134
          %v2136 = vrcp.pop %v2106
          %v2137 = vmul.f32 %v2106, %v2136
          %v2138 = vsub.f32 1.0, %v2137
          %v2139 = vmul.f32 %v2136, %v2138
          %v2140 = vadd.f32 %v2136, %v2139
          %vm2141 = vweird.f32 %v2106
          %vm2142 = vweird.f32 %v2136
          %vm2143 = vmor %vm2141, %vm2142
          %v2144 = vsel %vm2143, %v2136, %v2140
          %v2145 = vand.u32 2147483647, %v2106
          %vm2146 = vcmp.eq.f32.partialorder %v2145, 8.507059e+37
          %v2147 = vand.u32 %v2106, 2147483648
          %v2148 = vor.u32 1.1754944e-38, %v2147
          %v2149 = vsel %vm2146, %v2148, %v2144
          %v2150 = vmul.f32 1.0, %v2149
          %v2151 = vrcp.pop %v2107
          %v2152 = vmul.f32 %v2107, %v2151
          %v2153 = vsub.f32 1.0, %v2152
          %v2154 = vmul.f32 %v2151, %v2153
          %v2155 = vadd.f32 %v2151, %v2154
          %vm2156 = vweird.f32 %v2107
          %vm2157 = vweird.f32 %v2151
          %vm2158 = vmor %vm2156, %vm2157
          %v2159 = vsel %vm2158, %v2151, %v2155
          %v2160 = vand.u32 2147483647, %v2107
          %vm2161 = vcmp.eq.f32.partialorder %v2160, 8.507059e+37
          %v2162 = vand.u32 %v2107, 2147483648
          %v2163 = vor.u32 1.1754944e-38, %v2162
          %v2164 = vsel %vm2161, %v2163, %v2159
          %v2165 = vmul.f32 1.0, %v2164
          %v2166 = vrcp.pop %v2108
          %v2167 = vmul.f32 %v2108, %v2166
          %v2168 = vsub.f32 1.0, %v2167
          %v2169 = vmul.f32 %v2166, %v2168
          %v2170 = vadd.f32 %v2166, %v2169
          %vm2171 = vweird.f32 %v2108
          %vm2172 = vweird.f32 %v2166
          %vm2173 = vmor %vm2171, %vm2172
          %v2174 = vsel %vm2173, %v2166, %v2170
          %v2175 = vand.u32 2147483647, %v2108
          %vm2176 = vcmp.eq.f32.partialorder %v2175, 8.507059e+37
          %v2177 = vand.u32 %v2108, 2147483648
          %v2178 = vor.u32 1.1754944e-38, %v2177
          %v2179 = vsel %vm2176, %v2178, %v2174
          %v2180 = vmul.f32 1.0, %v2179
          %v2181 = vrcp.pop %v2109
          %v2182 = vmul.f32 %v2109, %v2181
          %v2183 = vsub.f32 1.0, %v2182
          %v2184 = vmul.f32 %v2181, %v2183
          %v2185 = vadd.f32 %v2181, %v2184
          %vm2186 = vweird.f32 %v2109
          %vm2187 = vweird.f32 %v2181
          %vm2188 = vmor %vm2186, %vm2187
          %v2189 = vsel %vm2188, %v2181, %v2185
          %v2190 = vand.u32 2147483647, %v2109
          %vm2191 = vcmp.eq.f32.partialorder %v2190, 8.507059e+37
          %v2192 = vand.u32 %v2109, 2147483648
          %v2193 = vor.u32 1.1754944e-38, %v2192
          %v2194 = vsel %vm2191, %v2193, %v2189
          %v2195 = vmul.f32 1.0, %v2194
          %v2196 = vrcp.pop %v2110
          %v2197 = vmul.f32 %v2110, %v2196
          %v2198 = vsub.f32 1.0, %v2197
          %v2199 = vmul.f32 %v2196, %v2198
          %v2200 = vadd.f32 %v2196, %v2199
          %vm2201 = vweird.f32 %v2110
          %vm2202 = vweird.f32 %v2196
          %vm2203 = vmor %vm2201, %vm2202
          %v2204 = vsel %vm2203, %v2196, %v2200
          %v2205 = vand.u32 2147483647, %v2110
          %vm2206 = vcmp.eq.f32.partialorder %v2205, 8.507059e+37
          %v2207 = vand.u32 %v2110, 2147483648
          %v2208 = vor.u32 1.1754944e-38, %v2207
          %v2209 = vsel %vm2206, %v2208, %v2204
          %v2210 = vmul.f32 1.0, %v2209
          %v2211 = vrcp.pop %v2111
          %v2212 = vmul.f32 %v2111, %v2211
          %v2213 = vsub.f32 1.0, %v2212
          %v2214 = vmul.f32 %v2211, %v2213
          %v2215 = vadd.f32 %v2211, %v2214
          %vm2216 = vweird.f32 %v2111
          %vm2217 = vweird.f32 %v2211
          %vm2218 = vmor %vm2216, %vm2217
          %v2219 = vsel %vm2218, %v2211, %v2215
          %v2220 = vand.u32 2147483647, %v2111
          %vm2221 = vcmp.eq.f32.partialorder %v2220, 8.507059e+37
          %v2222 = vand.u32 %v2111, 2147483648
          %v2223 = vor.u32 1.1754944e-38, %v2222
          %v2224 = vsel %vm2221, %v2223, %v2219
          %v2225 = vmul.f32 1.0, %v2224
          %v2226 = vrcp.pop %v2112
          %v2227 = vmul.f32 %v2112, %v2226
          %v2228 = vsub.f32 1.0, %v2227
          %v2229 = vmul.f32 %v2226, %v2228
          %v2230 = vadd.f32 %v2226, %v2229
          %vm2231 = vweird.f32 %v2112
          %vm2232 = vweird.f32 %v2226
          %vm2233 = vmor %vm2231, %vm2232
          %v2234 = vsel %vm2233, %v2226, %v2230
          %v2235 = vand.u32 2147483647, %v2112
          %vm2236 = vcmp.eq.f32.partialorder %v2235, 8.507059e+37
          %v2237 = vand.u32 %v2112, 2147483648
          %v2238 = vor.u32 1.1754944e-38, %v2237
          %v2239 = vsel %vm2236, %v2238, %v2234
          %v2240 = vmul.f32 1.0, %v2239
          %v2241 = vrcp.pop %v2113
          %v2242 = vmul.f32 %v2113, %v2241
          %v2243 = vsub.f32 1.0, %v2242
          %v2244 = vmul.f32 %v2241, %v2243
          %v2245 = vadd.f32 %v2241, %v2244
          %vm2246 = vweird.f32 %v2113
          %vm2247 = vweird.f32 %v2241
          %vm2248 = vmor %vm2246, %vm2247
          %v2249 = vsel %vm2248, %v2241, %v2245
          %v2250 = vand.u32 2147483647, %v2113
          %vm2251 = vcmp.eq.f32.partialorder %v2250, 8.507059e+37
          %v2252 = vand.u32 %v2113, 2147483648
          %v2253 = vor.u32 1.1754944e-38, %v2252
          %v2254 = vsel %vm2251, %v2253, %v2249
          %v2255 = vmul.f32 1.0, %v2254
          %v2256 = vrcp.pop %v2114
          %v2257 = vmul.f32 %v2114, %v2256
          %v2258 = vsub.f32 1.0, %v2257
          %v2259 = vmul.f32 %v2256, %v2258
          %v2260 = vadd.f32 %v2256, %v2259
          %vm2261 = vweird.f32 %v2114
          %vm2262 = vweird.f32 %v2256
          %vm2263 = vmor %vm2261, %vm2262
          %v2264 = vsel %vm2263, %v2256, %v2260
          %v2265 = vand.u32 2147483647, %v2114
          %vm2266 = vcmp.eq.f32.partialorder %v2265, 8.507059e+37
          %v2267 = vand.u32 %v2114, 2147483648
          %v2268 = vor.u32 1.1754944e-38, %v2267
          %v2269 = vsel %vm2266, %v2268, %v2264
          %v2270 = vmul.f32 1.0, %v2269
          %v2271 = vrcp.pop %v2115
          %v2272 = vmul.f32 %v2115, %v2271
          %v2273 = vsub.f32 1.0, %v2272
          %v2274 = vmul.f32 %v2271, %v2273
          %v2275 = vadd.f32 %v2271, %v2274
          %vm2276 = vweird.f32 %v2115
          %vm2277 = vweird.f32 %v2271
          %vm2278 = vmor %vm2276, %vm2277
          %v2279 = vsel %vm2278, %v2271, %v2275
          %v2280 = vand.u32 2147483647, %v2115
          %vm2281 = vcmp.eq.f32.partialorder %v2280, 8.507059e+37
          %v2282 = vand.u32 %v2115, 2147483648
          %v2283 = vor.u32 1.1754944e-38, %v2282
          %v2284 = vsel %vm2281, %v2283, %v2279
          %v2285 = vmul.f32 1.0, %v2284
          %v2286 = vrcp.pop %v2116
          %v2287 = vmul.f32 %v2116, %v2286
          %v2288 = vsub.f32 1.0, %v2287
          %v2289 = vmul.f32 %v2286, %v2288
          %v2290 = vadd.f32 %v2286, %v2289
          %vm2291 = vweird.f32 %v2116
          %vm2292 = vweird.f32 %v2286
          %vm2293 = vmor %vm2291, %vm2292
          %v2294 = vsel %vm2293, %v2286, %v2290
          %v2295 = vand.u32 2147483647, %v2116
          %vm2296 = vcmp.eq.f32.partialorder %v2295, 8.507059e+37
          %v2297 = vand.u32 %v2116, 2147483648
          %v2298 = vor.u32 1.1754944e-38, %v2297
          %v2299 = vsel %vm2296, %v2298, %v2294
          %v2300 = vmul.f32 1.0, %v2299
          %v2301 = vrcp.pop %v2117
          %v2302 = vmul.f32 %v2117, %v2301
          %v2303 = vsub.f32 1.0, %v2302
          %v2304 = vmul.f32 %v2301, %v2303
          %v2305 = vadd.f32 %v2301, %v2304
          %vm2306 = vweird.f32 %v2117
          %vm2307 = vweird.f32 %v2301
          %vm2308 = vmor %vm2306, %vm2307
          %v2309 = vsel %vm2308, %v2301, %v2305
          %v2310 = vand.u32 2147483647, %v2117
          %vm2311 = vcmp.eq.f32.partialorder %v2310, 8.507059e+37
          %v2312 = vand.u32 %v2117, 2147483648
          %v2313 = vor.u32 1.1754944e-38, %v2312
          %v2314 = vsel %vm2311, %v2313, %v2309
          %v2315 = vmul.f32 1.0, %v2314
          %v2316 = vrcp.pop %v2118
          %v2317 = vmul.f32 %v2118, %v2316
          %v2318 = vsub.f32 1.0, %v2317
          %v2319 = vmul.f32 %v2316, %v2318
          %v2320 = vadd.f32 %v2316, %v2319
          %vm2321 = vweird.f32 %v2118
          %vm2322 = vweird.f32 %v2316
          %vm2323 = vmor %vm2321, %vm2322
          %v2324 = vsel %vm2323, %v2316, %v2320
          %v2325 = vand.u32 2147483647, %v2118
          %vm2326 = vcmp.eq.f32.partialorder %v2325, 8.507059e+37
          %v2327 = vand.u32 %v2118, 2147483648
          %v2328 = vor.u32 1.1754944e-38, %v2327
          %v2329 = vsel %vm2326, %v2328, %v2324
          %v2330 = vmul.f32 1.0, %v2329
          %v2331 = vrcp.pop %v2119
          %v2332 = vmul.f32 %v2119, %v2331
          %v2333 = vsub.f32 1.0, %v2332
          %v2334 = vmul.f32 %v2331, %v2333
          %v2335 = vadd.f32 %v2331, %v2334
          %vm2336 = vweird.f32 %v2119
          %vm2337 = vweird.f32 %v2331
          %vm2338 = vmor %vm2336, %vm2337
          %v2339 = vsel %vm2338, %v2331, %v2335
          %v2340 = vand.u32 2147483647, %v2119
          %vm2341 = vcmp.eq.f32.partialorder %v2340, 8.507059e+37
          %v2342 = vand.u32 %v2119, 2147483648
          %v2343 = vor.u32 1.1754944e-38, %v2342
          %v2344 = vsel %vm2341, %v2343, %v2339
          %v2345 = vmul.f32 1.0, %v2344
          %v2346 = vrcp.pop %v2120
          %v2347 = vmul.f32 %v2120, %v2346
          %v2348 = vsub.f32 1.0, %v2347
          %v2349 = vmul.f32 %v2346, %v2348
          %v2350 = vadd.f32 %v2346, %v2349
          %vm2351 = vweird.f32 %v2120
          %vm2352 = vweird.f32 %v2346
          %vm2353 = vmor %vm2351, %vm2352
          %v2354 = vsel %vm2353, %v2346, %v2350
          %v2355 = vand.u32 2147483647, %v2120
          %vm2356 = vcmp.eq.f32.partialorder %v2355, 8.507059e+37
          %v2357 = vand.u32 %v2120, 2147483648
          %v2358 = vor.u32 1.1754944e-38, %v2357
          %v2359 = vsel %vm2356, %v2358, %v2354
          %v2360 = vmul.f32 1.0, %v2359
          %v2361 = vld [vmem:[#allocation3] sm:$0xff]
          %v2362 = vld [vmem:[#allocation3 + $0x8] sm:$0xff]
          %v2363 = vld [vmem:[#allocation3 + $0x10] sm:$0xff]
          %v2364 = vld [vmem:[#allocation3 + $0x18] sm:$0xff]
          %v2365 = vld [vmem:[#allocation3 + $0x20] sm:$0xff]
          %v2366 = vld [vmem:[#allocation3 + $0x28] sm:$0xff]
          %v2367 = vld [vmem:[#allocation3 + $0x30] sm:$0xff]
          %v2368 = vld [vmem:[#allocation3 + $0x38] sm:$0xff]
          %v2369 = vld [vmem:[#allocation3 + $0x40] sm:$0xff]
          %v2370 = vld [vmem:[#allocation3 + $0x48] sm:$0xff]
          %v2371 = vld [vmem:[#allocation3 + $0x50] sm:$0xff]
          %v2372 = vld [vmem:[#allocation3 + $0x58] sm:$0xff]
          %v2373 = vld [vmem:[#allocation3 + $0x60] sm:$0xff]
          %v2374 = vld [vmem:[#allocation3 + $0x68] sm:$0xff]
          %v2375 = vld [vmem:[#allocation3 + $0x70] sm:$0xff]
          %v2376 = vld [vmem:[#allocation3 + $0x78] sm:$0xff]
          %v2377 = vld [vmem:[%s4] sm:$0xff]
          %v2378 = vld [vmem:[%s4 + $0x8] sm:$0xff]
          %v2379 = vld [vmem:[%s4 + $0x10] sm:$0xff]
          %v2380 = vld [vmem:[%s4 + $0x18] sm:$0xff]
          %v2381 = vld [vmem:[%s4 + $0x20] sm:$0xff]
          %v2382 = vld [vmem:[%s4 + $0x28] sm:$0xff]
          %v2383 = vld [vmem:[%s4 + $0x30] sm:$0xff]
          %v2384 = vld [vmem:[%s4 + $0x38] sm:$0xff]
          %v2385 = vld [vmem:[%s4 + $0x40] sm:$0xff]
          %v2386 = vld [vmem:[%s4 + $0x48] sm:$0xff]
          %v2387 = vld [vmem:[%s4 + $0x50] sm:$0xff]
          %v2388 = vld [vmem:[%s4 + $0x58] sm:$0xff]
          %v2389 = vld [vmem:[%s4 + $0x60] sm:$0xff]
          %v2390 = vld [vmem:[%s4 + $0x68] sm:$0xff]
          %v2391 = vld [vmem:[%s4 + $0x70] sm:$0xff]
          %v2392 = vld [vmem:[%s4 + $0x78] sm:$0xff]
          %2393 = vmatpush.msra.mxu0 %v2392
          %2394 = vmatpush.msra.mxu0 %v2391
          %2395 = vmatpush.msra.mxu0 %v2390
          %2396 = vmatpush.msra.mxu0 %v2389
          %2397 = vmatpush.msra.mxu0 %v2388
          %2398 = vmatpush.msra.mxu0 %v2387
          %2399 = vmatpush.msra.mxu0 %v2386
          %2400 = vmatpush.msra.mxu0 %v2385
          %2401 = vmatpush.msra.mxu0 %v2384
          %2402 = vmatpush.msra.mxu0 %v2383
          %2403 = vmatpush.msra.mxu0 %v2382
          %2404 = vmatpush.msra.mxu0 %v2381
          %2405 = vmatpush.msra.mxu0 %v2380
          %2406 = vmatpush.msra.mxu0 %v2379
          %2407 = vmatpush.msra.mxu0 %v2378
          %2408 = vmatpush.msra.mxu0 %v2377
          %2409 = vmatmul.f32.gmra.mxu0 %v2361
          %v2410 = vpop.f32.mrf.mxu0
          %v2411 = vadd.f32 0.0, %v2410
          %2412 = vmatmul.f32.gmra.mxu0 %v2362
          %v2413 = vpop.f32.mrf.mxu0
          %v2414 = vadd.f32 0.0, %v2413
          %2415 = vmatmul.f32.gmra.mxu0 %v2363
          %v2416 = vpop.f32.mrf.mxu0
          %v2417 = vadd.f32 0.0, %v2416
          %2418 = vmatmul.f32.gmra.mxu0 %v2364
          %v2419 = vpop.f32.mrf.mxu0
          %v2420 = vadd.f32 0.0, %v2419
          %2421 = vmatmul.f32.gmra.mxu0 %v2365
          %v2422 = vpop.f32.mrf.mxu0
          %v2423 = vadd.f32 0.0, %v2422
          %2424 = vmatmul.f32.gmra.mxu0 %v2366
          %v2425 = vpop.f32.mrf.mxu0
          %v2426 = vadd.f32 0.0, %v2425
          %2427 = vmatmul.f32.gmra.mxu0 %v2367
          %v2428 = vpop.f32.mrf.mxu0
          %v2429 = vadd.f32 0.0, %v2428
          %2430 = vmatmul.f32.gmra.mxu0 %v2368
          %v2431 = vpop.f32.mrf.mxu0
          %v2432 = vadd.f32 0.0, %v2431
          %2433 = vmatmul.f32.gmra.mxu0 %v2369
          %v2434 = vpop.f32.mrf.mxu0
          %v2435 = vadd.f32 0.0, %v2434
          %2436 = vmatmul.f32.gmra.mxu0 %v2370
          %v2437 = vpop.f32.mrf.mxu0
          %v2438 = vadd.f32 0.0, %v2437
          %2439 = vmatmul.f32.gmra.mxu0 %v2371
          %v2440 = vpop.f32.mrf.mxu0
          %v2441 = vadd.f32 0.0, %v2440
          %2442 = vmatmul.f32.gmra.mxu0 %v2372
          %v2443 = vpop.f32.mrf.mxu0
          %v2444 = vadd.f32 0.0, %v2443
          %2445 = vmatmul.f32.gmra.mxu0 %v2373
          %v2446 = vpop.f32.mrf.mxu0
          %v2447 = vadd.f32 0.0, %v2446
          %2448 = vmatmul.f32.gmra.mxu0 %v2374
          %v2449 = vpop.f32.mrf.mxu0
          %v2450 = vadd.f32 0.0, %v2449
          %2451 = vmatmul.f32.gmra.mxu0 %v2375
          %v2452 = vpop.f32.mrf.mxu0
          %v2453 = vadd.f32 0.0, %v2452
          %2454 = vmatmul.f32.gmra.mxu0 %v2376
          %v2455 = vpop.f32.mrf.mxu0
          %v2456 = vadd.f32 0.0, %v2455
          %2457 = vdwg.mxu0
          %2458 = vst [vmem:[%s614] sm:$0xff] %v2411
          %2459 = vst [vmem:[%s614 + $0x8] sm:$0xff] %v2414
          %2460 = vst [vmem:[%s614 + $0x10] sm:$0xff] %v2417
          %2461 = vst [vmem:[%s614 + $0x18] sm:$0xff] %v2420
          %2462 = vst [vmem:[%s614 + $0x20] sm:$0xff] %v2423
          %2463 = vst [vmem:[%s614 + $0x28] sm:$0xff] %v2426
          %2464 = vst [vmem:[%s614 + $0x30] sm:$0xff] %v2429
          %2465 = vst [vmem:[%s614 + $0x38] sm:$0xff] %v2432
          %2466 = vst [vmem:[%s614 + $0x40] sm:$0xff] %v2435
          %2467 = vst [vmem:[%s614 + $0x48] sm:$0xff] %v2438
          %2468 = vst [vmem:[%s614 + $0x50] sm:$0xff] %v2441
          %2469 = vst [vmem:[%s614 + $0x58] sm:$0xff] %v2444
          %2470 = vst [vmem:[%s614 + $0x60] sm:$0xff] %v2447
          %2471 = vst [vmem:[%s614 + $0x68] sm:$0xff] %v2450
          %2472 = vst [vmem:[%s614 + $0x70] sm:$0xff] %v2453
          %2473 = vst [vmem:[%s614 + $0x78] sm:$0xff] %v2456
          %v2474 = vld [vmem:[%s608] sm:$0xff]
          %v2475 = vld [vmem:[%s608 + $0x8] sm:$0xff]
          %v2476 = vld [vmem:[%s608 + $0x10] sm:$0xff]
          %v2477 = vld [vmem:[%s608 + $0x18] sm:$0xff]
          %v2478 = vld [vmem:[%s608 + $0x20] sm:$0xff]
          %v2479 = vld [vmem:[%s608 + $0x28] sm:$0xff]
          %v2480 = vld [vmem:[%s608 + $0x30] sm:$0xff]
          %v2481 = vld [vmem:[%s608 + $0x38] sm:$0xff]
          %v2482 = vld [vmem:[%s608 + $0x40] sm:$0xff]
          %v2483 = vld [vmem:[%s608 + $0x48] sm:$0xff]
          %v2484 = vld [vmem:[%s608 + $0x50] sm:$0xff]
          %v2485 = vld [vmem:[%s608 + $0x58] sm:$0xff]
          %v2486 = vld [vmem:[%s608 + $0x60] sm:$0xff]
          %v2487 = vld [vmem:[%s608 + $0x68] sm:$0xff]
          %v2488 = vld [vmem:[%s608 + $0x70] sm:$0xff]
          %v2489 = vld [vmem:[%s608 + $0x78] sm:$0xff]
          %v2490 = vld [vmem:[%s608 + $0x80] sm:$0xff]
          %v2491 = vld [vmem:[%s608 + $0x88] sm:$0xff]
          %v2492 = vld [vmem:[%s608 + $0x90] sm:$0xff]
          %v2493 = vld [vmem:[%s608 + $0x98] sm:$0xff]
          %v2494 = vld [vmem:[%s608 + $0xa0] sm:$0xff]
          %v2495 = vld [vmem:[%s608 + $0xa8] sm:$0xff]
          %v2496 = vld [vmem:[%s608 + $0xb0] sm:$0xff]
          %v2497 = vld [vmem:[%s608 + $0xb8] sm:$0xff]
          %v2498 = vld [vmem:[%s608 + $0xc0] sm:$0xff]
          %v2499 = vld [vmem:[%s608 + $0xc8] sm:$0xff]
          %v2500 = vld [vmem:[%s608 + $0xd0] sm:$0xff]
          %v2501 = vld [vmem:[%s608 + $0xd8] sm:$0xff]
          %v2502 = vld [vmem:[%s608 + $0xe0] sm:$0xff]
          %v2503 = vld [vmem:[%s608 + $0xe8] sm:$0xff]
          %v2504 = vld [vmem:[%s608 + $0xf0] sm:$0xff]
          %v2505 = vld [vmem:[%s608 + $0xf8] sm:$0xff]
          %v2506 = vld [vmem:[%s5] sm:$0xff]
          %v2507 = vld [vmem:[%s5 + $0x8] sm:$0xff]
          %v2508 = vld [vmem:[%s5 + $0x10] sm:$0xff]
          %v2509 = vld [vmem:[%s5 + $0x18] sm:$0xff]
          %v2510 = vld [vmem:[%s5 + $0x20] sm:$0xff]
          %v2511 = vld [vmem:[%s5 + $0x28] sm:$0xff]
          %v2512 = vld [vmem:[%s5 + $0x30] sm:$0xff]
          %v2513 = vld [vmem:[%s5 + $0x38] sm:$0xff]
          %v2514 = vld [vmem:[%s5 + $0x40] sm:$0xff]
          %v2515 = vld [vmem:[%s5 + $0x48] sm:$0xff]
          %v2516 = vld [vmem:[%s5 + $0x50] sm:$0xff]
          %v2517 = vld [vmem:[%s5 + $0x58] sm:$0xff]
          %v2518 = vld [vmem:[%s5 + $0x60] sm:$0xff]
          %v2519 = vld [vmem:[%s5 + $0x68] sm:$0xff]
          %v2520 = vld [vmem:[%s5 + $0x70] sm:$0xff]
          %v2521 = vld [vmem:[%s5 + $0x78] sm:$0xff]
          %v2522 = vmax.f32 %v2474, 0.0
          %v2523 = vmax.f32 %v2476, 0.0
          %v2524 = vmax.f32 %v2478, 0.0
          %v2525 = vmax.f32 %v2480, 0.0
          %v2526 = vmax.f32 %v2482, 0.0
          %v2527 = vmax.f32 %v2484, 0.0
          %v2528 = vmax.f32 %v2486, 0.0
          %v2529 = vmax.f32 %v2488, 0.0
          %v2530 = vmax.f32 %v2490, 0.0
          %v2531 = vmax.f32 %v2492, 0.0
          %v2532 = vmax.f32 %v2494, 0.0
          %v2533 = vmax.f32 %v2496, 0.0
          %v2534 = vmax.f32 %v2498, 0.0
          %v2535 = vmax.f32 %v2500, 0.0
          %v2536 = vmax.f32 %v2502, 0.0
          %v2537 = vmax.f32 %v2504, 0.0
          %2538 = vmatpush.msra.mxu0 %v2521
          %2539 = vmatpush.msra.mxu0 %v2520
          %2540 = vmatpush.msra.mxu0 %v2519
          %2541 = vmatpush.msra.mxu0 %v2518
          %2542 = vmatpush.msra.mxu0 %v2517
          %2543 = vmatpush.msra.mxu0 %v2516
          %2544 = vmatpush.msra.mxu0 %v2515
          %2545 = vmatpush.msra.mxu0 %v2514
          %2546 = vmatpush.msra.mxu0 %v2513
          %2547 = vmatpush.msra.mxu0 %v2512
          %2548 = vmatpush.msra.mxu0 %v2511
          %2549 = vmatpush.msra.mxu0 %v2510
          %2550 = vmatpush.msra.mxu0 %v2509
          %2551 = vmatpush.msra.mxu0 %v2508
          %2552 = vmatpush.msra.mxu0 %v2507
          %2553 = vmatpush.msra.mxu0 %v2506
          %2554 = vmatmul.f32.gmra.mxu0 %v2522
          %v2555 = vpop.f32.mrf.mxu0
          %v2556 = vadd.f32 0.0, %v2555
          %2557 = vmatmul.f32.gmra.mxu0 %v2523
          %v2558 = vpop.f32.mrf.mxu0
          %v2559 = vadd.f32 0.0, %v2558
          %2560 = vmatmul.f32.gmra.mxu0 %v2524
          %v2561 = vpop.f32.mrf.mxu0
          %v2562 = vadd.f32 0.0, %v2561
          %2563 = vmatmul.f32.gmra.mxu0 %v2525
          %v2564 = vpop.f32.mrf.mxu0
          %v2565 = vadd.f32 0.0, %v2564
          %2566 = vmatmul.f32.gmra.mxu0 %v2526
          %v2567 = vpop.f32.mrf.mxu0
          %v2568 = vadd.f32 0.0, %v2567
          %2569 = vmatmul.f32.gmra.mxu0 %v2527
          %v2570 = vpop.f32.mrf.mxu0
          %v2571 = vadd.f32 0.0, %v2570
          %2572 = vmatmul.f32.gmra.mxu0 %v2528
          %v2573 = vpop.f32.mrf.mxu0
          %v2574 = vadd.f32 0.0, %v2573
          %2575 = vmatmul.f32.gmra.mxu0 %v2529
          %v2576 = vpop.f32.mrf.mxu0
          %v2577 = vadd.f32 0.0, %v2576
          %2578 = vmatmul.f32.gmra.mxu0 %v2530
          %v2579 = vpop.f32.mrf.mxu0
          %v2580 = vadd.f32 0.0, %v2579
          %2581 = vmatmul.f32.gmra.mxu0 %v2531
          %v2582 = vpop.f32.mrf.mxu0
          %v2583 = vadd.f32 0.0, %v2582
          %2584 = vmatmul.f32.gmra.mxu0 %v2532
          %v2585 = vpop.f32.mrf.mxu0
          %v2586 = vadd.f32 0.0, %v2585
          %2587 = vmatmul.f32.gmra.mxu0 %v2533
          %v2588 = vpop.f32.mrf.mxu0
          %v2589 = vadd.f32 0.0, %v2588
          %2590 = vmatmul.f32.gmra.mxu0 %v2534
          %v2591 = vpop.f32.mrf.mxu0
          %v2592 = vadd.f32 0.0, %v2591
          %2593 = vmatmul.f32.gmra.mxu0 %v2535
          %v2594 = vpop.f32.mrf.mxu0
          %v2595 = vadd.f32 0.0, %v2594
          %2596 = vmatmul.f32.gmra.mxu0 %v2536
          %v2597 = vpop.f32.mrf.mxu0
          %v2598 = vadd.f32 0.0, %v2597
          %2599 = vmatmul.f32.gmra.mxu0 %v2537
          %v2600 = vpop.f32.mrf.mxu0
          %v2601 = vadd.f32 0.0, %v2600
          %2602 = vdwg.mxu0
          %v2603 = vmax.f32 %v2475, 0.0
          %v2604 = vmax.f32 %v2477, 0.0
          %v2605 = vmax.f32 %v2479, 0.0
          %v2606 = vmax.f32 %v2481, 0.0
          %v2607 = vmax.f32 %v2483, 0.0
          %v2608 = vmax.f32 %v2485, 0.0
          %v2609 = vmax.f32 %v2487, 0.0
          %v2610 = vmax.f32 %v2489, 0.0
          %v2611 = vmax.f32 %v2491, 0.0
          %v2612 = vmax.f32 %v2493, 0.0
          %v2613 = vmax.f32 %v2495, 0.0
          %v2614 = vmax.f32 %v2497, 0.0
          %v2615 = vmax.f32 %v2499, 0.0
          %v2616 = vmax.f32 %v2501, 0.0
          %v2617 = vmax.f32 %v2503, 0.0
          %v2618 = vmax.f32 %v2505, 0.0
          %2619 = vmatpush.msra.mxu0 %v2521
          %2620 = vmatpush.msra.mxu0 %v2520
          %2621 = vmatpush.msra.mxu0 %v2519
          %2622 = vmatpush.msra.mxu0 %v2518
          %2623 = vmatpush.msra.mxu0 %v2517
          %2624 = vmatpush.msra.mxu0 %v2516
          %2625 = vmatpush.msra.mxu0 %v2515
          %2626 = vmatpush.msra.mxu0 %v2514
          %2627 = vmatpush.msra.mxu0 %v2513
          %2628 = vmatpush.msra.mxu0 %v2512
          %2629 = vmatpush.msra.mxu0 %v2511
          %2630 = vmatpush.msra.mxu0 %v2510
          %2631 = vmatpush.msra.mxu0 %v2509
          %2632 = vmatpush.msra.mxu0 %v2508
          %2633 = vmatpush.msra.mxu0 %v2507
          %2634 = vmatpush.msra.mxu0 %v2506
          %2635 = vmatmul.f32.gmra.mxu0 %v2603
          %v2636 = vpop.f32.mrf.mxu0
          %v2637 = vadd.f32 0.0, %v2636
          %2638 = vmatmul.f32.gmra.mxu0 %v2604
          %v2639 = vpop.f32.mrf.mxu0
          %v2640 = vadd.f32 0.0, %v2639
          %2641 = vmatmul.f32.gmra.mxu0 %v2605
          %v2642 = vpop.f32.mrf.mxu0
          %v2643 = vadd.f32 0.0, %v2642
          %2644 = vmatmul.f32.gmra.mxu0 %v2606
          %v2645 = vpop.f32.mrf.mxu0
          %v2646 = vadd.f32 0.0, %v2645
          %2647 = vmatmul.f32.gmra.mxu0 %v2607
          %v2648 = vpop.f32.mrf.mxu0
          %v2649 = vadd.f32 0.0, %v2648
          %2650 = vmatmul.f32.gmra.mxu0 %v2608
          %v2651 = vpop.f32.mrf.mxu0
          %v2652 = vadd.f32 0.0, %v2651
          %2653 = vmatmul.f32.gmra.mxu0 %v2609
          %v2654 = vpop.f32.mrf.mxu0
          %v2655 = vadd.f32 0.0, %v2654
          %2656 = vmatmul.f32.gmra.mxu0 %v2610
          %v2657 = vpop.f32.mrf.mxu0
          %v2658 = vadd.f32 0.0, %v2657
          %2659 = vmatmul.f32.gmra.mxu0 %v2611
          %v2660 = vpop.f32.mrf.mxu0
          %v2661 = vadd.f32 0.0, %v2660
          %2662 = vmatmul.f32.gmra.mxu0 %v2612
          %v2663 = vpop.f32.mrf.mxu0
          %v2664 = vadd.f32 0.0, %v2663
          %2665 = vmatmul.f32.gmra.mxu0 %v2613
          %v2666 = vpop.f32.mrf.mxu0
          %v2667 = vadd.f32 0.0, %v2666
          %2668 = vmatmul.f32.gmra.mxu0 %v2614
          %v2669 = vpop.f32.mrf.mxu0
          %v2670 = vadd.f32 0.0, %v2669
          %2671 = vmatmul.f32.gmra.mxu0 %v2615
          %v2672 = vpop.f32.mrf.mxu0
          %v2673 = vadd.f32 0.0, %v2672
          %2674 = vmatmul.f32.gmra.mxu0 %v2616
          %v2675 = vpop.f32.mrf.mxu0
          %v2676 = vadd.f32 0.0, %v2675
          %2677 = vmatmul.f32.gmra.mxu0 %v2617
          %v2678 = vpop.f32.mrf.mxu0
          %v2679 = vadd.f32 0.0, %v2678
          %2680 = vmatmul.f32.gmra.mxu0 %v2618
          %v2681 = vpop.f32.mrf.mxu0
          %v2682 = vadd.f32 0.0, %v2681
          %2683 = vdwg.mxu0
          %s2684 = sld [smem:[#allocation4]]
          %v2685 = vmul.f32 %v2556, %v1575
          %v2686 = vmul.f32 %v2559, %v1590
          %v2687 = vmul.f32 %v2562, %v1605
          %v2688 = vmul.f32 %v2565, %v1620
          %v2689 = vmul.f32 %v2568, %v1635
          %v2690 = vmul.f32 %v2571, %v1650
          %v2691 = vmul.f32 %v2574, %v1665
          %v2692 = vmul.f32 %v2577, %v1680
          %v2693 = vmul.f32 %v2580, %v1695
          %v2694 = vmul.f32 %v2583, %v1710
          %v2695 = vmul.f32 %v2586, %v1725
          %v2696 = vmul.f32 %v2589, %v1740
          %v2697 = vmul.f32 %v2592, %v1755
          %v2698 = vmul.f32 %v2595, %v1770
          %v2699 = vmul.f32 %v2598, %v1785
          %v2700 = vmul.f32 %v2601, %v1800
          %2701 = vadd.xlane.f32.xlu0 %v2685
          %v2702 = vpop.xlane.xlu0 %2701
          %2703 = vadd.xlane.f32.xlu0 %v2686
          %v2704 = vpop.xlane.xlu0 %2703
          %2705 = vadd.xlane.f32.xlu0 %v2687
          %v2706 = vpop.xlane.xlu0 %2705
          %2707 = vadd.xlane.f32.xlu0 %v2688
          %v2708 = vpop.xlane.xlu0 %2707
          %2709 = vadd.xlane.f32.xlu0 %v2689
          %v2710 = vpop.xlane.xlu0 %2709
          %2711 = vadd.xlane.f32.xlu0 %v2690
          %v2712 = vpop.xlane.xlu0 %2711
          %2713 = vadd.xlane.f32.xlu0 %v2691
          %v2714 = vpop.xlane.xlu0 %2713
          %2715 = vadd.xlane.f32.xlu0 %v2692
          %v2716 = vpop.xlane.xlu0 %2715
          %2717 = vadd.xlane.f32.xlu0 %v2693
          %v2718 = vpop.xlane.xlu0 %2717
          %2719 = vadd.xlane.f32.xlu0 %v2694
          %v2720 = vpop.xlane.xlu0 %2719
          %2721 = vadd.xlane.f32.xlu0 %v2695
          %v2722 = vpop.xlane.xlu0 %2721
          %2723 = vadd.xlane.f32.xlu0 %v2696
          %v2724 = vpop.xlane.xlu0 %2723
          %2725 = vadd.xlane.f32.xlu0 %v2697
          %v2726 = vpop.xlane.xlu0 %2725
          %2727 = vadd.xlane.f32.xlu0 %v2698
          %v2728 = vpop.xlane.xlu0 %2727
          %2729 = vadd.xlane.f32.xlu0 %v2699
          %v2730 = vpop.xlane.xlu0 %2729
          %2731 = vadd.xlane.f32.xlu0 %v2700
          %v2732 = vpop.xlane.xlu0 %2731
          %v2733 = vstv %s2684
          %v2734 = vadd.f32 %v2702, %v2733
          %v2735 = vadd.f32 %v2704, %v2733
          %v2736 = vadd.f32 %v2706, %v2733
          %v2737 = vadd.f32 %v2708, %v2733
          %v2738 = vadd.f32 %v2710, %v2733
          %v2739 = vadd.f32 %v2712, %v2733
          %v2740 = vadd.f32 %v2714, %v2733
          %v2741 = vadd.f32 %v2716, %v2733
          %v2742 = vadd.f32 %v2718, %v2733
          %v2743 = vadd.f32 %v2720, %v2733
          %v2744 = vadd.f32 %v2722, %v2733
          %v2745 = vadd.f32 %v2724, %v2733
          %v2746 = vadd.f32 %v2726, %v2733
          %v2747 = vadd.f32 %v2728, %v2733
          %v2748 = vadd.f32 %v2730, %v2733
          %v2749 = vadd.f32 %v2732, %v2733
          %v2750 = vmul.f32 %v2637, %v1575
          %v2751 = vmul.f32 %v2640, %v1590
          %v2752 = vmul.f32 %v2643, %v1605
          %v2753 = vmul.f32 %v2646, %v1620
          %v2754 = vmul.f32 %v2649, %v1635
          %v2755 = vmul.f32 %v2652, %v1650
          %v2756 = vmul.f32 %v2655, %v1665
          %v2757 = vmul.f32 %v2658, %v1680
          %v2758 = vmul.f32 %v2661, %v1695
          %v2759 = vmul.f32 %v2664, %v1710
          %v2760 = vmul.f32 %v2667, %v1725
          %v2761 = vmul.f32 %v2670, %v1740
          %v2762 = vmul.f32 %v2673, %v1755
          %v2763 = vmul.f32 %v2676, %v1770
          %v2764 = vmul.f32 %v2679, %v1785
          %v2765 = vmul.f32 %v2682, %v1800
          %2766 = vadd.xlane.f32.xlu0 %v2750
          %v2767 = vpop.xlane.xlu0 %2766
          %2768 = vadd.xlane.f32.xlu0 %v2751
          %v2769 = vpop.xlane.xlu0 %2768
          %2770 = vadd.xlane.f32.xlu0 %v2752
          %v2771 = vpop.xlane.xlu0 %2770
          %2772 = vadd.xlane.f32.xlu0 %v2753
          %v2773 = vpop.xlane.xlu0 %2772
          %2774 = vadd.xlane.f32.xlu0 %v2754
          %v2775 = vpop.xlane.xlu0 %2774
          %2776 = vadd.xlane.f32.xlu0 %v2755
          %v2777 = vpop.xlane.xlu0 %2776
          %2778 = vadd.xlane.f32.xlu0 %v2756
          %v2779 = vpop.xlane.xlu0 %2778
          %2780 = vadd.xlane.f32.xlu0 %v2757
          %v2781 = vpop.xlane.xlu0 %2780
          %2782 = vadd.xlane.f32.xlu0 %v2758
          %v2783 = vpop.xlane.xlu0 %2782
          %2784 = vadd.xlane.f32.xlu0 %v2759
          %v2785 = vpop.xlane.xlu0 %2784
          %2786 = vadd.xlane.f32.xlu0 %v2760
          %v2787 = vpop.xlane.xlu0 %2786
          %2788 = vadd.xlane.f32.xlu0 %v2761
          %v2789 = vpop.xlane.xlu0 %2788
          %2790 = vadd.xlane.f32.xlu0 %v2762
          %v2791 = vpop.xlane.xlu0 %2790
          %2792 = vadd.xlane.f32.xlu0 %v2763
          %v2793 = vpop.xlane.xlu0 %2792
          %2794 = vadd.xlane.f32.xlu0 %v2764
          %v2795 = vpop.xlane.xlu0 %2794
          %2796 = vadd.xlane.f32.xlu0 %v2765
          %v2797 = vpop.xlane.xlu0 %2796
          %v2798 = vadd.f32 %v2767, %v2733
          %v2799 = vadd.f32 %v2769, %v2733
          %v2800 = vadd.f32 %v2771, %v2733
          %v2801 = vadd.f32 %v2773, %v2733
          %v2802 = vadd.f32 %v2775, %v2733
          %v2803 = vadd.f32 %v2777, %v2733
          %v2804 = vadd.f32 %v2779, %v2733
          %v2805 = vadd.f32 %v2781, %v2733
          %v2806 = vadd.f32 %v2783, %v2733
          %v2807 = vadd.f32 %v2785, %v2733
          %v2808 = vadd.f32 %v2787, %v2733
          %v2809 = vadd.f32 %v2789, %v2733
          %v2810 = vadd.f32 %v2791, %v2733
          %v2811 = vadd.f32 %v2793, %v2733
          %v2812 = vadd.f32 %v2795, %v2733
          %v2813 = vadd.f32 %v2797, %v2733
          %v2814 = vmul.f32 %v2637, %v2135
          %v2815 = vmul.f32 %v2640, %v2150
          %v2816 = vmul.f32 %v2643, %v2165
          %v2817 = vmul.f32 %v2646, %v2180
          %v2818 = vmul.f32 %v2649, %v2195
          %v2819 = vmul.f32 %v2652, %v2210
          %v2820 = vmul.f32 %v2655, %v2225
          %v2821 = vmul.f32 %v2658, %v2240
          %v2822 = vmul.f32 %v2661, %v2255
          %v2823 = vmul.f32 %v2664, %v2270
          %v2824 = vmul.f32 %v2667, %v2285
          %v2825 = vmul.f32 %v2670, %v2300
          %v2826 = vmul.f32 %v2673, %v2315
          %v2827 = vmul.f32 %v2676, %v2330
          %v2828 = vmul.f32 %v2679, %v2345
          %v2829 = vmul.f32 %v2682, %v2360
          %2830 = vadd.xlane.f32.xlu0 %v2814
          %v2831 = vpop.xlane.xlu0 %2830
          %2832 = vadd.xlane.f32.xlu0 %v2815
          %v2833 = vpop.xlane.xlu0 %2832
          %2834 = vadd.xlane.f32.xlu0 %v2816
          %v2835 = vpop.xlane.xlu0 %2834
          %2836 = vadd.xlane.f32.xlu0 %v2817
          %v2837 = vpop.xlane.xlu0 %2836
          %2838 = vadd.xlane.f32.xlu0 %v2818
          %v2839 = vpop.xlane.xlu0 %2838
          %2840 = vadd.xlane.f32.xlu0 %v2819
          %v2841 = vpop.xlane.xlu0 %2840
          %2842 = vadd.xlane.f32.xlu0 %v2820
          %v2843 = vpop.xlane.xlu0 %2842
          %2844 = vadd.xlane.f32.xlu0 %v2821
          %v2845 = vpop.xlane.xlu0 %2844
          %2846 = vadd.xlane.f32.xlu0 %v2822
          %v2847 = vpop.xlane.xlu0 %2846
          %2848 = vadd.xlane.f32.xlu0 %v2823
          %v2849 = vpop.xlane.xlu0 %2848
          %2850 = vadd.xlane.f32.xlu0 %v2824
          %v2851 = vpop.xlane.xlu0 %2850
          %2852 = vadd.xlane.f32.xlu0 %v2825
          %v2853 = vpop.xlane.xlu0 %2852
          %2854 = vadd.xlane.f32.xlu0 %v2826
          %v2855 = vpop.xlane.xlu0 %2854
          %2856 = vadd.xlane.f32.xlu0 %v2827
          %v2857 = vpop.xlane.xlu0 %2856
          %2858 = vadd.xlane.f32.xlu0 %v2828
          %v2859 = vpop.xlane.xlu0 %2858
          %2860 = vadd.xlane.f32.xlu0 %v2829
          %v2861 = vpop.xlane.xlu0 %2860
          %v2862 = vadd.f32 %v2831, %v2733
          %v2863 = vadd.f32 %v2833, %v2733
          %v2864 = vadd.f32 %v2835, %v2733
          %v2865 = vadd.f32 %v2837, %v2733
          %v2866 = vadd.f32 %v2839, %v2733
          %v2867 = vadd.f32 %v2841, %v2733
          %v2868 = vadd.f32 %v2843, %v2733
          %v2869 = vadd.f32 %v2845, %v2733
          %v2870 = vadd.f32 %v2847, %v2733
          %v2871 = vadd.f32 %v2849, %v2733
          %v2872 = vadd.f32 %v2851, %v2733
          %v2873 = vadd.f32 %v2853, %v2733
          %v2874 = vadd.f32 %v2855, %v2733
          %v2875 = vadd.f32 %v2857, %v2733
          %v2876 = vadd.f32 %v2859, %v2733
          %v2877 = vadd.f32 %v2861, %v2733
          %v2878 = vmul.f32 %v2556, %v2135
          %v2879 = vmul.f32 %v2559, %v2150
          %v2880 = vmul.f32 %v2562, %v2165
          %v2881 = vmul.f32 %v2565, %v2180
          %v2882 = vmul.f32 %v2568, %v2195
          %v2883 = vmul.f32 %v2571, %v2210
          %v2884 = vmul.f32 %v2574, %v2225
          %v2885 = vmul.f32 %v2577, %v2240
          %v2886 = vmul.f32 %v2580, %v2255
          %v2887 = vmul.f32 %v2583, %v2270
          %v2888 = vmul.f32 %v2586, %v2285
          %v2889 = vmul.f32 %v2589, %v2300
          %v2890 = vmul.f32 %v2592, %v2315
          %v2891 = vmul.f32 %v2595, %v2330
          %v2892 = vmul.f32 %v2598, %v2345
          %v2893 = vmul.f32 %v2601, %v2360
          %2894 = vadd.xlane.f32.xlu0 %v2878
          %v2895 = vpop.xlane.xlu0 %2894
          %2896 = vadd.xlane.f32.xlu0 %v2879
          %v2897 = vpop.xlane.xlu0 %2896
          %2898 = vadd.xlane.f32.xlu0 %v2880
          %v2899 = vpop.xlane.xlu0 %2898
          %2900 = vadd.xlane.f32.xlu0 %v2881
          %v2901 = vpop.xlane.xlu0 %2900
          %2902 = vadd.xlane.f32.xlu0 %v2882
          %v2903 = vpop.xlane.xlu0 %2902
          %2904 = vadd.xlane.f32.xlu0 %v2883
          %v2905 = vpop.xlane.xlu0 %2904
          %2906 = vadd.xlane.f32.xlu0 %v2884
          %v2907 = vpop.xlane.xlu0 %2906
          %2908 = vadd.xlane.f32.xlu0 %v2885
          %v2909 = vpop.xlane.xlu0 %2908
          %2910 = vadd.xlane.f32.xlu0 %v2886
          %v2911 = vpop.xlane.xlu0 %2910
          %2912 = vadd.xlane.f32.xlu0 %v2887
          %v2913 = vpop.xlane.xlu0 %2912
          %2914 = vadd.xlane.f32.xlu0 %v2888
          %v2915 = vpop.xlane.xlu0 %2914
          %2916 = vadd.xlane.f32.xlu0 %v2889
          %v2917 = vpop.xlane.xlu0 %2916
          %2918 = vadd.xlane.f32.xlu0 %v2890
          %v2919 = vpop.xlane.xlu0 %2918
          %2920 = vadd.xlane.f32.xlu0 %v2891
          %v2921 = vpop.xlane.xlu0 %2920
          %2922 = vadd.xlane.f32.xlu0 %v2892
          %v2923 = vpop.xlane.xlu0 %2922
          %2924 = vadd.xlane.f32.xlu0 %v2893
          %v2925 = vpop.xlane.xlu0 %2924
          %v2926 = vadd.f32 %v2895, %v2733
          %v2927 = vadd.f32 %v2897, %v2733
          %v2928 = vadd.f32 %v2899, %v2733
          %v2929 = vadd.f32 %v2901, %v2733
          %v2930 = vadd.f32 %v2903, %v2733
          %v2931 = vadd.f32 %v2905, %v2733
          %v2932 = vadd.f32 %v2907, %v2733
          %v2933 = vadd.f32 %v2909, %v2733
          %v2934 = vadd.f32 %v2911, %v2733
          %v2935 = vadd.f32 %v2913, %v2733
          %v2936 = vadd.f32 %v2915, %v2733
          %v2937 = vadd.f32 %v2917, %v2733
          %v2938 = vadd.f32 %v2919, %v2733
          %v2939 = vadd.f32 %v2921, %v2733
          %v2940 = vadd.f32 %v2923, %v2733
          %v2941 = vadd.f32 %v2925, %v2733
          %v2942 = vlaneseq
          %v2943 = vand.u32 %v2942, 127
          %vm2944 = vcmp.eq.s32.totalorder %v2943, 0
          %v2945 = vsel %vm2944, %v2734, 0.0
          %v2946 = vsel %vm2944, %v2735, 0.0
          %v2947 = vsel %vm2944, %v2736, 0.0
          %v2948 = vsel %vm2944, %v2737, 0.0
          %v2949 = vsel %vm2944, %v2738, 0.0
          %v2950 = vsel %vm2944, %v2739, 0.0
          %v2951 = vsel %vm2944, %v2740, 0.0
          %v2952 = vsel %vm2944, %v2741, 0.0
          %v2953 = vsel %vm2944, %v2742, 0.0
          %v2954 = vsel %vm2944, %v2743, 0.0
          %v2955 = vsel %vm2944, %v2744, 0.0
          %v2956 = vsel %vm2944, %v2745, 0.0
          %v2957 = vsel %vm2944, %v2746, 0.0
          %v2958 = vsel %vm2944, %v2747, 0.0
          %v2959 = vsel %vm2944, %v2748, 0.0
          %v2960 = vsel %vm2944, %v2749, 0.0
          %vm2961 = vcmp.eq.s32.totalorder %v2943, 1
          %v2962 = vsel %vm2961, %v2798, 0.0
          %v2963 = vsel %vm2961, %v2799, 0.0
          %v2964 = vsel %vm2961, %v2800, 0.0
          %v2965 = vsel %vm2961, %v2801, 0.0
          %v2966 = vsel %vm2961, %v2802, 0.0
          %v2967 = vsel %vm2961, %v2803, 0.0
          %v2968 = vsel %vm2961, %v2804, 0.0
          %v2969 = vsel %vm2961, %v2805, 0.0
          %v2970 = vsel %vm2961, %v2806, 0.0
          %v2971 = vsel %vm2961, %v2807, 0.0
          %v2972 = vsel %vm2961, %v2808, 0.0
          %v2973 = vsel %vm2961, %v2809, 0.0
          %v2974 = vsel %vm2961, %v2810, 0.0
          %v2975 = vsel %vm2961, %v2811, 0.0
          %v2976 = vsel %vm2961, %v2812, 0.0
          %v2977 = vsel %vm2961, %v2813, 0.0
          %v2978 = vadd.f32 %v2945, %v2962
          %v2979 = vadd.f32 %v2946, %v2963
          %v2980 = vadd.f32 %v2947, %v2964
          %v2981 = vadd.f32 %v2948, %v2965
          %v2982 = vadd.f32 %v2949, %v2966
          %v2983 = vadd.f32 %v2950, %v2967
          %v2984 = vadd.f32 %v2951, %v2968
          %v2985 = vadd.f32 %v2952, %v2969
          %v2986 = vadd.f32 %v2953, %v2970
          %v2987 = vadd.f32 %v2954, %v2971
          %v2988 = vadd.f32 %v2955, %v2972
          %v2989 = vadd.f32 %v2956, %v2973
          %v2990 = vadd.f32 %v2957, %v2974
          %v2991 = vadd.f32 %v2958, %v2975
          %v2992 = vadd.f32 %v2959, %v2976
          %v2993 = vadd.f32 %v2960, %v2977
          %vm2994 = vcmp.eq.s32.totalorder %v2943, 2
          %v2995 = vsel %vm2994, %v2862, 0.0
          %v2996 = vsel %vm2994, %v2863, 0.0
          %v2997 = vsel %vm2994, %v2864, 0.0
          %v2998 = vsel %vm2994, %v2865, 0.0
          %v2999 = vsel %vm2994, %v2866, 0.0
          %v3000 = vsel %vm2994, %v2867, 0.0
          %v3001 = vsel %vm2994, %v2868, 0.0
          %v3002 = vsel %vm2994, %v2869, 0.0
          %v3003 = vsel %vm2994, %v2870, 0.0
          %v3004 = vsel %vm2994, %v2871, 0.0
          %v3005 = vsel %vm2994, %v2872, 0.0
          %v3006 = vsel %vm2994, %v2873, 0.0
          %v3007 = vsel %vm2994, %v2874, 0.0
          %v3008 = vsel %vm2994, %v2875, 0.0
          %v3009 = vsel %vm2994, %v2876, 0.0
          %v3010 = vsel %vm2994, %v2877, 0.0
          %v3011 = vadd.f32 %v2978, %v2995
          %v3012 = vadd.f32 %v2979, %v2996
          %v3013 = vadd.f32 %v2980, %v2997
          %v3014 = vadd.f32 %v2981, %v2998
          %v3015 = vadd.f32 %v2982, %v2999
          %v3016 = vadd.f32 %v2983, %v3000
          %v3017 = vadd.f32 %v2984, %v3001
          %v3018 = vadd.f32 %v2985, %v3002
          %v3019 = vadd.f32 %v2986, %v3003
          %v3020 = vadd.f32 %v2987, %v3004
          %v3021 = vadd.f32 %v2988, %v3005
          %v3022 = vadd.f32 %v2989, %v3006
          %v3023 = vadd.f32 %v2990, %v3007
          %v3024 = vadd.f32 %v2991, %v3008
          %v3025 = vadd.f32 %v2992, %v3009
          %v3026 = vadd.f32 %v2993, %v3010
          %vm3027 = vcmp.eq.s32.totalorder %v2943, 3
          %v3028 = vsel %vm3027, %v2926, 0.0
          %v3029 = vsel %vm3027, %v2927, 0.0
          %v3030 = vsel %vm3027, %v2928, 0.0
          %v3031 = vsel %vm3027, %v2929, 0.0
          %v3032 = vsel %vm3027, %v2930, 0.0
          %v3033 = vsel %vm3027, %v2931, 0.0
          %v3034 = vsel %vm3027, %v2932, 0.0
          %v3035 = vsel %vm3027, %v2933, 0.0
          %v3036 = vsel %vm3027, %v2934, 0.0
          %v3037 = vsel %vm3027, %v2935, 0.0
          %v3038 = vsel %vm3027, %v2936, 0.0
          %v3039 = vsel %vm3027, %v2937, 0.0
          %v3040 = vsel %vm3027, %v2938, 0.0
          %v3041 = vsel %vm3027, %v2939, 0.0
          %v3042 = vsel %vm3027, %v2940, 0.0
          %v3043 = vsel %vm3027, %v2941, 0.0
          %v3044 = vadd.f32 %v3011, %v3028
          %v3045 = vadd.f32 %v3012, %v3029
          %v3046 = vadd.f32 %v3013, %v3030
          %v3047 = vadd.f32 %v3014, %v3031
          %v3048 = vadd.f32 %v3015, %v3032
          %v3049 = vadd.f32 %v3016, %v3033
          %v3050 = vadd.f32 %v3017, %v3034
          %v3051 = vadd.f32 %v3018, %v3035
          %v3052 = vadd.f32 %v3019, %v3036
          %v3053 = vadd.f32 %v3020, %v3037
          %v3054 = vadd.f32 %v3021, %v3038
          %v3055 = vadd.f32 %v3022, %v3039
          %v3056 = vadd.f32 %v3023, %v3040
          %v3057 = vadd.f32 %v3024, %v3041
          %v3058 = vadd.f32 %v3025, %v3042
          %v3059 = vadd.f32 %v3026, %v3043
          %3060 = vst [vmem:[%s620] sm:$0xff] %v3044
          %3061 = vst [vmem:[%s620 + $0x8] sm:$0xff] %v3045
          %3062 = vst [vmem:[%s620 + $0x10] sm:$0xff] %v3046
          %3063 = vst [vmem:[%s620 + $0x18] sm:$0xff] %v3047
          %3064 = vst [vmem:[%s620 + $0x20] sm:$0xff] %v3048
          %3065 = vst [vmem:[%s620 + $0x28] sm:$0xff] %v3049
          %3066 = vst [vmem:[%s620 + $0x30] sm:$0xff] %v3050
          %3067 = vst [vmem:[%s620 + $0x38] sm:$0xff] %v3051
          %3068 = vst [vmem:[%s620 + $0x40] sm:$0xff] %v3052
          %3069 = vst [vmem:[%s620 + $0x48] sm:$0xff] %v3053
          %3070 = vst [vmem:[%s620 + $0x50] sm:$0xff] %v3054
          %3071 = vst [vmem:[%s620 + $0x58] sm:$0xff] %v3055
          %3072 = vst [vmem:[%s620 + $0x60] sm:$0xff] %v3056
          %3073 = vst [vmem:[%s620 + $0x68] sm:$0xff] %v3057
          %3074 = vst [vmem:[%s620 + $0x70] sm:$0xff] %v3058
          %3075 = vst [vmem:[%s620 + $0x78] sm:$0xff] %v3059
        $region138: #{autoencoder_g_forward.5} parent=121 // pred_fallthru
          _
        %s3076 = smul.u32 16, %s25
        %p3077 = scmp.lt.s32.totalorder %s3076, 31
        %s3078 = scalar_select %p3077, %s3076, 31
        %s3079 = smul.addr %s3078, 8
        %s3080 = scalar_lea.vmem %s7, %s3079
        %s3081 = smul.u32 16, %s25
        %p3082 = scmp.lt.s32.totalorder %s3081, 31
        %s3083 = scalar_select %p3082, %s3081, 31
        %s3084 = smul.addr %s3083, 8
        %s3085 = scalar_lea.vmem %s8, %s3084
        // Predicated region
        $region139: #{autoencoder_g_forward.5} parent=121 // pred_check
          %p3086 = pneg %p222
        $region140: #{autoencoder_g_forward.5} parent=121 // pred_check_branch
          %3088 = sbr.rel (%p3086) target = $region142
        $region141: #{autoencoder_g_forward.5} parent=121 // pred_region
          %s3089 = smul.u32 16, %s25
        $region142: #{autoencoder_g_forward.5} parent=121 // pred_fallthru
          _
        // Predicated region
        $region143: #{autoencoder_g_forward.5} parent=121 // pred_check
          %p3090 = pneg %p248
        $region144: #{autoencoder_g_forward.5} parent=121 // pred_check_branch
          %3092 = sbr.rel (%p3090) target = $region146
        $region145: #{autoencoder_g_forward.5} parent=121 // pred_region
          %s3093 = smul.u32 16, %s25
        $region146: #{autoencoder_g_forward.5} parent=121 // pred_fallthru
          _
      $region122: #{autoencoder_g_forward.5} parent=5 // pred_fallthru
        _
      %p3094 = scmp.le.s32.totalorder 2, %s16
      // Predicated region
      $region147: #{autoencoder_g_forward.5} parent=5 // pred_check
        %p3095 = pneg %p3094
      $region148: #{autoencoder_g_forward.5} parent=5 // pred_check_branch
        %3097 = sbr.rel (%p3095) target = $region150
      $region149: #{autoencoder_g_forward.5} parent=5 // pred_region
        %s3098 = ssub.s32 %s16, 2
        // Predicated region
        $region151: #{autoencoder_g_forward.5} parent=149 // pred_check
          %p3099 = pneg %p228
        $region152: #{autoencoder_g_forward.5} parent=149 // pred_check_branch
          %3101 = sbr.rel (%p3099) target = $region154
        $region153: #{autoencoder_g_forward.5} parent=149 // pred_region
          %s3102 = smul.u32 16, %s27
          %p3103 = scmp.lt.s32.totalorder %s3102, 31
          %s3104 = scalar_select %p3103, %s3102, 31
          %s3105 = smul.addr %s3104, 8
          %s3106 = scalar_lea.vmem %s7, %s3105
        $region154: #{autoencoder_g_forward.5} parent=149 // pred_fallthru
          _
        // Predicated region
        $region155: #{autoencoder_g_forward.5} parent=149 // pred_check
          %p3107 = pneg %p254
        $region156: #{autoencoder_g_forward.5} parent=149 // pred_check_branch
          %3109 = sbr.rel (%p3107) target = $region158
        $region157: #{autoencoder_g_forward.5} parent=149 // pred_region
          %s3110 = smul.u32 16, %s27
          %p3111 = scmp.lt.s32.totalorder %s3110, 31
          %s3112 = scalar_select %p3111, %s3110, 31
          %s3113 = smul.addr %s3112, 8
          %s3114 = scalar_lea.vmem %s8, %s3113
        $region158: #{autoencoder_g_forward.5} parent=149 // pred_fallthru
          _
      $region150: #{autoencoder_g_forward.5} parent=5 // pred_fallthru
        _
    $region6: #{autoencoder_g_forward.5} parent=1 // loop_footer
      %s20 = sadd.s32 1, %s16
    $region7: #{autoencoder_g_forward.5} parent=1 // loop_footer_branch
      %15 = sbr.rel target = $region3
    $region8: #{autoencoder_g_forward.5} parent=1 // loop_exit
      _

</llo_original>
